<compile_context>
chip_gen: v6e
topology: v6e:2x2x1
jax: 0.10.0
libtpu: 0.0.40
codegen_flags: <defaults>
</compile_context>

<pallas_src>
import string
import zlib

import jax
import jax.numpy as jnp
from jax.experimental import pallas as pl
from jax.experimental.pallas import tpu as pltpu

# ----------------------------------------------------------------------------
# Vocabulary / constants (mirrors the reference module's globals)
# ----------------------------------------------------------------------------
PRINTABLE = list(string.printable)                 # encoder input vocabulary
PAD = "<pad>"
EOS = "<eos>"
OUTPUT_VOCAB = list(string.ascii_lowercase) + ["'", "-", PAD, EOS]
VALID_CHARS = set(string.ascii_letters + "'-")

MAX_OUTPUT_LEN = 10
MAX_INPUT_LEN = 32

HIDDEN_SZ = 32        # hidden size H (4H = 128 -> one lane-full gate vector)
NUM_LAYERS = 2
INPUT_SZ = len(PRINTABLE)        # 100
OUTPUT_SZ = len(OUTPUT_VOCAB)    # 30
PAD_IDX = OUTPUT_VOCAB.index(PAD)
EOS_IDX = OUTPUT_VOCAB.index(EOS)

G4 = 4 * HIDDEN_SZ               # 128 (gate vector width)
V_PAD = 128                      # lane-padded projection / sampling width
EMB_PAD = 32                     # row-padded decoder embedding table

# TODO(synk): Encoder/Decoder class bodies are not shown in the reference; we
# assume Embedding(-> hidden_sz) + nn.LSTM(hidden_sz, hidden_sz, num_layers)
# and a Linear(hidden_sz, output_sz) + softmax/Categorical head in the decoder.


# ----------------------------------------------------------------------------
# Fused Pallas kernel: encoder recurrence + autoregressive decoder + sampling
# ----------------------------------------------------------------------------
def _dae_fused_kernel(enc_len_ref, x_seq_ref,
                      enc_w_ref, enc_b_ref, dec_w_ref, dec_b_ref,
                      dec_emb_ref, w_out_ref, b_out_ref, gumbel_ref,
                      tokens_ref, logits_ref):
    H = HIDDEN_SZ

    def cell(x, h, c, w, b):
        # Fused-gate LSTM cell: one (1,2H)@(2H,4H) dot, PyTorch gate order.
        xh = jnp.concatenate([x, h], axis=-1)                               # (1, 2H)
        gates = jnp.dot(xh, w, preferred_element_type=jnp.float32) + b      # (1, 4H)
        sg = jax.nn.sigmoid(gates)      # full-vreg EUP op
        tg = jnp.tanh(gates)            # full-vreg EUP op
        i_g = sg[:, 0:H]
        f_g = sg[:, H:2 * H]
        g_g = tg[:, 2 * H:3 * H]
        o_g = sg[:, 3 * H:4 * H]
        c_new = f_g * c + i_g * g_g
        h_new = o_g * jnp.tanh(c_new)
        return h_new, c_new

    zero = jnp.zeros((1, H), jnp.float32)

    # -------- encoder: dynamic-length recurrence, state carried in vregs ----
    ew0, eb0 = enc_w_ref[0], enc_b_ref[0]
    ew1, eb1 = enc_w_ref[1], enc_b_ref[1]

    def enc_body(t, carry):
        h0, c0, h1, c1 = carry
        x = x_seq_ref[pl.ds(t, 1), :]                                       # (1, H)
        h0, c0 = cell(x, h0, c0, ew0, eb0)
        h1, c1 = cell(h0, h1, c1, ew1, eb1)
        return h0, c0, h1, c1

    h0, c0, h1, c1 = jax.lax.fori_loop(
        0, enc_len_ref[0], enc_body, (zero, zero, zero, zero))

    # -------- decoder: MAX_OUTPUT_LEN steps, on-device Gumbel-max sampling --
    lane_out = jax.lax.broadcasted_iota(jnp.int32, (1, V_PAD), 1)
    lane_emb = jax.lax.broadcasted_iota(jnp.int32, (1, EMB_PAD), 1)

    dw0, db0 = dec_w_ref[0], dec_b_ref[0]
    dw1, db1 = dec_w_ref[1], dec_b_ref[1]

    tok = jnp.full((1, 1), PAD_IDX, jnp.int32)        # decoder input token
    done = jnp.zeros((1, 1), jnp.int32)               # EOS latch
    tokens = jnp.full((1, V_PAD), EOS_IDX, jnp.int32)

    for step in range(MAX_OUTPUT_LEN):
        # Embedding lookup as a one-hot matmul (no dynamic gather needed).
        onehot = (lane_emb == tok).astype(jnp.float32)                      # (1, EMB_PAD)
        x = jnp.dot(onehot, dec_emb_ref[...],
                    preferred_element_type=jnp.float32)                     # (1, H)

        h0, c0 = cell(x, h0, c0, dw0, db0)
        h1, c1 = cell(h0, h1, c1, dw1, db1)

        # Lane-dense projection; pad lanes carry bias -1e30 -> never sampled.
        logits = (jnp.dot(h1, w_out_ref[...], preferred_element_type=jnp.float32)
                  + b_out_ref[...])                                         # (1, 128)
        logits_ref[pl.ds(step, 1), :] = logits

        # Gumbel-max categorical sample (equivalent to softmax + Categorical).
        gumbel = gumbel_ref[pl.ds(step, 1), :]                              # (1, 128)
        scores = logits + gumbel

        m = jnp.max(scores, axis=-1, keepdims=True)                         # (1, 1)
        cand = jnp.where(scores >= m, lane_out, jnp.int32(V_PAD))
        sample = jnp.min(cand, axis=-1, keepdims=True)                      # (1, 1)

        # Once EOS has been produced, keep emitting EOS (host truncates).
        sample = jnp.where(done > 0, jnp.int32(EOS_IDX), sample)
        tokens = jnp.where(lane_out == step, sample, tokens)
        done = jnp.maximum(done, (sample == EOS_IDX).astype(jnp.int32))
        tok = sample

    tokens_ref[...] = tokens


_SMEM_SPEC = pl.BlockSpec(memory_space=pltpu.MemorySpace.SMEM)
_VMEM_SPEC = pl.BlockSpec(memory_space=pltpu.MemorySpace.VMEM)

_fused_forward = pl.pallas_call(
    _dae_fused_kernel,
    out_shape=(
        jax.ShapeDtypeStruct((1, V_PAD), jnp.int32),                 # sampled tokens
        jax.ShapeDtypeStruct((MAX_OUTPUT_LEN, V_PAD), jnp.float32),  # per-step logits
    ),
    in_specs=[_SMEM_SPEC] + [_VMEM_SPEC] * 9,
    out_specs=(_VMEM_SPEC, _VMEM_SPEC),
)


@jax.jit
def _dae_device(params, idx_padded, enc_len, key):
    # Encoder embedding gather (nn.Embedding) done once outside the kernel.
    x_seq = jnp.take(params["enc_embed"], idx_padded, axis=0)     # (MAX_IN, H)
    # Gumbel noise for all decoder steps generated up-front (tiny block);
    # avoids TPU-only PRNG primitives and any per-step host sync.
    gumbel = jax.random.gumbel(key, (MAX_OUTPUT_LEN, V_PAD), dtype=jnp.float32)
    tokens, logits = _fused_forward(
        enc_len, x_seq,
        params["enc_w"], params["enc_b"],
        params["dec_w"], params["dec_b"],
        params["dec_embed"], params["w_out"], params["b_out"], gumbel)
    return tokens[0, :MAX_OUTPUT_LEN], logits


# ----------------------------------------------------------------------------
# Parameter construction (deterministic, synthetic)
# ----------------------------------------------------------------------------
def make_params(key):
    def nrm(k, shape, scale=0.1):
        return (scale * jax.random.normal(k, shape)).astype(jnp.float32)

    keys = iter(jax.random.split(key, 16))

    enc_embed = nrm(next(keys), (INPUT_SZ, HIDDEN_SZ))
    dec_embed = jnp.zeros((EMB_PAD, HIDDEN_SZ), jnp.float32)
    dec_embed = dec_embed.at[:OUTPUT_SZ].set(nrm(next(keys), (OUTPUT_SZ, HIDDEN_SZ)))
    w_out = jnp.zeros((HIDDEN_SZ, V_PAD), jnp.float32)
    w_out = w_out.at[:, :OUTPUT_SZ].set(nrm(next(keys), (HIDDEN_SZ, OUTPUT_SZ)))
    b_out = jnp.full((1, V_PAD), -1e30, jnp.float32)
    b_out = b_out.at[:, :OUTPUT_SZ].set(nrm(next(keys), (1, OUTPUT_SZ)))

    def lstm_stack():
        ws, bs = [], []
        for _ in range(NUM_LAYERS):
            w_ih = nrm(next(keys), (HIDDEN_SZ, G4))
            w_hh = nrm(next(keys), (HIDDEN_SZ, G4))
            ws.append(jnp.concatenate([w_ih, w_hh], axis=0))      # (2H, 4H)
            bs.append(nrm(next(keys), (1, G4)))
        return jnp.stack(ws), jnp.stack(bs)

    enc_w, enc_b = lstm_stack()
    dec_w, dec_b = lstm_stack()
    return dict(enc_embed=enc_embed, dec_embed=dec_embed, w_out=w_out, b_out=b_out,
                enc_w=enc_w, enc_b=enc_b, dec_w=dec_w, dec_b=dec_b)


# ----------------------------------------------------------------------------
# Forward pass mirroring DenoisingAutoEncoder.forward(input, address)
# ----------------------------------------------------------------------------
def dae_forward(params, input_idx, address):
    # Host-side character filtering (mirrors the .item() loop in the reference).
    host_idx = [int(v) for v in jax.device_get(input_idx)]
    filtered = [i for i in host_idx if PRINTABLE[i] in VALID_CHARS][:MAX_INPUT_LEN]
    enc_len = len(filtered)
    idx_padded = jnp.array(filtered + [0] * (MAX_INPUT_LEN - enc_len), jnp.int32)

    # Deterministic, process-independent seed from the pyro sample-site address.
    seed = zlib.crc32(address.encode("utf-8")) % (2 ** 31)
    key = jax.random.PRNGKey(seed)

    tokens, logits = _dae_device(params, idx_padded,
                                 jnp.array([enc_len], jnp.int32), key)

    tokens_host = [int(t) for t in jax.device_get(tokens)]
    outputs = []
    for t in tokens_host:              # EOS truncation (== the reference `break`)
        if t == EOS_IDX:
            break
        outputs.append(t)
    return outputs, (tokens_host, logits, filtered)


# ----------------------------------------------------------------------------
# Pure-JAX reference for the deterministic part (numerics check)
# ----------------------------------------------------------------------------
def _reference_decoder_logits(params, filtered, fed_tokens):
    H = HIDDEN_SZ
    hi = jax.lax.Precision.HIGHEST

    def cell(x, h, c, w, b):
        gates = jnp.dot(jnp.concatenate([x, h], axis=-1), w, precision=hi) + b
        sg = jax.nn.sigmoid(gates)
        tg = jnp.tanh(gates)
        c_new = sg[:, H:2 * H] * c + sg[:, :H] * tg[:, 2 * H:3 * H]
        return sg[:, 3 * H:] * jnp.tanh(c_new), c_new

    h = [jnp.zeros((1, H), jnp.float32) for _ in range(NUM_LAYERS)]
    c = [jnp.zeros((1, H), jnp.float32) for _ in range(NUM_LAYERS)]
    for idx in filtered:
        x = params["enc_embed"][idx][None, :]
        h[0], c[0] = cell(x, h[0], c[0], params["enc_w"][0], params["enc_b"][0])
        h[1], c[1] = cell(h[0], h[1], c[1], params["enc_w"][1], params["enc_b"][1])

    tok = PAD_IDX
    logits_steps = []
    for step in range(MAX_OUTPUT_LEN):
        x = params["dec_embed"][tok][None, :]
        h[0], c[0] = cell(x, h[0], c[0], params["dec_w"][0], params["dec_b"][0])
        h[1], c[1] = cell(h[0], h[1], c[1], params["dec_w"][1], params["dec_b"][1])
        logits_steps.append(jnp.dot(h[1], params["w_out"], precision=hi)
                            + params["b_out"])
        tok = int(fed_tokens[step])    # replay the kernel's sampled sequence
    return jnp.concatenate(logits_steps, axis=0)


# ----------------------------------------------------------------------------
if __name__ == "__main__":
    key = jax.random.PRNGKey(0)
    params = make_params(key)

    # Deterministic example input: "kernelok" plus two non-letter chars that
    # the forward() filter must skip.
    letters = [PRINTABLE.index(c) for c in "kernelok"]
    input_idx = jnp.array(letters + [PRINTABLE.index(" "), PRINTABLE.index("3")],
                          dtype=jnp.int32)

    outputs, (tokens_host, kernel_logits, filtered) = dae_forward(
        params, input_idx, address="name_0")
    kernel_logits = jax.block_until_ready(kernel_logits)

    # Check the deterministic recurrence/projection against a pure-JAX reference
    # replaying the exact token sequence the kernel sampled.
    ref_logits = _reference_decoder_logits(params, filtered, tokens_host)
    assert jnp.allclose(kernel_logits[:, :OUTPUT_SZ], ref_logits[:, :OUTPUT_SZ],
                        atol=1e-2, rtol=1e-2), "kernel vs reference logits mismatch"

    assert len(outputs) <= MAX_OUTPUT_LEN
    assert all(0 <= s < OUTPUT_SZ and s != EOS_IDX for s in outputs)
    print("KERNEL_OK")
</pallas_src>

<mosaic_0001>
module attributes {stable_mosaic.version = 11 : i64} {
  func.func @_dae_fused_kernel(%arg0: memref<1xi32, #tpu.memory_space<smem>>, %arg1: memref<32x32xf32, #tpu.memory_space<vmem>>, %arg2: memref<2x64x128xf32, #tpu.memory_space<vmem>>, %arg3: memref<2x1x128xf32, #tpu.memory_space<vmem>>, %arg4: memref<2x64x128xf32, #tpu.memory_space<vmem>>, %arg5: memref<2x1x128xf32, #tpu.memory_space<vmem>>, %arg6: memref<32x32xf32, #tpu.memory_space<vmem>>, %arg7: memref<32x128xf32, #tpu.memory_space<vmem>>, %arg8: memref<1x128xf32, #tpu.memory_space<vmem>>, %arg9: memref<10x128xf32, #tpu.memory_space<vmem>>, %arg10: memref<1x128xi32, #tpu.memory_space<vmem>>, %arg11: memref<10x128xf32, #tpu.memory_space<vmem>>) attributes {dimension_semantics = [], scalar_prefetch = 0 : i64, scratch_operands = 0 : i64, tpu.core_type = #tpu.core_type<tc>} {
    %cst = arith.constant 0.000000e+00 : f32
    %0 = vector.broadcast %cst : f32 to vector<1x32xf32>
    %c0 = arith.constant 0 : index
    %c0_0 = arith.constant 0 : index
    %c0_1 = arith.constant 0 : index
    %1 = vector.load %arg2[%c0, %c0_0, %c0_1] : memref<2x64x128xf32, #tpu.memory_space<vmem>>, vector<1x64x128xf32>
    %2 = vector.shape_cast %1 : vector<1x64x128xf32> to vector<64x128xf32>
    %c0_2 = arith.constant 0 : index
    %c0_3 = arith.constant 0 : index
    %c0_4 = arith.constant 0 : index
    %3 = vector.load %arg3[%c0_2, %c0_3, %c0_4] : memref<2x1x128xf32, #tpu.memory_space<vmem>>, vector<1x1x128xf32>
    %4 = vector.shape_cast %3 : vector<1x1x128xf32> to vector<1x128xf32>
    %c1 = arith.constant 1 : index
    %c0_5 = arith.constant 0 : index
    %c0_6 = arith.constant 0 : index
    %5 = vector.load %arg2[%c1, %c0_5, %c0_6] : memref<2x64x128xf32, #tpu.memory_space<vmem>>, vector<1x64x128xf32>
    %6 = vector.shape_cast %5 : vector<1x64x128xf32> to vector<64x128xf32>
    %c1_7 = arith.constant 1 : index
    %c0_8 = arith.constant 0 : index
    %c0_9 = arith.constant 0 : index
    %7 = vector.load %arg3[%c1_7, %c0_8, %c0_9] : memref<2x1x128xf32, #tpu.memory_space<vmem>>, vector<1x1x128xf32>
    %8 = vector.shape_cast %7 : vector<1x1x128xf32> to vector<1x128xf32>
    %c0_10 = arith.constant 0 : index
    %9 = memref.load %arg0[%c0_10] : memref<1xi32, #tpu.memory_space<smem>>
    %c0_i32 = arith.constant 0 : i32
    %10 = arith.subi %9, %c0_i32 : i32
    %11 = arith.addi %c0_i32, %10 : i32
    %c1_i32 = arith.constant 1 : i32
    %12:4 = scf.for %arg12 = %c0_i32 to %11 step %c1_i32 iter_args(%arg13 = %0, %arg14 = %0, %arg15 = %0, %arg16 = %0) -> (vector<1x32xf32>, vector<1x32xf32>, vector<1x32xf32>, vector<1x32xf32>)  : i32 {
      %723 = arith.index_cast %arg12 : i32 to index
      %c0_238 = arith.constant 0 : index
      %724 = vector.load %arg1[%723, %c0_238] : memref<32x32xf32, #tpu.memory_space<vmem>>, vector<1x32xf32>
      %725 = tpu.concatenate %724, %arg13 in 1 : vector<1x32xf32>, vector<1x32xf32> -> vector<1x64xf32>
      %cst_239 = arith.constant dense<0.000000e+00> : vector<1x128xf32>
      %726 = tpu.matmul %725, %2, %cst_239 {dimension_numbers = #tpu.dot_dimension_numbers<[1], [0], [0], [1], [0, 0, 1, 1], [], []>} : vector<1x64xf32>, vector<64x128xf32>, vector<1x128xf32> -> vector<1x128xf32>
      %727 = arith.addf %726, %4 : vector<1x128xf32>
      %728 = arith.negf %727 : vector<1x128xf32>
      %729 = math.exp %728 : vector<1x128xf32>
      %cst_240 = arith.constant 1.000000e+00 : f32
      %730 = vector.broadcast %cst_240 : f32 to vector<1x128xf32>
      %731 = arith.addf %730, %729 : vector<1x128xf32>
      %732 = arith.divf %730, %731 : vector<1x128xf32>
      %733 = math.tanh %727 : vector<1x128xf32>
      %734 = vector.extract_strided_slice %732 {offsets = [0, 0], sizes = [1, 32], strides = [1, 1]} : vector<1x128xf32> to vector<1x32xf32>
      %735 = vector.extract_strided_slice %732 {offsets = [0, 32], sizes = [1, 32], strides = [1, 1]} : vector<1x128xf32> to vector<1x32xf32>
      %736 = vector.extract_strided_slice %733 {offsets = [0, 64], sizes = [1, 32], strides = [1, 1]} : vector<1x128xf32> to vector<1x32xf32>
      %737 = vector.extract_strided_slice %732 {offsets = [0, 96], sizes = [1, 32], strides = [1, 1]} : vector<1x128xf32> to vector<1x32xf32>
      %738 = arith.mulf %735, %arg14 : vector<1x32xf32>
      %739 = arith.mulf %734, %736 : vector<1x32xf32>
      %740 = arith.addf %738, %739 : vector<1x32xf32>
      %741 = math.tanh %740 : vector<1x32xf32>
      %742 = arith.mulf %737, %741 : vector<1x32xf32>
      %743 = tpu.concatenate %742, %arg15 in 1 : vector<1x32xf32>, vector<1x32xf32> -> vector<1x64xf32>
      %cst_241 = arith.constant dense<0.000000e+00> : vector<1x128xf32>
      %744 = tpu.matmul %743, %6, %cst_241 {dimension_numbers = #tpu.dot_dimension_numbers<[1], [0], [0], [1], [0, 0, 1, 1], [], []>} : vector<1x64xf32>, vector<64x128xf32>, vector<1x128xf32> -> vector<1x128xf32>
      %745 = arith.addf %744, %8 : vector<1x128xf32>
      %746 = arith.negf %745 : vector<1x128xf32>
      %747 = math.exp %746 : vector<1x128xf32>
      %cst_242 = arith.constant 1.000000e+00 : f32
      %748 = vector.broadcast %cst_242 : f32 to vector<1x128xf32>
      %749 = arith.addf %748, %747 : vector<1x128xf32>
      %750 = arith.divf %748, %749 : vector<1x128xf32>
      %751 = math.tanh %745 : vector<1x128xf32>
      %752 = vector.extract_strided_slice %750 {offsets = [0, 0], sizes = [1, 32], strides = [1, 1]} : vector<1x128xf32> to vector<1x32xf32>
      %753 = vector.extract_strided_slice %750 {offsets = [0, 32], sizes = [1, 32], strides = [1, 1]} : vector<1x128xf32> to vector<1x32xf32>
      %754 = vector.extract_strided_slice %751 {offsets = [0, 64], sizes = [1, 32], strides = [1, 1]} : vector<1x128xf32> to vector<1x32xf32>
      %755 = vector.extract_strided_slice %750 {offsets = [0, 96], sizes = [1, 32], strides = [1, 1]} : vector<1x128xf32> to vector<1x32xf32>
      %756 = arith.mulf %753, %arg16 : vector<1x32xf32>
      %757 = arith.mulf %752, %754 : vector<1x32xf32>
      %758 = arith.addf %756, %757 : vector<1x32xf32>
      %759 = math.tanh %758 : vector<1x32xf32>
      %760 = arith.mulf %755, %759 : vector<1x32xf32>
      scf.yield %742, %740, %760, %758 : vector<1x32xf32>, vector<1x32xf32>, vector<1x32xf32>, vector<1x32xf32>
    }
    %13 = tpu.iota {dimensions = array<i32: 1>} : vector<1x128xi32>
    %14 = tpu.iota {dimensions = array<i32: 1>} : vector<1x32xi32>
    %c0_11 = arith.constant 0 : index
    %c0_12 = arith.constant 0 : index
    %c0_13 = arith.constant 0 : index
    %15 = vector.load %arg4[%c0_11, %c0_12, %c0_13] : memref<2x64x128xf32, #tpu.memory_space<vmem>>, vector<1x64x128xf32>
    %16 = vector.shape_cast %15 : vector<1x64x128xf32> to vector<64x128xf32>
    %c0_14 = arith.constant 0 : index
    %c0_15 = arith.constant 0 : index
    %c0_16 = arith.constant 0 : index
    %17 = vector.load %arg5[%c0_14, %c0_15, %c0_16] : memref<2x1x128xf32, #tpu.memory_space<vmem>>, vector<1x1x128xf32>
    %18 = vector.shape_cast %17 : vector<1x1x128xf32> to vector<1x128xf32>
    %c1_17 = arith.constant 1 : index
    %c0_18 = arith.constant 0 : index
    %c0_19 = arith.constant 0 : index
    %19 = vector.load %arg4[%c1_17, %c0_18, %c0_19] : memref<2x64x128xf32, #tpu.memory_space<vmem>>, vector<1x64x128xf32>
    %20 = vector.shape_cast %19 : vector<1x64x128xf32> to vector<64x128xf32>
    %c1_20 = arith.constant 1 : index
    %c0_21 = arith.constant 0 : index
    %c0_22 = arith.constant 0 : index
    %21 = vector.load %arg5[%c1_20, %c0_21, %c0_22] : memref<2x1x128xf32, #tpu.memory_space<vmem>>, vector<1x1x128xf32>
    %22 = vector.shape_cast %21 : vector<1x1x128xf32> to vector<1x128xf32>
    %c28_i32 = arith.constant 28 : i32
    %23 = vector.broadcast %c28_i32 : i32 to vector<1x1xi32>
    %c0_i32_23 = arith.constant 0 : i32
    %24 = vector.broadcast %c0_i32_23 : i32 to vector<1x1xi32>
    %c29_i32 = arith.constant 29 : i32
    %25 = vector.broadcast %c29_i32 : i32 to vector<1x128xi32>
    %26 = vector.broadcast %23 : vector<1x1xi32> to vector<1x32xi32>
    %27 = arith.cmpi eq, %14, %26 : vector<1x32xi32>
    %28 = arith.extui %27 : vector<1x32xi1> to vector<1x32xi32>
    %29 = arith.sitofp %28 : vector<1x32xi32> to vector<1x32xf32>
    %c0_24 = arith.constant 0 : index
    %c0_25 = arith.constant 0 : index
    %30 = vector.load %arg6[%c0_24, %c0_25] : memref<32x32xf32, #tpu.memory_space<vmem>>, vector<32x32xf32>
    %cst_26 = arith.constant dense<0.000000e+00> : vector<1x32xf32>
    %31 = tpu.matmul %29, %30, %cst_26 {dimension_numbers = #tpu.dot_dimension_numbers<[1], [0], [0], [1], [0, 0, 1, 1], [], []>} : vector<1x32xf32>, vector<32x32xf32>, vector<1x32xf32> -> vector<1x32xf32>
    %32 = tpu.concatenate %31, %12#0 in 1 : vector<1x32xf32>, vector<1x32xf32> -> vector<1x64xf32>
    %cst_27 = arith.constant dense<0.000000e+00> : vector<1x128xf32>
    %33 = tpu.matmul %32, %16, %cst_27 {dimension_numbers = #tpu.dot_dimension_numbers<[1], [0], [0], [1], [0, 0, 1, 1], [], []>} : vector<1x64xf32>, vector<64x128xf32>, vector<1x128xf32> -> vector<1x128xf32>
    %34 = arith.addf %33, %18 : vector<1x128xf32>
    %35 = arith.negf %34 : vector<1x128xf32>
    %36 = math.exp %35 : vector<1x128xf32>
    %cst_28 = arith.constant 1.000000e+00 : f32
    %37 = vector.broadcast %cst_28 : f32 to vector<1x128xf32>
    %38 = arith.addf %37, %36 : vector<1x128xf32>
    %39 = arith.divf %37, %38 : vector<1x128xf32>
    %40 = math.tanh %34 : vector<1x128xf32>
    %41 = vector.extract_strided_slice %39 {offsets = [0, 0], sizes = [1, 32], strides = [1, 1]} : vector<1x128xf32> to vector<1x32xf32>
    %42 = vector.extract_strided_slice %39 {offsets = [0, 32], sizes = [1, 32], strides = [1, 1]} : vector<1x128xf32> to vector<1x32xf32>
    %43 = vector.extract_strided_slice %40 {offsets = [0, 64], sizes = [1, 32], strides = [1, 1]} : vector<1x128xf32> to vector<1x32xf32>
    %44 = vector.extract_strided_slice %39 {offsets = [0, 96], sizes = [1, 32], strides = [1, 1]} : vector<1x128xf32> to vector<1x32xf32>
    %45 = arith.mulf %42, %12#1 : vector<1x32xf32>
    %46 = arith.mulf %41, %43 : vector<1x32xf32>
    %47 = arith.addf %45, %46 : vector<1x32xf32>
    %48 = math.tanh %47 : vector<1x32xf32>
    %49 = arith.mulf %44, %48 : vector<1x32xf32>
    %50 = tpu.concatenate %49, %12#2 in 1 : vector<1x32xf32>, vector<1x32xf32> -> vector<1x64xf32>
    %cst_29 = arith.constant dense<0.000000e+00> : vector<1x128xf32>
    %51 = tpu.matmul %50, %20, %cst_29 {dimension_numbers = #tpu.dot_dimension_numbers<[1], [0], [0], [1], [0, 0, 1, 1], [], []>} : vector<1x64xf32>, vector<64x128xf32>, vector<1x128xf32> -> vector<1x128xf32>
    %52 = arith.addf %51, %22 : vector<1x128xf32>
    %53 = arith.negf %52 : vector<1x128xf32>
    %54 = math.exp %53 : vector<1x128xf32>
    %cst_30 = arith.constant 1.000000e+00 : f32
    %55 = vector.broadcast %cst_30 : f32 to vector<1x128xf32>
    %56 = arith.addf %55, %54 : vector<1x128xf32>
    %57 = arith.divf %55, %56 : vector<1x128xf32>
    %58 = math.tanh %52 : vector<1x128xf32>
    %59 = vector.extract_strided_slice %57 {offsets = [0, 0], sizes = [1, 32], strides = [1, 1]} : vector<1x128xf32> to vector<1x32xf32>
    %60 = vector.extract_strided_slice %57 {offsets = [0, 32], sizes = [1, 32], strides = [1, 1]} : vector<1x128xf32> to vector<1x32xf32>
    %61 = vector.extract_strided_slice %58 {offsets = [0, 64], sizes = [1, 32], strides = [1, 1]} : vector<1x128xf32> to vector<1x32xf32>
    %62 = vector.extract_strided_slice %57 {offsets = [0, 96], sizes = [1, 32], strides = [1, 1]} : vector<1x128xf32> to vector<1x32xf32>
    %63 = arith.mulf %60, %12#3 : vector<1x32xf32>
    %64 = arith.mulf %59, %61 : vector<1x32xf32>
    %65 = arith.addf %63, %64 : vector<1x32xf32>
    %66 = math.tanh %65 : vector<1x32xf32>
    %67 = arith.mulf %62, %66 : vector<1x32xf32>
    %c0_31 = arith.constant 0 : index
    %c0_32 = arith.constant 0 : index
    %68 = vector.load %arg7[%c0_31, %c0_32] : memref<32x128xf32, #tpu.memory_space<vmem>>, vector<32x128xf32>
    %cst_33 = arith.constant dense<0.000000e+00> : vector<1x128xf32>
    %69 = tpu.matmul %67, %68, %cst_33 {dimension_numbers = #tpu.dot_dimension_numbers<[1], [0], [0], [1], [0, 0, 1, 1], [], []>} : vector<1x32xf32>, vector<32x128xf32>, vector<1x128xf32> -> vector<1x128xf32>
    %c0_34 = arith.constant 0 : index
    %c0_35 = arith.constant 0 : index
    %70 = vector.load %arg8[%c0_34, %c0_35] : memref<1x128xf32, #tpu.memory_space<vmem>>, vector<1x128xf32>
    %71 = arith.addf %69, %70 : vector<1x128xf32>
    %c0_36 = arith.constant 0 : index
    %c0_37 = arith.constant 0 : index
    %72 = vector.load %arg11[%c0_36, %c0_37] : memref<10x128xf32, #tpu.memory_space<vmem>>, vector<1x128xf32>
    tpu.vector_store %arg11[%c0_36, %c0_37], %71 {strides = array<i32>} : memref<10x128xf32, #tpu.memory_space<vmem>>, vector<1x128xf32>,
    %c0_38 = arith.constant 0 : index
    %c0_39 = arith.constant 0 : index
    %73 = vector.load %arg9[%c0_38, %c0_39] : memref<10x128xf32, #tpu.memory_space<vmem>>, vector<1x128xf32>
    %74 = arith.addf %71, %73 : vector<1x128xf32>
    %cst_40 = arith.constant dense<0xFF800000> : vector<1xf32>
    %75 = vector.multi_reduction <maximumf>, %74, %cst_40 [1] : vector<1x128xf32> to vector<1xf32>
    %76 = vector.shape_cast %75 : vector<1xf32> to vector<1x1xf32>
    %77 = vector.broadcast %76 : vector<1x1xf32> to vector<1x128xf32>
    %78 = arith.cmpf oge, %74, %77 : vector<1x128xf32>
    %c128_i32 = arith.constant 128 : i32
    %79 = vector.broadcast %c128_i32 : i32 to vector<1x128xi32>
    %80 = arith.select %78, %13, %79 : vector<1x128xi1>, vector<1x128xi32>
    %cst_41 = arith.constant dense<2147483647> : vector<1xi32>
    %81 = vector.multi_reduction <minsi>, %80, %cst_41 [1] : vector<1x128xi32> to vector<1xi32>
    %82 = vector.shape_cast %81 : vector<1xi32> to vector<1x1xi32>
    %c0_i32_42 = arith.constant 0 : i32
    %83 = vector.broadcast %c0_i32_42 : i32 to vector<1x1xi32>
    %84 = arith.cmpi sgt, %24, %83 : vector<1x1xi32>
    %c29_i32_43 = arith.constant 29 : i32
    %85 = vector.broadcast %c29_i32_43 : i32 to vector<1x1xi32>
    %86 = arith.select %84, %85, %82 : vector<1x1xi1>, vector<1x1xi32>
    %c0_i32_44 = arith.constant 0 : i32
    %87 = vector.broadcast %c0_i32_44 : i32 to vector<1x128xi32>
    %88 = arith.cmpi eq, %13, %87 : vector<1x128xi32>
    %89 = vector.shape_cast %86 : vector<1x1xi32> to vector<1x1xi32>
    %90 = vector.broadcast %89 : vector<1x1xi32> to vector<1x128xi32>
    %91 = arith.select %88, %90, %25 : vector<1x128xi1>, vector<1x128xi32>
    %c29_i32_45 = arith.constant 29 : i32
    %92 = vector.broadcast %c29_i32_45 : i32 to vector<1x1xi32>
    %93 = arith.cmpi eq, %86, %92 : vector<1x1xi32>
    %94 = arith.extui %93 : vector<1x1xi1> to vector<1x1xi32>
    %95 = arith.maxsi %24, %94 : vector<1x1xi32>
    %96 = vector.broadcast %86 : vector<1x1xi32> to vector<1x32xi32>
    %97 = arith.cmpi eq, %14, %96 : vector<1x32xi32>
    %98 = arith.extui %97 : vector<1x32xi1> to vector<1x32xi32>
    %99 = arith.sitofp %98 : vector<1x32xi32> to vector<1x32xf32>
    %c0_46 = arith.constant 0 : index
    %c0_47 = arith.constant 0 : index
    %100 = vector.load %arg6[%c0_46, %c0_47] : memref<32x32xf32, #tpu.memory_space<vmem>>, vector<32x32xf32>
    %cst_48 = arith.constant dense<0.000000e+00> : vector<1x32xf32>
    %101 = tpu.matmul %99, %100, %cst_48 {dimension_numbers = #tpu.dot_dimension_numbers<[1], [0], [0], [1], [0, 0, 1, 1], [], []>} : vector<1x32xf32>, vector<32x32xf32>, vector<1x32xf32> -> vector<1x32xf32>
    %102 = tpu.concatenate %101, %49 in 1 : vector<1x32xf32>, vector<1x32xf32> -> vector<1x64xf32>
    %cst_49 = arith.constant dense<0.000000e+00> : vector<1x128xf32>
    %103 = tpu.matmul %102, %16, %cst_49 {dimension_numbers = #tpu.dot_dimension_numbers<[1], [0], [0], [1], [0, 0, 1, 1], [], []>} : vector<1x64xf32>, vector<64x128xf32>, vector<1x128xf32> -> vector<1x128xf32>
    %104 = arith.addf %103, %18 : vector<1x128xf32>
    %105 = arith.negf %104 : vector<1x128xf32>
    %106 = math.exp %105 : vector<1x128xf32>
    %cst_50 = arith.constant 1.000000e+00 : f32
    %107 = vector.broadcast %cst_50 : f32 to vector<1x128xf32>
    %108 = arith.addf %107, %106 : vector<1x128xf32>
    %109 = arith.divf %107, %108 : vector<1x128xf32>
    %110 = math.tanh %104 : vector<1x128xf32>
    %111 = vector.extract_strided_slice %109 {offsets = [0, 0], sizes = [1, 32], strides = [1, 1]} : vector<1x128xf32> to vector<1x32xf32>
    %112 = vector.extract_strided_slice %109 {offsets = [0, 32], sizes = [1, 32], strides = [1, 1]} : vector<1x128xf32> to vector<1x32xf32>
    %113 = vector.extract_strided_slice %110 {offsets = [0, 64], sizes = [1, 32], strides = [1, 1]} : vector<1x128xf32> to vector<1x32xf32>
    %114 = vector.extract_strided_slice %109 {offsets = [0, 96], sizes = [1, 32], strides = [1, 1]} : vector<1x128xf32> to vector<1x32xf32>
    %115 = arith.mulf %112, %47 : vector<1x32xf32>
    %116 = arith.mulf %111, %113 : vector<1x32xf32>
    %117 = arith.addf %115, %116 : vector<1x32xf32>
    %118 = math.tanh %117 : vector<1x32xf32>
    %119 = arith.mulf %114, %118 : vector<1x32xf32>
    %120 = tpu.concatenate %119, %67 in 1 : vector<1x32xf32>, vector<1x32xf32> -> vector<1x64xf32>
    %cst_51 = arith.constant dense<0.000000e+00> : vector<1x128xf32>
    %121 = tpu.matmul %120, %20, %cst_51 {dimension_numbers = #tpu.dot_dimension_numbers<[1], [0], [0], [1], [0, 0, 1, 1], [], []>} : vector<1x64xf32>, vector<64x128xf32>, vector<1x128xf32> -> vector<1x128xf32>
    %122 = arith.addf %121, %22 : vector<1x128xf32>
    %123 = arith.negf %122 : vector<1x128xf32>
    %124 = math.exp %123 : vector<1x128xf32>
    %cst_52 = arith.constant 1.000000e+00 : f32
    %125 = vector.broadcast %cst_52 : f32 to vector<1x128xf32>
    %126 = arith.addf %125, %124 : vector<1x128xf32>
    %127 = arith.divf %125, %126 : vector<1x128xf32>
    %128 = math.tanh %122 : vector<1x128xf32>
    %129 = vector.extract_strided_slice %127 {offsets = [0, 0], sizes = [1, 32], strides = [1, 1]} : vector<1x128xf32> to vector<1x32xf32>
    %130 = vector.extract_strided_slice %127 {offsets = [0, 32], sizes = [1, 32], strides = [1, 1]} : vector<1x128xf32> to vector<1x32xf32>
    %131 = vector.extract_strided_slice %128 {offsets = [0, 64], sizes = [1, 32], strides = [1, 1]} : vector<1x128xf32> to vector<1x32xf32>
    %132 = vector.extract_strided_slice %127 {offsets = [0, 96], sizes = [1, 32], strides = [1, 1]} : vector<1x128xf32> to vector<1x32xf32>
    %133 = arith.mulf %130, %65 : vector<1x32xf32>
    %134 = arith.mulf %129, %131 : vector<1x32xf32>
    %135 = arith.addf %133, %134 : vector<1x32xf32>
    %136 = math.tanh %135 : vector<1x32xf32>
    %137 = arith.mulf %132, %136 : vector<1x32xf32>
    %c0_53 = arith.constant 0 : index
    %c0_54 = arith.constant 0 : index
    %138 = vector.load %arg7[%c0_53, %c0_54] : memref<32x128xf32, #tpu.memory_space<vmem>>, vector<32x128xf32>
    %cst_55 = arith.constant dense<0.000000e+00> : vector<1x128xf32>
    %139 = tpu.matmul %137, %138, %cst_55 {dimension_numbers = #tpu.dot_dimension_numbers<[1], [0], [0], [1], [0, 0, 1, 1], [], []>} : vector<1x32xf32>, vector<32x128xf32>, vector<1x128xf32> -> vector<1x128xf32>
    %c0_56 = arith.constant 0 : index
    %c0_57 = arith.constant 0 : index
    %140 = vector.load %arg8[%c0_56, %c0_57] : memref<1x128xf32, #tpu.memory_space<vmem>>, vector<1x128xf32>
    %141 = arith.addf %139, %140 : vector<1x128xf32>
    %c1_58 = arith.constant 1 : index
    %c0_59 = arith.constant 0 : index
    %142 = vector.load %arg11[%c1_58, %c0_59] : memref<10x128xf32, #tpu.memory_space<vmem>>, vector<1x128xf32>
    tpu.vector_store %arg11[%c1_58, %c0_59], %141 {strides = array<i32>} : memref<10x128xf32, #tpu.memory_space<vmem>>, vector<1x128xf32>,
    %c1_60 = arith.constant 1 : index
    %c0_61 = arith.constant 0 : index
    %143 = vector.load %arg9[%c1_60, %c0_61] : memref<10x128xf32, #tpu.memory_space<vmem>>, vector<1x128xf32>
    %144 = arith.addf %141, %143 : vector<1x128xf32>
    %cst_62 = arith.constant dense<0xFF800000> : vector<1xf32>
    %145 = vector.multi_reduction <maximumf>, %144, %cst_62 [1] : vector<1x128xf32> to vector<1xf32>
    %146 = vector.shape_cast %145 : vector<1xf32> to vector<1x1xf32>
    %147 = vector.broadcast %146 : vector<1x1xf32> to vector<1x128xf32>
    %148 = arith.cmpf oge, %144, %147 : vector<1x128xf32>
    %c128_i32_63 = arith.constant 128 : i32
    %149 = vector.broadcast %c128_i32_63 : i32 to vector<1x128xi32>
    %150 = arith.select %148, %13, %149 : vector<1x128xi1>, vector<1x128xi32>
    %cst_64 = arith.constant dense<2147483647> : vector<1xi32>
    %151 = vector.multi_reduction <minsi>, %150, %cst_64 [1] : vector<1x128xi32> to vector<1xi32>
    %152 = vector.shape_cast %151 : vector<1xi32> to vector<1x1xi32>
    %c0_i32_65 = arith.constant 0 : i32
    %153 = vector.broadcast %c0_i32_65 : i32 to vector<1x1xi32>
    %154 = arith.cmpi sgt, %95, %153 : vector<1x1xi32>
    %c29_i32_66 = arith.constant 29 : i32
    %155 = vector.broadcast %c29_i32_66 : i32 to vector<1x1xi32>
    %156 = arith.select %154, %155, %152 : vector<1x1xi1>, vector<1x1xi32>
    %c1_i32_67 = arith.constant 1 : i32
    %157 = vector.broadcast %c1_i32_67 : i32 to vector<1x128xi32>
    %158 = arith.cmpi eq, %13, %157 : vector<1x128xi32>
    %159 = vector.shape_cast %156 : vector<1x1xi32> to vector<1x1xi32>
    %160 = vector.broadcast %159 : vector<1x1xi32> to vector<1x128xi32>
    %161 = arith.select %158, %160, %91 : vector<1x128xi1>, vector<1x128xi32>
    %c29_i32_68 = arith.constant 29 : i32
    %162 = vector.broadcast %c29_i32_68 : i32 to vector<1x1xi32>
    %163 = arith.cmpi eq, %156, %162 : vector<1x1xi32>
    %164 = arith.extui %163 : vector<1x1xi1> to vector<1x1xi32>
    %165 = arith.maxsi %95, %164 : vector<1x1xi32>
    %166 = vector.broadcast %156 : vector<1x1xi32> to vector<1x32xi32>
    %167 = arith.cmpi eq, %14, %166 : vector<1x32xi32>
    %168 = arith.extui %167 : vector<1x32xi1> to vector<1x32xi32>
    %169 = arith.sitofp %168 : vector<1x32xi32> to vector<1x32xf32>
    %c0_69 = arith.constant 0 : index
    %c0_70 = arith.constant 0 : index
    %170 = vector.load %arg6[%c0_69, %c0_70] : memref<32x32xf32, #tpu.memory_space<vmem>>, vector<32x32xf32>
    %cst_71 = arith.constant dense<0.000000e+00> : vector<1x32xf32>
    %171 = tpu.matmul %169, %170, %cst_71 {dimension_numbers = #tpu.dot_dimension_numbers<[1], [0], [0], [1], [0, 0, 1, 1], [], []>} : vector<1x32xf32>, vector<32x32xf32>, vector<1x32xf32> -> vector<1x32xf32>
    %172 = tpu.concatenate %171, %119 in 1 : vector<1x32xf32>, vector<1x32xf32> -> vector<1x64xf32>
    %cst_72 = arith.constant dense<0.000000e+00> : vector<1x128xf32>
    %173 = tpu.matmul %172, %16, %cst_72 {dimension_numbers = #tpu.dot_dimension_numbers<[1], [0], [0], [1], [0, 0, 1, 1], [], []>} : vector<1x64xf32>, vector<64x128xf32>, vector<1x128xf32> -> vector<1x128xf32>
    %174 = arith.addf %173, %18 : vector<1x128xf32>
    %175 = arith.negf %174 : vector<1x128xf32>
    %176 = math.exp %175 : vector<1x128xf32>
    %cst_73 = arith.constant 1.000000e+00 : f32
    %177 = vector.broadcast %cst_73 : f32 to vector<1x128xf32>
    %178 = arith.addf %177, %176 : vector<1x128xf32>
    %179 = arith.divf %177, %178 : vector<1x128xf32>
    %180 = math.tanh %174 : vector<1x128xf32>
    %181 = vector.extract_strided_slice %179 {offsets = [0, 0], sizes = [1, 32], strides = [1, 1]} : vector<1x128xf32> to vector<1x32xf32>
    %182 = vector.extract_strided_slice %179 {offsets = [0, 32], sizes = [1, 32], strides = [1, 1]} : vector<1x128xf32> to vector<1x32xf32>
    %183 = vector.extract_strided_slice %180 {offsets = [0, 64], sizes = [1, 32], strides = [1, 1]} : vector<1x128xf32> to vector<1x32xf32>
    %184 = vector.extract_strided_slice %179 {offsets = [0, 96], sizes = [1, 32], strides = [1, 1]} : vector<1x128xf32> to vector<1x32xf32>
    %185 = arith.mulf %182, %117 : vector<1x32xf32>
    %186 = arith.mulf %181, %183 : vector<1x32xf32>
    %187 = arith.addf %185, %186 : vector<1x32xf32>
    %188 = math.tanh %187 : vector<1x32xf32>
    %189 = arith.mulf %184, %188 : vector<1x32xf32>
    %190 = tpu.concatenate %189, %137 in 1 : vector<1x32xf32>, vector<1x32xf32> -> vector<1x64xf32>
    %cst_74 = arith.constant dense<0.000000e+00> : vector<1x128xf32>
    %191 = tpu.matmul %190, %20, %cst_74 {dimension_numbers = #tpu.dot_dimension_numbers<[1], [0], [0], [1], [0, 0, 1, 1], [], []>} : vector<1x64xf32>, vector<64x128xf32>, vector<1x128xf32> -> vector<1x128xf32>
    %192 = arith.addf %191, %22 : vector<1x128xf32>
    %193 = arith.negf %192 : vector<1x128xf32>
    %194 = math.exp %193 : vector<1x128xf32>
    %cst_75 = arith.constant 1.000000e+00 : f32
    %195 = vector.broadcast %cst_75 : f32 to vector<1x128xf32>
    %196 = arith.addf %195, %194 : vector<1x128xf32>
    %197 = arith.divf %195, %196 : vector<1x128xf32>
    %198 = math.tanh %192 : vector<1x128xf32>
    %199 = vector.extract_strided_slice %197 {offsets = [0, 0], sizes = [1, 32], strides = [1, 1]} : vector<1x128xf32> to vector<1x32xf32>
    %200 = vector.extract_strided_slice %197 {offsets = [0, 32], sizes = [1, 32], strides = [1, 1]} : vector<1x128xf32> to vector<1x32xf32>
    %201 = vector.extract_strided_slice %198 {offsets = [0, 64], sizes = [1, 32], strides = [1, 1]} : vector<1x128xf32> to vector<1x32xf32>
    %202 = vector.extract_strided_slice %197 {offsets = [0, 96], sizes = [1, 32], strides = [1, 1]} : vector<1x128xf32> to vector<1x32xf32>
    %203 = arith.mulf %200, %135 : vector<1x32xf32>
    %204 = arith.mulf %199, %201 : vector<1x32xf32>
    %205 = arith.addf %203, %204 : vector<1x32xf32>
    %206 = math.tanh %205 : vector<1x32xf32>
    %207 = arith.mulf %202, %206 : vector<1x32xf32>
    %c0_76 = arith.constant 0 : index
    %c0_77 = arith.constant 0 : index
    %208 = vector.load %arg7[%c0_76, %c0_77] : memref<32x128xf32, #tpu.memory_space<vmem>>, vector<32x128xf32>
    %cst_78 = arith.constant dense<0.000000e+00> : vector<1x128xf32>
    %209 = tpu.matmul %207, %208, %cst_78 {dimension_numbers = #tpu.dot_dimension_numbers<[1], [0], [0], [1], [0, 0, 1, 1], [], []>} : vector<1x32xf32>, vector<32x128xf32>, vector<1x128xf32> -> vector<1x128xf32>
    %c0_79 = arith.constant 0 : index
    %c0_80 = arith.constant 0 : index
    %210 = vector.load %arg8[%c0_79, %c0_80] : memref<1x128xf32, #tpu.memory_space<vmem>>, vector<1x128xf32>
    %211 = arith.addf %209, %210 : vector<1x128xf32>
    %c2 = arith.constant 2 : index
    %c0_81 = arith.constant 0 : index
    %212 = vector.load %arg11[%c2, %c0_81] : memref<10x128xf32, #tpu.memory_space<vmem>>, vector<1x128xf32>
    tpu.vector_store %arg11[%c2, %c0_81], %211 {strides = array<i32>} : memref<10x128xf32, #tpu.memory_space<vmem>>, vector<1x128xf32>,
    %c2_82 = arith.constant 2 : index
    %c0_83 = arith.constant 0 : index
    %213 = vector.load %arg9[%c2_82, %c0_83] : memref<10x128xf32, #tpu.memory_space<vmem>>, vector<1x128xf32>
    %214 = arith.addf %211, %213 : vector<1x128xf32>
    %cst_84 = arith.constant dense<0xFF800000> : vector<1xf32>
    %215 = vector.multi_reduction <maximumf>, %214, %cst_84 [1] : vector<1x128xf32> to vector<1xf32>
    %216 = vector.shape_cast %215 : vector<1xf32> to vector<1x1xf32>
    %217 = vector.broadcast %216 : vector<1x1xf32> to vector<1x128xf32>
    %218 = arith.cmpf oge, %214, %217 : vector<1x128xf32>
    %c128_i32_85 = arith.constant 128 : i32
    %219 = vector.broadcast %c128_i32_85 : i32 to vector<1x128xi32>
    %220 = arith.select %218, %13, %219 : vector<1x128xi1>, vector<1x128xi32>
    %cst_86 = arith.constant dense<2147483647> : vector<1xi32>
    %221 = vector.multi_reduction <minsi>, %220, %cst_86 [1] : vector<1x128xi32> to vector<1xi32>
    %222 = vector.shape_cast %221 : vector<1xi32> to vector<1x1xi32>
    %c0_i32_87 = arith.constant 0 : i32
    %223 = vector.broadcast %c0_i32_87 : i32 to vector<1x1xi32>
    %224 = arith.cmpi sgt, %165, %223 : vector<1x1xi32>
    %c29_i32_88 = arith.constant 29 : i32
    %225 = vector.broadcast %c29_i32_88 : i32 to vector<1x1xi32>
    %226 = arith.select %224, %225, %222 : vector<1x1xi1>, vector<1x1xi32>
    %c2_i32 = arith.constant 2 : i32
    %227 = vector.broadcast %c2_i32 : i32 to vector<1x128xi32>
    %228 = arith.cmpi eq, %13, %227 : vector<1x128xi32>
    %229 = vector.shape_cast %226 : vector<1x1xi32> to vector<1x1xi32>
    %230 = vector.broadcast %229 : vector<1x1xi32> to vector<1x128xi32>
    %231 = arith.select %228, %230, %161 : vector<1x128xi1>, vector<1x128xi32>
    %c29_i32_89 = arith.constant 29 : i32
    %232 = vector.broadcast %c29_i32_89 : i32 to vector<1x1xi32>
    %233 = arith.cmpi eq, %226, %232 : vector<1x1xi32>
    %234 = arith.extui %233 : vector<1x1xi1> to vector<1x1xi32>
    %235 = arith.maxsi %165, %234 : vector<1x1xi32>
    %236 = vector.broadcast %226 : vector<1x1xi32> to vector<1x32xi32>
    %237 = arith.cmpi eq, %14, %236 : vector<1x32xi32>
    %238 = arith.extui %237 : vector<1x32xi1> to vector<1x32xi32>
    %239 = arith.sitofp %238 : vector<1x32xi32> to vector<1x32xf32>
    %c0_90 = arith.constant 0 : index
    %c0_91 = arith.constant 0 : index
    %240 = vector.load %arg6[%c0_90, %c0_91] : memref<32x32xf32, #tpu.memory_space<vmem>>, vector<32x32xf32>
    %cst_92 = arith.constant dense<0.000000e+00> : vector<1x32xf32>
    %241 = tpu.matmul %239, %240, %cst_92 {dimension_numbers = #tpu.dot_dimension_numbers<[1], [0], [0], [1], [0, 0, 1, 1], [], []>} : vector<1x32xf32>, vector<32x32xf32>, vector<1x32xf32> -> vector<1x32xf32>
    %242 = tpu.concatenate %241, %189 in 1 : vector<1x32xf32>, vector<1x32xf32> -> vector<1x64xf32>
    %cst_93 = arith.constant dense<0.000000e+00> : vector<1x128xf32>
    %243 = tpu.matmul %242, %16, %cst_93 {dimension_numbers = #tpu.dot_dimension_numbers<[1], [0], [0], [1], [0, 0, 1, 1], [], []>} : vector<1x64xf32>, vector<64x128xf32>, vector<1x128xf32> -> vector<1x128xf32>
    %244 = arith.addf %243, %18 : vector<1x128xf32>
    %245 = arith.negf %244 : vector<1x128xf32>
    %246 = math.exp %245 : vector<1x128xf32>
    %cst_94 = arith.constant 1.000000e+00 : f32
    %247 = vector.broadcast %cst_94 : f32 to vector<1x128xf32>
    %248 = arith.addf %247, %246 : vector<1x128xf32>
    %249 = arith.divf %247, %248 : vector<1x128xf32>
    %250 = math.tanh %244 : vector<1x128xf32>
    %251 = vector.extract_strided_slice %249 {offsets = [0, 0], sizes = [1, 32], strides = [1, 1]} : vector<1x128xf32> to vector<1x32xf32>
    %252 = vector.extract_strided_slice %249 {offsets = [0, 32], sizes = [1, 32], strides = [1, 1]} : vector<1x128xf32> to vector<1x32xf32>
    %253 = vector.extract_strided_slice %250 {offsets = [0, 64], sizes = [1, 32], strides = [1, 1]} : vector<1x128xf32> to vector<1x32xf32>
    %254 = vector.extract_strided_slice %249 {offsets = [0, 96], sizes = [1, 32], strides = [1, 1]} : vector<1x128xf32> to vector<1x32xf32>
    %255 = arith.mulf %252, %187 : vector<1x32xf32>
    %256 = arith.mulf %251, %253 : vector<1x32xf32>
    %257 = arith.addf %255, %256 : vector<1x32xf32>
    %258 = math.tanh %257 : vector<1x32xf32>
    %259 = arith.mulf %254, %258 : vector<1x32xf32>
    %260 = tpu.concatenate %259, %207 in 1 : vector<1x32xf32>, vector<1x32xf32> -> vector<1x64xf32>
    %cst_95 = arith.constant dense<0.000000e+00> : vector<1x128xf32>
    %261 = tpu.matmul %260, %20, %cst_95 {dimension_numbers = #tpu.dot_dimension_numbers<[1], [0], [0], [1], [0, 0, 1, 1], [], []>} : vector<1x64xf32>, vector<64x128xf32>, vector<1x128xf32> -> vector<1x128xf32>
    %262 = arith.addf %261, %22 : vector<1x128xf32>
    %263 = arith.negf %262 : vector<1x128xf32>
    %264 = math.exp %263 : vector<1x128xf32>
    %cst_96 = arith.constant 1.000000e+00 : f32
    %265 = vector.broadcast %cst_96 : f32 to vector<1x128xf32>
    %266 = arith.addf %265, %264 : vector<1x128xf32>
    %267 = arith.divf %265, %266 : vector<1x128xf32>
    %268 = math.tanh %262 : vector<1x128xf32>
    %269 = vector.extract_strided_slice %267 {offsets = [0, 0], sizes = [1, 32], strides = [1, 1]} : vector<1x128xf32> to vector<1x32xf32>
    %270 = vector.extract_strided_slice %267 {offsets = [0, 32], sizes = [1, 32], strides = [1, 1]} : vector<1x128xf32> to vector<1x32xf32>
    %271 = vector.extract_strided_slice %268 {offsets = [0, 64], sizes = [1, 32], strides = [1, 1]} : vector<1x128xf32> to vector<1x32xf32>
    %272 = vector.extract_strided_slice %267 {offsets = [0, 96], sizes = [1, 32], strides = [1, 1]} : vector<1x128xf32> to vector<1x32xf32>
    %273 = arith.mulf %270, %205 : vector<1x32xf32>
    %274 = arith.mulf %269, %271 : vector<1x32xf32>
    %275 = arith.addf %273, %274 : vector<1x32xf32>
    %276 = math.tanh %275 : vector<1x32xf32>
    %277 = arith.mulf %272, %276 : vector<1x32xf32>
    %c0_97 = arith.constant 0 : index
    %c0_98 = arith.constant 0 : index
    %278 = vector.load %arg7[%c0_97, %c0_98] : memref<32x128xf32, #tpu.memory_space<vmem>>, vector<32x128xf32>
    %cst_99 = arith.constant dense<0.000000e+00> : vector<1x128xf32>
    %279 = tpu.matmul %277, %278, %cst_99 {dimension_numbers = #tpu.dot_dimension_numbers<[1], [0], [0], [1], [0, 0, 1, 1], [], []>} : vector<1x32xf32>, vector<32x128xf32>, vector<1x128xf32> -> vector<1x128xf32>
    %c0_100 = arith.constant 0 : index
    %c0_101 = arith.constant 0 : index
    %280 = vector.load %arg8[%c0_100, %c0_101] : memref<1x128xf32, #tpu.memory_space<vmem>>, vector<1x128xf32>
    %281 = arith.addf %279, %280 : vector<1x128xf32>
    %c3 = arith.constant 3 : index
    %c0_102 = arith.constant 0 : index
    %282 = vector.load %arg11[%c3, %c0_102] : memref<10x128xf32, #tpu.memory_space<vmem>>, vector<1x128xf32>
    tpu.vector_store %arg11[%c3, %c0_102], %281 {strides = array<i32>} : memref<10x128xf32, #tpu.memory_space<vmem>>, vector<1x128xf32>,
    %c3_103 = arith.constant 3 : index
    %c0_104 = arith.constant 0 : index
    %283 = vector.load %arg9[%c3_103, %c0_104] : memref<10x128xf32, #tpu.memory_space<vmem>>, vector<1x128xf32>
    %284 = arith.addf %281, %283 : vector<1x128xf32>
    %cst_105 = arith.constant dense<0xFF800000> : vector<1xf32>
    %285 = vector.multi_reduction <maximumf>, %284, %cst_105 [1] : vector<1x128xf32> to vector<1xf32>
    %286 = vector.shape_cast %285 : vector<1xf32> to vector<1x1xf32>
    %287 = vector.broadcast %286 : vector<1x1xf32> to vector<1x128xf32>
    %288 = arith.cmpf oge, %284, %287 : vector<1x128xf32>
    %c128_i32_106 = arith.constant 128 : i32
    %289 = vector.broadcast %c128_i32_106 : i32 to vector<1x128xi32>
    %290 = arith.select %288, %13, %289 : vector<1x128xi1>, vector<1x128xi32>
    %cst_107 = arith.constant dense<2147483647> : vector<1xi32>
    %291 = vector.multi_reduction <minsi>, %290, %cst_107 [1] : vector<1x128xi32> to vector<1xi32>
    %292 = vector.shape_cast %291 : vector<1xi32> to vector<1x1xi32>
    %c0_i32_108 = arith.constant 0 : i32
    %293 = vector.broadcast %c0_i32_108 : i32 to vector<1x1xi32>
    %294 = arith.cmpi sgt, %235, %293 : vector<1x1xi32>
    %c29_i32_109 = arith.constant 29 : i32
    %295 = vector.broadcast %c29_i32_109 : i32 to vector<1x1xi32>
    %296 = arith.select %294, %295, %292 : vector<1x1xi1>, vector<1x1xi32>
    %c3_i32 = arith.constant 3 : i32
    %297 = vector.broadcast %c3_i32 : i32 to vector<1x128xi32>
    %298 = arith.cmpi eq, %13, %297 : vector<1x128xi32>
    %299 = vector.shape_cast %296 : vector<1x1xi32> to vector<1x1xi32>
    %300 = vector.broadcast %299 : vector<1x1xi32> to vector<1x128xi32>
    %301 = arith.select %298, %300, %231 : vector<1x128xi1>, vector<1x128xi32>
    %c29_i32_110 = arith.constant 29 : i32
    %302 = vector.broadcast %c29_i32_110 : i32 to vector<1x1xi32>
    %303 = arith.cmpi eq, %296, %302 : vector<1x1xi32>
    %304 = arith.extui %303 : vector<1x1xi1> to vector<1x1xi32>
    %305 = arith.maxsi %235, %304 : vector<1x1xi32>
    %306 = vector.broadcast %296 : vector<1x1xi32> to vector<1x32xi32>
    %307 = arith.cmpi eq, %14, %306 : vector<1x32xi32>
    %308 = arith.extui %307 : vector<1x32xi1> to vector<1x32xi32>
    %309 = arith.sitofp %308 : vector<1x32xi32> to vector<1x32xf32>
    %c0_111 = arith.constant 0 : index
    %c0_112 = arith.constant 0 : index
    %310 = vector.load %arg6[%c0_111, %c0_112] : memref<32x32xf32, #tpu.memory_space<vmem>>, vector<32x32xf32>
    %cst_113 = arith.constant dense<0.000000e+00> : vector<1x32xf32>
    %311 = tpu.matmul %309, %310, %cst_113 {dimension_numbers = #tpu.dot_dimension_numbers<[1], [0], [0], [1], [0, 0, 1, 1], [], []>} : vector<1x32xf32>, vector<32x32xf32>, vector<1x32xf32> -> vector<1x32xf32>
    %312 = tpu.concatenate %311, %259 in 1 : vector<1x32xf32>, vector<1x32xf32> -> vector<1x64xf32>
    %cst_114 = arith.constant dense<0.000000e+00> : vector<1x128xf32>
    %313 = tpu.matmul %312, %16, %cst_114 {dimension_numbers = #tpu.dot_dimension_numbers<[1], [0], [0], [1], [0, 0, 1, 1], [], []>} : vector<1x64xf32>, vector<64x128xf32>, vector<1x128xf32> -> vector<1x128xf32>
    %314 = arith.addf %313, %18 : vector<1x128xf32>
    %315 = arith.negf %314 : vector<1x128xf32>
    %316 = math.exp %315 : vector<1x128xf32>
    %cst_115 = arith.constant 1.000000e+00 : f32
    %317 = vector.broadcast %cst_115 : f32 to vector<1x128xf32>
    %318 = arith.addf %317, %316 : vector<1x128xf32>
    %319 = arith.divf %317, %318 : vector<1x128xf32>
    %320 = math.tanh %314 : vector<1x128xf32>
    %321 = vector.extract_strided_slice %319 {offsets = [0, 0], sizes = [1, 32], strides = [1, 1]} : vector<1x128xf32> to vector<1x32xf32>
    %322 = vector.extract_strided_slice %319 {offsets = [0, 32], sizes = [1, 32], strides = [1, 1]} : vector<1x128xf32> to vector<1x32xf32>
    %323 = vector.extract_strided_slice %320 {offsets = [0, 64], sizes = [1, 32], strides = [1, 1]} : vector<1x128xf32> to vector<1x32xf32>
    %324 = vector.extract_strided_slice %319 {offsets = [0, 96], sizes = [1, 32], strides = [1, 1]} : vector<1x128xf32> to vector<1x32xf32>
    %325 = arith.mulf %322, %257 : vector<1x32xf32>
    %326 = arith.mulf %321, %323 : vector<1x32xf32>
    %327 = arith.addf %325, %326 : vector<1x32xf32>
    %328 = math.tanh %327 : vector<1x32xf32>
    %329 = arith.mulf %324, %328 : vector<1x32xf32>
    %330 = tpu.concatenate %329, %277 in 1 : vector<1x32xf32>, vector<1x32xf32> -> vector<1x64xf32>
    %cst_116 = arith.constant dense<0.000000e+00> : vector<1x128xf32>
    %331 = tpu.matmul %330, %20, %cst_116 {dimension_numbers = #tpu.dot_dimension_numbers<[1], [0], [0], [1], [0, 0, 1, 1], [], []>} : vector<1x64xf32>, vector<64x128xf32>, vector<1x128xf32> -> vector<1x128xf32>
    %332 = arith.addf %331, %22 : vector<1x128xf32>
    %333 = arith.negf %332 : vector<1x128xf32>
    %334 = math.exp %333 : vector<1x128xf32>
    %cst_117 = arith.constant 1.000000e+00 : f32
    %335 = vector.broadcast %cst_117 : f32 to vector<1x128xf32>
    %336 = arith.addf %335, %334 : vector<1x128xf32>
    %337 = arith.divf %335, %336 : vector<1x128xf32>
    %338 = math.tanh %332 : vector<1x128xf32>
    %339 = vector.extract_strided_slice %337 {offsets = [0, 0], sizes = [1, 32], strides = [1, 1]} : vector<1x128xf32> to vector<1x32xf32>
    %340 = vector.extract_strided_slice %337 {offsets = [0, 32], sizes = [1, 32], strides = [1, 1]} : vector<1x128xf32> to vector<1x32xf32>
    %341 = vector.extract_strided_slice %338 {offsets = [0, 64], sizes = [1, 32], strides = [1, 1]} : vector<1x128xf32> to vector<1x32xf32>
    %342 = vector.extract_strided_slice %337 {offsets = [0, 96], sizes = [1, 32], strides = [1, 1]} : vector<1x128xf32> to vector<1x32xf32>
    %343 = arith.mulf %340, %275 : vector<1x32xf32>
    %344 = arith.mulf %339, %341 : vector<1x32xf32>
    %345 = arith.addf %343, %344 : vector<1x32xf32>
    %346 = math.tanh %345 : vector<1x32xf32>
    %347 = arith.mulf %342, %346 : vector<1x32xf32>
    %c0_118 = arith.constant 0 : index
    %c0_119 = arith.constant 0 : index
    %348 = vector.load %arg7[%c0_118, %c0_119] : memref<32x128xf32, #tpu.memory_space<vmem>>, vector<32x128xf32>
    %cst_120 = arith.constant dense<0.000000e+00> : vector<1x128xf32>
    %349 = tpu.matmul %347, %348, %cst_120 {dimension_numbers = #tpu.dot_dimension_numbers<[1], [0], [0], [1], [0, 0, 1, 1], [], []>} : vector<1x32xf32>, vector<32x128xf32>, vector<1x128xf32> -> vector<1x128xf32>
    %c0_121 = arith.constant 0 : index
    %c0_122 = arith.constant 0 : index
    %350 = vector.load %arg8[%c0_121, %c0_122] : memref<1x128xf32, #tpu.memory_space<vmem>>, vector<1x128xf32>
    %351 = arith.addf %349, %350 : vector<1x128xf32>
    %c4 = arith.constant 4 : index
    %c0_123 = arith.constant 0 : index
    %352 = vector.load %arg11[%c4, %c0_123] : memref<10x128xf32, #tpu.memory_space<vmem>>, vector<1x128xf32>
    tpu.vector_store %arg11[%c4, %c0_123], %351 {strides = array<i32>} : memref<10x128xf32, #tpu.memory_space<vmem>>, vector<1x128xf32>,
    %c4_124 = arith.constant 4 : index
    %c0_125 = arith.constant 0 : index
    %353 = vector.load %arg9[%c4_124, %c0_125] : memref<10x128xf32, #tpu.memory_space<vmem>>, vector<1x128xf32>
    %354 = arith.addf %351, %353 : vector<1x128xf32>
    %cst_126 = arith.constant dense<0xFF800000> : vector<1xf32>
    %355 = vector.multi_reduction <maximumf>, %354, %cst_126 [1] : vector<1x128xf32> to vector<1xf32>
    %356 = vector.shape_cast %355 : vector<1xf32> to vector<1x1xf32>
    %357 = vector.broadcast %356 : vector<1x1xf32> to vector<1x128xf32>
    %358 = arith.cmpf oge, %354, %357 : vector<1x128xf32>
    %c128_i32_127 = arith.constant 128 : i32
    %359 = vector.broadcast %c128_i32_127 : i32 to vector<1x128xi32>
    %360 = arith.select %358, %13, %359 : vector<1x128xi1>, vector<1x128xi32>
    %cst_128 = arith.constant dense<2147483647> : vector<1xi32>
    %361 = vector.multi_reduction <minsi>, %360, %cst_128 [1] : vector<1x128xi32> to vector<1xi32>
    %362 = vector.shape_cast %361 : vector<1xi32> to vector<1x1xi32>
    %c0_i32_129 = arith.constant 0 : i32
    %363 = vector.broadcast %c0_i32_129 : i32 to vector<1x1xi32>
    %364 = arith.cmpi sgt, %305, %363 : vector<1x1xi32>
    %c29_i32_130 = arith.constant 29 : i32
    %365 = vector.broadcast %c29_i32_130 : i32 to vector<1x1xi32>
    %366 = arith.select %364, %365, %362 : vector<1x1xi1>, vector<1x1xi32>
    %c4_i32 = arith.constant 4 : i32
    %367 = vector.broadcast %c4_i32 : i32 to vector<1x128xi32>
    %368 = arith.cmpi eq, %13, %367 : vector<1x128xi32>
    %369 = vector.shape_cast %366 : vector<1x1xi32> to vector<1x1xi32>
    %370 = vector.broadcast %369 : vector<1x1xi32> to vector<1x128xi32>
    %371 = arith.select %368, %370, %301 : vector<1x128xi1>, vector<1x128xi32>
    %c29_i32_131 = arith.constant 29 : i32
    %372 = vector.broadcast %c29_i32_131 : i32 to vector<1x1xi32>
    %373 = arith.cmpi eq, %366, %372 : vector<1x1xi32>
    %374 = arith.extui %373 : vector<1x1xi1> to vector<1x1xi32>
    %375 = arith.maxsi %305, %374 : vector<1x1xi32>
    %376 = vector.broadcast %366 : vector<1x1xi32> to vector<1x32xi32>
    %377 = arith.cmpi eq, %14, %376 : vector<1x32xi32>
    %378 = arith.extui %377 : vector<1x32xi1> to vector<1x32xi32>
    %379 = arith.sitofp %378 : vector<1x32xi32> to vector<1x32xf32>
    %c0_132 = arith.constant 0 : index
    %c0_133 = arith.constant 0 : index
    %380 = vector.load %arg6[%c0_132, %c0_133] : memref<32x32xf32, #tpu.memory_space<vmem>>, vector<32x32xf32>
    %cst_134 = arith.constant dense<0.000000e+00> : vector<1x32xf32>
    %381 = tpu.matmul %379, %380, %cst_134 {dimension_numbers = #tpu.dot_dimension_numbers<[1], [0], [0], [1], [0, 0, 1, 1], [], []>} : vector<1x32xf32>, vector<32x32xf32>, vector<1x32xf32> -> vector<1x32xf32>
    %382 = tpu.concatenate %381, %329 in 1 : vector<1x32xf32>, vector<1x32xf32> -> vector<1x64xf32>
    %cst_135 = arith.constant dense<0.000000e+00> : vector<1x128xf32>
    %383 = tpu.matmul %382, %16, %cst_135 {dimension_numbers = #tpu.dot_dimension_numbers<[1], [0], [0], [1], [0, 0, 1, 1], [], []>} : vector<1x64xf32>, vector<64x128xf32>, vector<1x128xf32> -> vector<1x128xf32>
    %384 = arith.addf %383, %18 : vector<1x128xf32>
    %385 = arith.negf %384 : vector<1x128xf32>
    %386 = math.exp %385 : vector<1x128xf32>
    %cst_136 = arith.constant 1.000000e+00 : f32
    %387 = vector.broadcast %cst_136 : f32 to vector<1x128xf32>
    %388 = arith.addf %387, %386 : vector<1x128xf32>
    %389 = arith.divf %387, %388 : vector<1x128xf32>
    %390 = math.tanh %384 : vector<1x128xf32>
    %391 = vector.extract_strided_slice %389 {offsets = [0, 0], sizes = [1, 32], strides = [1, 1]} : vector<1x128xf32> to vector<1x32xf32>
    %392 = vector.extract_strided_slice %389 {offsets = [0, 32], sizes = [1, 32], strides = [1, 1]} : vector<1x128xf32> to vector<1x32xf32>
    %393 = vector.extract_strided_slice %390 {offsets = [0, 64], sizes = [1, 32], strides = [1, 1]} : vector<1x128xf32> to vector<1x32xf32>
    %394 = vector.extract_strided_slice %389 {offsets = [0, 96], sizes = [1, 32], strides = [1, 1]} : vector<1x128xf32> to vector<1x32xf32>
    %395 = arith.mulf %392, %327 : vector<1x32xf32>
    %396 = arith.mulf %391, %393 : vector<1x32xf32>
    %397 = arith.addf %395, %396 : vector<1x32xf32>
    %398 = math.tanh %397 : vector<1x32xf32>
    %399 = arith.mulf %394, %398 : vector<1x32xf32>
    %400 = tpu.concatenate %399, %347 in 1 : vector<1x32xf32>, vector<1x32xf32> -> vector<1x64xf32>
    %cst_137 = arith.constant dense<0.000000e+00> : vector<1x128xf32>
    %401 = tpu.matmul %400, %20, %cst_137 {dimension_numbers = #tpu.dot_dimension_numbers<[1], [0], [0], [1], [0, 0, 1, 1], [], []>} : vector<1x64xf32>, vector<64x128xf32>, vector<1x128xf32> -> vector<1x128xf32>
    %402 = arith.addf %401, %22 : vector<1x128xf32>
    %403 = arith.negf %402 : vector<1x128xf32>
    %404 = math.exp %403 : vector<1x128xf32>
    %cst_138 = arith.constant 1.000000e+00 : f32
    %405 = vector.broadcast %cst_138 : f32 to vector<1x128xf32>
    %406 = arith.addf %405, %404 : vector<1x128xf32>
    %407 = arith.divf %405, %406 : vector<1x128xf32>
    %408 = math.tanh %402 : vector<1x128xf32>
    %409 = vector.extract_strided_slice %407 {offsets = [0, 0], sizes = [1, 32], strides = [1, 1]} : vector<1x128xf32> to vector<1x32xf32>
    %410 = vector.extract_strided_slice %407 {offsets = [0, 32], sizes = [1, 32], strides = [1, 1]} : vector<1x128xf32> to vector<1x32xf32>
    %411 = vector.extract_strided_slice %408 {offsets = [0, 64], sizes = [1, 32], strides = [1, 1]} : vector<1x128xf32> to vector<1x32xf32>
    %412 = vector.extract_strided_slice %407 {offsets = [0, 96], sizes = [1, 32], strides = [1, 1]} : vector<1x128xf32> to vector<1x32xf32>
    %413 = arith.mulf %410, %345 : vector<1x32xf32>
    %414 = arith.mulf %409, %411 : vector<1x32xf32>
    %415 = arith.addf %413, %414 : vector<1x32xf32>
    %416 = math.tanh %415 : vector<1x32xf32>
    %417 = arith.mulf %412, %416 : vector<1x32xf32>
    %c0_139 = arith.constant 0 : index
    %c0_140 = arith.constant 0 : index
    %418 = vector.load %arg7[%c0_139, %c0_140] : memref<32x128xf32, #tpu.memory_space<vmem>>, vector<32x128xf32>
    %cst_141 = arith.constant dense<0.000000e+00> : vector<1x128xf32>
    %419 = tpu.matmul %417, %418, %cst_141 {dimension_numbers = #tpu.dot_dimension_numbers<[1], [0], [0], [1], [0, 0, 1, 1], [], []>} : vector<1x32xf32>, vector<32x128xf32>, vector<1x128xf32> -> vector<1x128xf32>
    %c0_142 = arith.constant 0 : index
    %c0_143 = arith.constant 0 : index
    %420 = vector.load %arg8[%c0_142, %c0_143] : memref<1x128xf32, #tpu.memory_space<vmem>>, vector<1x128xf32>
    %421 = arith.addf %419, %420 : vector<1x128xf32>
    %c5 = arith.constant 5 : index
    %c0_144 = arith.constant 0 : index
    %422 = vector.load %arg11[%c5, %c0_144] : memref<10x128xf32, #tpu.memory_space<vmem>>, vector<1x128xf32>
    tpu.vector_store %arg11[%c5, %c0_144], %421 {strides = array<i32>} : memref<10x128xf32, #tpu.memory_space<vmem>>, vector<1x128xf32>,
    %c5_145 = arith.constant 5 : index
    %c0_146 = arith.constant 0 : index
    %423 = vector.load %arg9[%c5_145, %c0_146] : memref<10x128xf32, #tpu.memory_space<vmem>>, vector<1x128xf32>
    %424 = arith.addf %421, %423 : vector<1x128xf32>
    %cst_147 = arith.constant dense<0xFF800000> : vector<1xf32>
    %425 = vector.multi_reduction <maximumf>, %424, %cst_147 [1] : vector<1x128xf32> to vector<1xf32>
    %426 = vector.shape_cast %425 : vector<1xf32> to vector<1x1xf32>
    %427 = vector.broadcast %426 : vector<1x1xf32> to vector<1x128xf32>
    %428 = arith.cmpf oge, %424, %427 : vector<1x128xf32>
    %c128_i32_148 = arith.constant 128 : i32
    %429 = vector.broadcast %c128_i32_148 : i32 to vector<1x128xi32>
    %430 = arith.select %428, %13, %429 : vector<1x128xi1>, vector<1x128xi32>
    %cst_149 = arith.constant dense<2147483647> : vector<1xi32>
    %431 = vector.multi_reduction <minsi>, %430, %cst_149 [1] : vector<1x128xi32> to vector<1xi32>
    %432 = vector.shape_cast %431 : vector<1xi32> to vector<1x1xi32>
    %c0_i32_150 = arith.constant 0 : i32
    %433 = vector.broadcast %c0_i32_150 : i32 to vector<1x1xi32>
    %434 = arith.cmpi sgt, %375, %433 : vector<1x1xi32>
    %c29_i32_151 = arith.constant 29 : i32
    %435 = vector.broadcast %c29_i32_151 : i32 to vector<1x1xi32>
    %436 = arith.select %434, %435, %432 : vector<1x1xi1>, vector<1x1xi32>
    %c5_i32 = arith.constant 5 : i32
    %437 = vector.broadcast %c5_i32 : i32 to vector<1x128xi32>
    %438 = arith.cmpi eq, %13, %437 : vector<1x128xi32>
    %439 = vector.shape_cast %436 : vector<1x1xi32> to vector<1x1xi32>
    %440 = vector.broadcast %439 : vector<1x1xi32> to vector<1x128xi32>
    %441 = arith.select %438, %440, %371 : vector<1x128xi1>, vector<1x128xi32>
    %c29_i32_152 = arith.constant 29 : i32
    %442 = vector.broadcast %c29_i32_152 : i32 to vector<1x1xi32>
    %443 = arith.cmpi eq, %436, %442 : vector<1x1xi32>
    %444 = arith.extui %443 : vector<1x1xi1> to vector<1x1xi32>
    %445 = arith.maxsi %375, %444 : vector<1x1xi32>
    %446 = vector.broadcast %436 : vector<1x1xi32> to vector<1x32xi32>
    %447 = arith.cmpi eq, %14, %446 : vector<1x32xi32>
    %448 = arith.extui %447 : vector<1x32xi1> to vector<1x32xi32>
    %449 = arith.sitofp %448 : vector<1x32xi32> to vector<1x32xf32>
    %c0_153 = arith.constant 0 : index
    %c0_154 = arith.constant 0 : index
    %450 = vector.load %arg6[%c0_153, %c0_154] : memref<32x32xf32, #tpu.memory_space<vmem>>, vector<32x32xf32>
    %cst_155 = arith.constant dense<0.000000e+00> : vector<1x32xf32>
    %451 = tpu.matmul %449, %450, %cst_155 {dimension_numbers = #tpu.dot_dimension_numbers<[1], [0], [0], [1], [0, 0, 1, 1], [], []>} : vector<1x32xf32>, vector<32x32xf32>, vector<1x32xf32> -> vector<1x32xf32>
    %452 = tpu.concatenate %451, %399 in 1 : vector<1x32xf32>, vector<1x32xf32> -> vector<1x64xf32>
    %cst_156 = arith.constant dense<0.000000e+00> : vector<1x128xf32>
    %453 = tpu.matmul %452, %16, %cst_156 {dimension_numbers = #tpu.dot_dimension_numbers<[1], [0], [0], [1], [0, 0, 1, 1], [], []>} : vector<1x64xf32>, vector<64x128xf32>, vector<1x128xf32> -> vector<1x128xf32>
    %454 = arith.addf %453, %18 : vector<1x128xf32>
    %455 = arith.negf %454 : vector<1x128xf32>
    %456 = math.exp %455 : vector<1x128xf32>
    %cst_157 = arith.constant 1.000000e+00 : f32
    %457 = vector.broadcast %cst_157 : f32 to vector<1x128xf32>
    %458 = arith.addf %457, %456 : vector<1x128xf32>
    %459 = arith.divf %457, %458 : vector<1x128xf32>
    %460 = math.tanh %454 : vector<1x128xf32>
    %461 = vector.extract_strided_slice %459 {offsets = [0, 0], sizes = [1, 32], strides = [1, 1]} : vector<1x128xf32> to vector<1x32xf32>
    %462 = vector.extract_strided_slice %459 {offsets = [0, 32], sizes = [1, 32], strides = [1, 1]} : vector<1x128xf32> to vector<1x32xf32>
    %463 = vector.extract_strided_slice %460 {offsets = [0, 64], sizes = [1, 32], strides = [1, 1]} : vector<1x128xf32> to vector<1x32xf32>
    %464 = vector.extract_strided_slice %459 {offsets = [0, 96], sizes = [1, 32], strides = [1, 1]} : vector<1x128xf32> to vector<1x32xf32>
    %465 = arith.mulf %462, %397 : vector<1x32xf32>
    %466 = arith.mulf %461, %463 : vector<1x32xf32>
    %467 = arith.addf %465, %466 : vector<1x32xf32>
    %468 = math.tanh %467 : vector<1x32xf32>
    %469 = arith.mulf %464, %468 : vector<1x32xf32>
    %470 = tpu.concatenate %469, %417 in 1 : vector<1x32xf32>, vector<1x32xf32> -> vector<1x64xf32>
    %cst_158 = arith.constant dense<0.000000e+00> : vector<1x128xf32>
    %471 = tpu.matmul %470, %20, %cst_158 {dimension_numbers = #tpu.dot_dimension_numbers<[1], [0], [0], [1], [0, 0, 1, 1], [], []>} : vector<1x64xf32>, vector<64x128xf32>, vector<1x128xf32> -> vector<1x128xf32>
    %472 = arith.addf %471, %22 : vector<1x128xf32>
    %473 = arith.negf %472 : vector<1x128xf32>
    %474 = math.exp %473 : vector<1x128xf32>
    %cst_159 = arith.constant 1.000000e+00 : f32
    %475 = vector.broadcast %cst_159 : f32 to vector<1x128xf32>
    %476 = arith.addf %475, %474 : vector<1x128xf32>
    %477 = arith.divf %475, %476 : vector<1x128xf32>
    %478 = math.tanh %472 : vector<1x128xf32>
    %479 = vector.extract_strided_slice %477 {offsets = [0, 0], sizes = [1, 32], strides = [1, 1]} : vector<1x128xf32> to vector<1x32xf32>
    %480 = vector.extract_strided_slice %477 {offsets = [0, 32], sizes = [1, 32], strides = [1, 1]} : vector<1x128xf32> to vector<1x32xf32>
    %481 = vector.extract_strided_slice %478 {offsets = [0, 64], sizes = [1, 32], strides = [1, 1]} : vector<1x128xf32> to vector<1x32xf32>
    %482 = vector.extract_strided_slice %477 {offsets = [0, 96], sizes = [1, 32], strides = [1, 1]} : vector<1x128xf32> to vector<1x32xf32>
    %483 = arith.mulf %480, %415 : vector<1x32xf32>
    %484 = arith.mulf %479, %481 : vector<1x32xf32>
    %485 = arith.addf %483, %484 : vector<1x32xf32>
    %486 = math.tanh %485 : vector<1x32xf32>
    %487 = arith.mulf %482, %486 : vector<1x32xf32>
    %c0_160 = arith.constant 0 : index
    %c0_161 = arith.constant 0 : index
    %488 = vector.load %arg7[%c0_160, %c0_161] : memref<32x128xf32, #tpu.memory_space<vmem>>, vector<32x128xf32>
    %cst_162 = arith.constant dense<0.000000e+00> : vector<1x128xf32>
    %489 = tpu.matmul %487, %488, %cst_162 {dimension_numbers = #tpu.dot_dimension_numbers<[1], [0], [0], [1], [0, 0, 1, 1], [], []>} : vector<1x32xf32>, vector<32x128xf32>, vector<1x128xf32> -> vector<1x128xf32>
    %c0_163 = arith.constant 0 : index
    %c0_164 = arith.constant 0 : index
    %490 = vector.load %arg8[%c0_163, %c0_164] : memref<1x128xf32, #tpu.memory_space<vmem>>, vector<1x128xf32>
    %491 = arith.addf %489, %490 : vector<1x128xf32>
    %c6 = arith.constant 6 : index
    %c0_165 = arith.constant 0 : index
    %492 = vector.load %arg11[%c6, %c0_165] : memref<10x128xf32, #tpu.memory_space<vmem>>, vector<1x128xf32>
    tpu.vector_store %arg11[%c6, %c0_165], %491 {strides = array<i32>} : memref<10x128xf32, #tpu.memory_space<vmem>>, vector<1x128xf32>,
    %c6_166 = arith.constant 6 : index
    %c0_167 = arith.constant 0 : index
    %493 = vector.load %arg9[%c6_166, %c0_167] : memref<10x128xf32, #tpu.memory_space<vmem>>, vector<1x128xf32>
    %494 = arith.addf %491, %493 : vector<1x128xf32>
    %cst_168 = arith.constant dense<0xFF800000> : vector<1xf32>
    %495 = vector.multi_reduction <maximumf>, %494, %cst_168 [1] : vector<1x128xf32> to vector<1xf32>
    %496 = vector.shape_cast %495 : vector<1xf32> to vector<1x1xf32>
    %497 = vector.broadcast %496 : vector<1x1xf32> to vector<1x128xf32>
    %498 = arith.cmpf oge, %494, %497 : vector<1x128xf32>
    %c128_i32_169 = arith.constant 128 : i32
    %499 = vector.broadcast %c128_i32_169 : i32 to vector<1x128xi32>
    %500 = arith.select %498, %13, %499 : vector<1x128xi1>, vector<1x128xi32>
    %cst_170 = arith.constant dense<2147483647> : vector<1xi32>
    %501 = vector.multi_reduction <minsi>, %500, %cst_170 [1] : vector<1x128xi32> to vector<1xi32>
    %502 = vector.shape_cast %501 : vector<1xi32> to vector<1x1xi32>
    %c0_i32_171 = arith.constant 0 : i32
    %503 = vector.broadcast %c0_i32_171 : i32 to vector<1x1xi32>
    %504 = arith.cmpi sgt, %445, %503 : vector<1x1xi32>
    %c29_i32_172 = arith.constant 29 : i32
    %505 = vector.broadcast %c29_i32_172 : i32 to vector<1x1xi32>
    %506 = arith.select %504, %505, %502 : vector<1x1xi1>, vector<1x1xi32>
    %c6_i32 = arith.constant 6 : i32
    %507 = vector.broadcast %c6_i32 : i32 to vector<1x128xi32>
    %508 = arith.cmpi eq, %13, %507 : vector<1x128xi32>
    %509 = vector.shape_cast %506 : vector<1x1xi32> to vector<1x1xi32>
    %510 = vector.broadcast %509 : vector<1x1xi32> to vector<1x128xi32>
    %511 = arith.select %508, %510, %441 : vector<1x128xi1>, vector<1x128xi32>
    %c29_i32_173 = arith.constant 29 : i32
    %512 = vector.broadcast %c29_i32_173 : i32 to vector<1x1xi32>
    %513 = arith.cmpi eq, %506, %512 : vector<1x1xi32>
    %514 = arith.extui %513 : vector<1x1xi1> to vector<1x1xi32>
    %515 = arith.maxsi %445, %514 : vector<1x1xi32>
    %516 = vector.broadcast %506 : vector<1x1xi32> to vector<1x32xi32>
    %517 = arith.cmpi eq, %14, %516 : vector<1x32xi32>
    %518 = arith.extui %517 : vector<1x32xi1> to vector<1x32xi32>
    %519 = arith.sitofp %518 : vector<1x32xi32> to vector<1x32xf32>
    %c0_174 = arith.constant 0 : index
    %c0_175 = arith.constant 0 : index
    %520 = vector.load %arg6[%c0_174, %c0_175] : memref<32x32xf32, #tpu.memory_space<vmem>>, vector<32x32xf32>
    %cst_176 = arith.constant dense<0.000000e+00> : vector<1x32xf32>
    %521 = tpu.matmul %519, %520, %cst_176 {dimension_numbers = #tpu.dot_dimension_numbers<[1], [0], [0], [1], [0, 0, 1, 1], [], []>} : vector<1x32xf32>, vector<32x32xf32>, vector<1x32xf32> -> vector<1x32xf32>
    %522 = tpu.concatenate %521, %469 in 1 : vector<1x32xf32>, vector<1x32xf32> -> vector<1x64xf32>
    %cst_177 = arith.constant dense<0.000000e+00> : vector<1x128xf32>
    %523 = tpu.matmul %522, %16, %cst_177 {dimension_numbers = #tpu.dot_dimension_numbers<[1], [0], [0], [1], [0, 0, 1, 1], [], []>} : vector<1x64xf32>, vector<64x128xf32>, vector<1x128xf32> -> vector<1x128xf32>
    %524 = arith.addf %523, %18 : vector<1x128xf32>
    %525 = arith.negf %524 : vector<1x128xf32>
    %526 = math.exp %525 : vector<1x128xf32>
    %cst_178 = arith.constant 1.000000e+00 : f32
    %527 = vector.broadcast %cst_178 : f32 to vector<1x128xf32>
    %528 = arith.addf %527, %526 : vector<1x128xf32>
    %529 = arith.divf %527, %528 : vector<1x128xf32>
    %530 = math.tanh %524 : vector<1x128xf32>
    %531 = vector.extract_strided_slice %529 {offsets = [0, 0], sizes = [1, 32], strides = [1, 1]} : vector<1x128xf32> to vector<1x32xf32>
    %532 = vector.extract_strided_slice %529 {offsets = [0, 32], sizes = [1, 32], strides = [1, 1]} : vector<1x128xf32> to vector<1x32xf32>
    %533 = vector.extract_strided_slice %530 {offsets = [0, 64], sizes = [1, 32], strides = [1, 1]} : vector<1x128xf32> to vector<1x32xf32>
    %534 = vector.extract_strided_slice %529 {offsets = [0, 96], sizes = [1, 32], strides = [1, 1]} : vector<1x128xf32> to vector<1x32xf32>
    %535 = arith.mulf %532, %467 : vector<1x32xf32>
    %536 = arith.mulf %531, %533 : vector<1x32xf32>
    %537 = arith.addf %535, %536 : vector<1x32xf32>
    %538 = math.tanh %537 : vector<1x32xf32>
    %539 = arith.mulf %534, %538 : vector<1x32xf32>
    %540 = tpu.concatenate %539, %487 in 1 : vector<1x32xf32>, vector<1x32xf32> -> vector<1x64xf32>
    %cst_179 = arith.constant dense<0.000000e+00> : vector<1x128xf32>
    %541 = tpu.matmul %540, %20, %cst_179 {dimension_numbers = #tpu.dot_dimension_numbers<[1], [0], [0], [1], [0, 0, 1, 1], [], []>} : vector<1x64xf32>, vector<64x128xf32>, vector<1x128xf32> -> vector<1x128xf32>
    %542 = arith.addf %541, %22 : vector<1x128xf32>
    %543 = arith.negf %542 : vector<1x128xf32>
    %544 = math.exp %543 : vector<1x128xf32>
    %cst_180 = arith.constant 1.000000e+00 : f32
    %545 = vector.broadcast %cst_180 : f32 to vector<1x128xf32>
    %546 = arith.addf %545, %544 : vector<1x128xf32>
    %547 = arith.divf %545, %546 : vector<1x128xf32>
    %548 = math.tanh %542 : vector<1x128xf32>
    %549 = vector.extract_strided_slice %547 {offsets = [0, 0], sizes = [1, 32], strides = [1, 1]} : vector<1x128xf32> to vector<1x32xf32>
    %550 = vector.extract_strided_slice %547 {offsets = [0, 32], sizes = [1, 32], strides = [1, 1]} : vector<1x128xf32> to vector<1x32xf32>
    %551 = vector.extract_strided_slice %548 {offsets = [0, 64], sizes = [1, 32], strides = [1, 1]} : vector<1x128xf32> to vector<1x32xf32>
    %552 = vector.extract_strided_slice %547 {offsets = [0, 96], sizes = [1, 32], strides = [1, 1]} : vector<1x128xf32> to vector<1x32xf32>
    %553 = arith.mulf %550, %485 : vector<1x32xf32>
    %554 = arith.mulf %549, %551 : vector<1x32xf32>
    %555 = arith.addf %553, %554 : vector<1x32xf32>
    %556 = math.tanh %555 : vector<1x32xf32>
    %557 = arith.mulf %552, %556 : vector<1x32xf32>
    %c0_181 = arith.constant 0 : index
    %c0_182 = arith.constant 0 : index
    %558 = vector.load %arg7[%c0_181, %c0_182] : memref<32x128xf32, #tpu.memory_space<vmem>>, vector<32x128xf32>
    %cst_183 = arith.constant dense<0.000000e+00> : vector<1x128xf32>
    %559 = tpu.matmul %557, %558, %cst_183 {dimension_numbers = #tpu.dot_dimension_numbers<[1], [0], [0], [1], [0, 0, 1, 1], [], []>} : vector<1x32xf32>, vector<32x128xf32>, vector<1x128xf32> -> vector<1x128xf32>
    %c0_184 = arith.constant 0 : index
    %c0_185 = arith.constant 0 : index
    %560 = vector.load %arg8[%c0_184, %c0_185] : memref<1x128xf32, #tpu.memory_space<vmem>>, vector<1x128xf32>
    %561 = arith.addf %559, %560 : vector<1x128xf32>
    %c7 = arith.constant 7 : index
    %c0_186 = arith.constant 0 : index
    %562 = vector.load %arg11[%c7, %c0_186] : memref<10x128xf32, #tpu.memory_space<vmem>>, vector<1x128xf32>
    tpu.vector_store %arg11[%c7, %c0_186], %561 {strides = array<i32>} : memref<10x128xf32, #tpu.memory_space<vmem>>, vector<1x128xf32>,
    %c7_187 = arith.constant 7 : index
    %c0_188 = arith.constant 0 : index
    %563 = vector.load %arg9[%c7_187, %c0_188] : memref<10x128xf32, #tpu.memory_space<vmem>>, vector<1x128xf32>
    %564 = arith.addf %561, %563 : vector<1x128xf32>
    %cst_189 = arith.constant dense<0xFF800000> : vector<1xf32>
    %565 = vector.multi_reduction <maximumf>, %564, %cst_189 [1] : vector<1x128xf32> to vector<1xf32>
    %566 = vector.shape_cast %565 : vector<1xf32> to vector<1x1xf32>
    %567 = vector.broadcast %566 : vector<1x1xf32> to vector<1x128xf32>
    %568 = arith.cmpf oge, %564, %567 : vector<1x128xf32>
    %c128_i32_190 = arith.constant 128 : i32
    %569 = vector.broadcast %c128_i32_190 : i32 to vector<1x128xi32>
    %570 = arith.select %568, %13, %569 : vector<1x128xi1>, vector<1x128xi32>
    %cst_191 = arith.constant dense<2147483647> : vector<1xi32>
    %571 = vector.multi_reduction <minsi>, %570, %cst_191 [1] : vector<1x128xi32> to vector<1xi32>
    %572 = vector.shape_cast %571 : vector<1xi32> to vector<1x1xi32>
    %c0_i32_192 = arith.constant 0 : i32
    %573 = vector.broadcast %c0_i32_192 : i32 to vector<1x1xi32>
    %574 = arith.cmpi sgt, %515, %573 : vector<1x1xi32>
    %c29_i32_193 = arith.constant 29 : i32
    %575 = vector.broadcast %c29_i32_193 : i32 to vector<1x1xi32>
    %576 = arith.select %574, %575, %572 : vector<1x1xi1>, vector<1x1xi32>
    %c7_i32 = arith.constant 7 : i32
    %577 = vector.broadcast %c7_i32 : i32 to vector<1x128xi32>
    %578 = arith.cmpi eq, %13, %577 : vector<1x128xi32>
    %579 = vector.shape_cast %576 : vector<1x1xi32> to vector<1x1xi32>
    %580 = vector.broadcast %579 : vector<1x1xi32> to vector<1x128xi32>
    %581 = arith.select %578, %580, %511 : vector<1x128xi1>, vector<1x128xi32>
    %c29_i32_194 = arith.constant 29 : i32
    %582 = vector.broadcast %c29_i32_194 : i32 to vector<1x1xi32>
    %583 = arith.cmpi eq, %576, %582 : vector<1x1xi32>
    %584 = arith.extui %583 : vector<1x1xi1> to vector<1x1xi32>
    %585 = arith.maxsi %515, %584 : vector<1x1xi32>
    %586 = vector.broadcast %576 : vector<1x1xi32> to vector<1x32xi32>
    %587 = arith.cmpi eq, %14, %586 : vector<1x32xi32>
    %588 = arith.extui %587 : vector<1x32xi1> to vector<1x32xi32>
    %589 = arith.sitofp %588 : vector<1x32xi32> to vector<1x32xf32>
    %c0_195 = arith.constant 0 : index
    %c0_196 = arith.constant 0 : index
    %590 = vector.load %arg6[%c0_195, %c0_196] : memref<32x32xf32, #tpu.memory_space<vmem>>, vector<32x32xf32>
    %cst_197 = arith.constant dense<0.000000e+00> : vector<1x32xf32>
    %591 = tpu.matmul %589, %590, %cst_197 {dimension_numbers = #tpu.dot_dimension_numbers<[1], [0], [0], [1], [0, 0, 1, 1], [], []>} : vector<1x32xf32>, vector<32x32xf32>, vector<1x32xf32> -> vector<1x32xf32>
    %592 = tpu.concatenate %591, %539 in 1 : vector<1x32xf32>, vector<1x32xf32> -> vector<1x64xf32>
    %cst_198 = arith.constant dense<0.000000e+00> : vector<1x128xf32>
    %593 = tpu.matmul %592, %16, %cst_198 {dimension_numbers = #tpu.dot_dimension_numbers<[1], [0], [0], [1], [0, 0, 1, 1], [], []>} : vector<1x64xf32>, vector<64x128xf32>, vector<1x128xf32> -> vector<1x128xf32>
    %594 = arith.addf %593, %18 : vector<1x128xf32>
    %595 = arith.negf %594 : vector<1x128xf32>
    %596 = math.exp %595 : vector<1x128xf32>
    %cst_199 = arith.constant 1.000000e+00 : f32
    %597 = vector.broadcast %cst_199 : f32 to vector<1x128xf32>
    %598 = arith.addf %597, %596 : vector<1x128xf32>
    %599 = arith.divf %597, %598 : vector<1x128xf32>
    %600 = math.tanh %594 : vector<1x128xf32>
    %601 = vector.extract_strided_slice %599 {offsets = [0, 0], sizes = [1, 32], strides = [1, 1]} : vector<1x128xf32> to vector<1x32xf32>
    %602 = vector.extract_strided_slice %599 {offsets = [0, 32], sizes = [1, 32], strides = [1, 1]} : vector<1x128xf32> to vector<1x32xf32>
    %603 = vector.extract_strided_slice %600 {offsets = [0, 64], sizes = [1, 32], strides = [1, 1]} : vector<1x128xf32> to vector<1x32xf32>
    %604 = vector.extract_strided_slice %599 {offsets = [0, 96], sizes = [1, 32], strides = [1, 1]} : vector<1x128xf32> to vector<1x32xf32>
    %605 = arith.mulf %602, %537 : vector<1x32xf32>
    %606 = arith.mulf %601, %603 : vector<1x32xf32>
    %607 = arith.addf %605, %606 : vector<1x32xf32>
    %608 = math.tanh %607 : vector<1x32xf32>
    %609 = arith.mulf %604, %608 : vector<1x32xf32>
    %610 = tpu.concatenate %609, %557 in 1 : vector<1x32xf32>, vector<1x32xf32> -> vector<1x64xf32>
    %cst_200 = arith.constant dense<0.000000e+00> : vector<1x128xf32>
    %611 = tpu.matmul %610, %20, %cst_200 {dimension_numbers = #tpu.dot_dimension_numbers<[1], [0], [0], [1], [0, 0, 1, 1], [], []>} : vector<1x64xf32>, vector<64x128xf32>, vector<1x128xf32> -> vector<1x128xf32>
    %612 = arith.addf %611, %22 : vector<1x128xf32>
    %613 = arith.negf %612 : vector<1x128xf32>
    %614 = math.exp %613 : vector<1x128xf32>
    %cst_201 = arith.constant 1.000000e+00 : f32
    %615 = vector.broadcast %cst_201 : f32 to vector<1x128xf32>
    %616 = arith.addf %615, %614 : vector<1x128xf32>
    %617 = arith.divf %615, %616 : vector<1x128xf32>
    %618 = math.tanh %612 : vector<1x128xf32>
    %619 = vector.extract_strided_slice %617 {offsets = [0, 0], sizes = [1, 32], strides = [1, 1]} : vector<1x128xf32> to vector<1x32xf32>
    %620 = vector.extract_strided_slice %617 {offsets = [0, 32], sizes = [1, 32], strides = [1, 1]} : vector<1x128xf32> to vector<1x32xf32>
    %621 = vector.extract_strided_slice %618 {offsets = [0, 64], sizes = [1, 32], strides = [1, 1]} : vector<1x128xf32> to vector<1x32xf32>
    %622 = vector.extract_strided_slice %617 {offsets = [0, 96], sizes = [1, 32], strides = [1, 1]} : vector<1x128xf32> to vector<1x32xf32>
    %623 = arith.mulf %620, %555 : vector<1x32xf32>
    %624 = arith.mulf %619, %621 : vector<1x32xf32>
    %625 = arith.addf %623, %624 : vector<1x32xf32>
    %626 = math.tanh %625 : vector<1x32xf32>
    %627 = arith.mulf %622, %626 : vector<1x32xf32>
    %c0_202 = arith.constant 0 : index
    %c0_203 = arith.constant 0 : index
    %628 = vector.load %arg7[%c0_202, %c0_203] : memref<32x128xf32, #tpu.memory_space<vmem>>, vector<32x128xf32>
    %cst_204 = arith.constant dense<0.000000e+00> : vector<1x128xf32>
    %629 = tpu.matmul %627, %628, %cst_204 {dimension_numbers = #tpu.dot_dimension_numbers<[1], [0], [0], [1], [0, 0, 1, 1], [], []>} : vector<1x32xf32>, vector<32x128xf32>, vector<1x128xf32> -> vector<1x128xf32>
    %c0_205 = arith.constant 0 : index
    %c0_206 = arith.constant 0 : index
    %630 = vector.load %arg8[%c0_205, %c0_206] : memref<1x128xf32, #tpu.memory_space<vmem>>, vector<1x128xf32>
    %631 = arith.addf %629, %630 : vector<1x128xf32>
    %c8 = arith.constant 8 : index
    %c0_207 = arith.constant 0 : index
    %632 = vector.load %arg11[%c8, %c0_207] : memref<10x128xf32, #tpu.memory_space<vmem>>, vector<1x128xf32>
    tpu.vector_store %arg11[%c8, %c0_207], %631 {strides = array<i32>} : memref<10x128xf32, #tpu.memory_space<vmem>>, vector<1x128xf32>,
    %c8_208 = arith.constant 8 : index
    %c0_209 = arith.constant 0 : index
    %633 = vector.load %arg9[%c8_208, %c0_209] : memref<10x128xf32, #tpu.memory_space<vmem>>, vector<1x128xf32>
    %634 = arith.addf %631, %633 : vector<1x128xf32>
    %cst_210 = arith.constant dense<0xFF800000> : vector<1xf32>
    %635 = vector.multi_reduction <maximumf>, %634, %cst_210 [1] : vector<1x128xf32> to vector<1xf32>
    %636 = vector.shape_cast %635 : vector<1xf32> to vector<1x1xf32>
    %637 = vector.broadcast %636 : vector<1x1xf32> to vector<1x128xf32>
    %638 = arith.cmpf oge, %634, %637 : vector<1x128xf32>
    %c128_i32_211 = arith.constant 128 : i32
    %639 = vector.broadcast %c128_i32_211 : i32 to vector<1x128xi32>
    %640 = arith.select %638, %13, %639 : vector<1x128xi1>, vector<1x128xi32>
    %cst_212 = arith.constant dense<2147483647> : vector<1xi32>
    %641 = vector.multi_reduction <minsi>, %640, %cst_212 [1] : vector<1x128xi32> to vector<1xi32>
    %642 = vector.shape_cast %641 : vector<1xi32> to vector<1x1xi32>
    %c0_i32_213 = arith.constant 0 : i32
    %643 = vector.broadcast %c0_i32_213 : i32 to vector<1x1xi32>
    %644 = arith.cmpi sgt, %585, %643 : vector<1x1xi32>
    %c29_i32_214 = arith.constant 29 : i32
    %645 = vector.broadcast %c29_i32_214 : i32 to vector<1x1xi32>
    %646 = arith.select %644, %645, %642 : vector<1x1xi1>, vector<1x1xi32>
    %c8_i32 = arith.constant 8 : i32
    %647 = vector.broadcast %c8_i32 : i32 to vector<1x128xi32>
    %648 = arith.cmpi eq, %13, %647 : vector<1x128xi32>
    %649 = vector.shape_cast %646 : vector<1x1xi32> to vector<1x1xi32>
    %650 = vector.broadcast %649 : vector<1x1xi32> to vector<1x128xi32>
    %651 = arith.select %648, %650, %581 : vector<1x128xi1>, vector<1x128xi32>
    %c29_i32_215 = arith.constant 29 : i32
    %652 = vector.broadcast %c29_i32_215 : i32 to vector<1x1xi32>
    %653 = arith.cmpi eq, %646, %652 : vector<1x1xi32>
    %654 = arith.extui %653 : vector<1x1xi1> to vector<1x1xi32>
    %655 = arith.maxsi %585, %654 : vector<1x1xi32>
    %656 = vector.broadcast %646 : vector<1x1xi32> to vector<1x32xi32>
    %657 = arith.cmpi eq, %14, %656 : vector<1x32xi32>
    %658 = arith.extui %657 : vector<1x32xi1> to vector<1x32xi32>
    %659 = arith.sitofp %658 : vector<1x32xi32> to vector<1x32xf32>
    %c0_216 = arith.constant 0 : index
    %c0_217 = arith.constant 0 : index
    %660 = vector.load %arg6[%c0_216, %c0_217] : memref<32x32xf32, #tpu.memory_space<vmem>>, vector<32x32xf32>
    %cst_218 = arith.constant dense<0.000000e+00> : vector<1x32xf32>
    %661 = tpu.matmul %659, %660, %cst_218 {dimension_numbers = #tpu.dot_dimension_numbers<[1], [0], [0], [1], [0, 0, 1, 1], [], []>} : vector<1x32xf32>, vector<32x32xf32>, vector<1x32xf32> -> vector<1x32xf32>
    %662 = tpu.concatenate %661, %609 in 1 : vector<1x32xf32>, vector<1x32xf32> -> vector<1x64xf32>
    %cst_219 = arith.constant dense<0.000000e+00> : vector<1x128xf32>
    %663 = tpu.matmul %662, %16, %cst_219 {dimension_numbers = #tpu.dot_dimension_numbers<[1], [0], [0], [1], [0, 0, 1, 1], [], []>} : vector<1x64xf32>, vector<64x128xf32>, vector<1x128xf32> -> vector<1x128xf32>
    %664 = arith.addf %663, %18 : vector<1x128xf32>
    %665 = arith.negf %664 : vector<1x128xf32>
    %666 = math.exp %665 : vector<1x128xf32>
    %cst_220 = arith.constant 1.000000e+00 : f32
    %667 = vector.broadcast %cst_220 : f32 to vector<1x128xf32>
    %668 = arith.addf %667, %666 : vector<1x128xf32>
    %669 = arith.divf %667, %668 : vector<1x128xf32>
    %670 = math.tanh %664 : vector<1x128xf32>
    %671 = vector.extract_strided_slice %669 {offsets = [0, 0], sizes = [1, 32], strides = [1, 1]} : vector<1x128xf32> to vector<1x32xf32>
    %672 = vector.extract_strided_slice %669 {offsets = [0, 32], sizes = [1, 32], strides = [1, 1]} : vector<1x128xf32> to vector<1x32xf32>
    %673 = vector.extract_strided_slice %670 {offsets = [0, 64], sizes = [1, 32], strides = [1, 1]} : vector<1x128xf32> to vector<1x32xf32>
    %674 = vector.extract_strided_slice %669 {offsets = [0, 96], sizes = [1, 32], strides = [1, 1]} : vector<1x128xf32> to vector<1x32xf32>
    %675 = arith.mulf %672, %607 : vector<1x32xf32>
    %676 = arith.mulf %671, %673 : vector<1x32xf32>
    %677 = arith.addf %675, %676 : vector<1x32xf32>
    %678 = math.tanh %677 : vector<1x32xf32>
    %679 = arith.mulf %674, %678 : vector<1x32xf32>
    %680 = tpu.concatenate %679, %627 in 1 : vector<1x32xf32>, vector<1x32xf32> -> vector<1x64xf32>
    %cst_221 = arith.constant dense<0.000000e+00> : vector<1x128xf32>
    %681 = tpu.matmul %680, %20, %cst_221 {dimension_numbers = #tpu.dot_dimension_numbers<[1], [0], [0], [1], [0, 0, 1, 1], [], []>} : vector<1x64xf32>, vector<64x128xf32>, vector<1x128xf32> -> vector<1x128xf32>
    %682 = arith.addf %681, %22 : vector<1x128xf32>
    %683 = arith.negf %682 : vector<1x128xf32>
    %684 = math.exp %683 : vector<1x128xf32>
    %cst_222 = arith.constant 1.000000e+00 : f32
    %685 = vector.broadcast %cst_222 : f32 to vector<1x128xf32>
    %686 = arith.addf %685, %684 : vector<1x128xf32>
    %687 = arith.divf %685, %686 : vector<1x128xf32>
    %688 = math.tanh %682 : vector<1x128xf32>
    %689 = vector.extract_strided_slice %687 {offsets = [0, 0], sizes = [1, 32], strides = [1, 1]} : vector<1x128xf32> to vector<1x32xf32>
    %690 = vector.extract_strided_slice %687 {offsets = [0, 32], sizes = [1, 32], strides = [1, 1]} : vector<1x128xf32> to vector<1x32xf32>
    %691 = vector.extract_strided_slice %688 {offsets = [0, 64], sizes = [1, 32], strides = [1, 1]} : vector<1x128xf32> to vector<1x32xf32>
    %692 = vector.extract_strided_slice %687 {offsets = [0, 96], sizes = [1, 32], strides = [1, 1]} : vector<1x128xf32> to vector<1x32xf32>
    %693 = arith.mulf %690, %625 : vector<1x32xf32>
    %694 = arith.mulf %689, %691 : vector<1x32xf32>
    %695 = arith.addf %693, %694 : vector<1x32xf32>
    %696 = math.tanh %695 : vector<1x32xf32>
    %697 = arith.mulf %692, %696 : vector<1x32xf32>
    %c0_223 = arith.constant 0 : index
    %c0_224 = arith.constant 0 : index
    %698 = vector.load %arg7[%c0_223, %c0_224] : memref<32x128xf32, #tpu.memory_space<vmem>>, vector<32x128xf32>
    %cst_225 = arith.constant dense<0.000000e+00> : vector<1x128xf32>
    %699 = tpu.matmul %697, %698, %cst_225 {dimension_numbers = #tpu.dot_dimension_numbers<[1], [0], [0], [1], [0, 0, 1, 1], [], []>} : vector<1x32xf32>, vector<32x128xf32>, vector<1x128xf32> -> vector<1x128xf32>
    %c0_226 = arith.constant 0 : index
    %c0_227 = arith.constant 0 : index
    %700 = vector.load %arg8[%c0_226, %c0_227] : memref<1x128xf32, #tpu.memory_space<vmem>>, vector<1x128xf32>
    %701 = arith.addf %699, %700 : vector<1x128xf32>
    %c9 = arith.constant 9 : index
    %c0_228 = arith.constant 0 : index
    %702 = vector.load %arg11[%c9, %c0_228] : memref<10x128xf32, #tpu.memory_space<vmem>>, vector<1x128xf32>
    tpu.vector_store %arg11[%c9, %c0_228], %701 {strides = array<i32>} : memref<10x128xf32, #tpu.memory_space<vmem>>, vector<1x128xf32>,
    %c9_229 = arith.constant 9 : index
    %c0_230 = arith.constant 0 : index
    %703 = vector.load %arg9[%c9_229, %c0_230] : memref<10x128xf32, #tpu.memory_space<vmem>>, vector<1x128xf32>
    %704 = arith.addf %701, %703 : vector<1x128xf32>
    %cst_231 = arith.constant dense<0xFF800000> : vector<1xf32>
    %705 = vector.multi_reduction <maximumf>, %704, %cst_231 [1] : vector<1x128xf32> to vector<1xf32>
    %706 = vector.shape_cast %705 : vector<1xf32> to vector<1x1xf32>
    %707 = vector.broadcast %706 : vector<1x1xf32> to vector<1x128xf32>
    %708 = arith.cmpf oge, %704, %707 : vector<1x128xf32>
    %c128_i32_232 = arith.constant 128 : i32
    %709 = vector.broadcast %c128_i32_232 : i32 to vector<1x128xi32>
    %710 = arith.select %708, %13, %709 : vector<1x128xi1>, vector<1x128xi32>
    %cst_233 = arith.constant dense<2147483647> : vector<1xi32>
    %711 = vector.multi_reduction <minsi>, %710, %cst_233 [1] : vector<1x128xi32> to vector<1xi32>
    %712 = vector.shape_cast %711 : vector<1xi32> to vector<1x1xi32>
    %c0_i32_234 = arith.constant 0 : i32
    %713 = vector.broadcast %c0_i32_234 : i32 to vector<1x1xi32>
    %714 = arith.cmpi sgt, %655, %713 : vector<1x1xi32>
    %c29_i32_235 = arith.constant 29 : i32
    %715 = vector.broadcast %c29_i32_235 : i32 to vector<1x1xi32>
    %716 = arith.select %714, %715, %712 : vector<1x1xi1>, vector<1x1xi32>
    %c9_i32 = arith.constant 9 : i32
    %717 = vector.broadcast %c9_i32 : i32 to vector<1x128xi32>
    %718 = arith.cmpi eq, %13, %717 : vector<1x128xi32>
    %719 = vector.shape_cast %716 : vector<1x1xi32> to vector<1x1xi32>
    %720 = vector.broadcast %719 : vector<1x1xi32> to vector<1x128xi32>
    %721 = arith.select %718, %720, %651 : vector<1x128xi1>, vector<1x128xi32>
    %c0_236 = arith.constant 0 : index
    %c0_237 = arith.constant 0 : index
    %722 = vector.load %arg10[%c0_236, %c0_237] : memref<1x128xi32, #tpu.memory_space<vmem>>, vector<1x128xi32>
    tpu.vector_store %arg10[%c0_236, %c0_237], %721 {strides = array<i32>} : memref<1x128xi32, #tpu.memory_space<vmem>>, vector<1x128xi32>,
    return
  }
}

</mosaic_0001>

<llo_original>
// kernel: _dae_device.1
$region0: #{_dae_device.1}
  #allocation0 [shape = 'u32[]', space=smem, size = 0x4, offset = 0x4, fixed_abs, tag = 'smem constant byte address 0x4 - core index']
  #allocation1 [shape = 'u32[144,128]{1,0:T(1,128)}', space=vmem, size = 0x12000, scoped, tag = 'internal scratch']
  #allocation2 [shape = 's32[1]{0:T(128)S(6)}', space=smem, size = 0x200, scoped, tag = 'scoped memory for _dae_device.1']
  %s0 = inlined_call_operand.<no memory space> [shape: s32[1], index: 0, kind: input, shape index: {}]
  %s1 = inlined_call_operand.vmem [shape: f32[32,32], index: 1, kind: input, shape index: {}]
  %s2 = inlined_call_operand.vmem [shape: f32[2,64,128], index: 2, kind: input, shape index: {}]
  %s3 = inlined_call_operand.vmem [shape: f32[2,1,128], index: 3, kind: input, shape index: {}]
  %s4 = inlined_call_operand.vmem [shape: f32[2,64,128], index: 4, kind: input, shape index: {}]
  %s5 = inlined_call_operand.vmem [shape: f32[2,1,128], index: 5, kind: input, shape index: {}]
  %s6 = inlined_call_operand.vmem [shape: f32[32,32], index: 6, kind: input, shape index: {}]
  %s7 = inlined_call_operand.vmem [shape: f32[32,128], index: 7, kind: input, shape index: {}]
  %s8 = inlined_call_operand.vmem [shape: f32[1,128], index: 8, kind: input, shape index: {}]
  %s9 = inlined_call_operand.vmem [shape: f32[10,128], index: 9, kind: input, shape index: {}]
  %s10 = inlined_call_operand.vmem [shape: s32[1,128], index: 10, kind: output, shape index: {0}]
  %s11 = inlined_call_operand.hbm [shape: f32[10,128], index: 11, kind: output, shape index: {1}]
  %12 = xla_tuple %s10, %s11
  %s13 = sld [smem:[#allocation0]]
  $region65: #{_dae_device.1} parent=0
    _
  %s15 = ssub.s32 1, %s13
  %s16 = scalar_select 0, %s15, %s13
  %17 = sst [smem:[#allocation2]] %s0
  $region1: #{_dae_device.1} parent=0
    #allocation3 [shape = 'u8[8192]{0}', space=vmem, size = 0x2000, scoped, tag = 'output window, operand 1, single buffered']
    #allocation4 [shape = 's32[1]{0}', space=sflag, size = 0x4, scoped, tag = 'scoped memory for _dae_device.1']
    %18 = vsyncpa [#allocation4], 0
    // Predicated region
    $region2: #{_dae_device.1} parent=1 // pred_check
      _
    $region3: #{_dae_device.1} parent=1 // pred_check_branch
      %20 = sbr.rel (0) target = $region5
    $region4: #{_dae_device.1} parent=1 // pred_region
      _
    $region5: #{_dae_device.1} parent=1 // pred_fallthru
      _
    // Predicated region
    $region6: #{_dae_device.1} parent=1 // pred_check
      _
    $region7: #{_dae_device.1} parent=1 // pred_check_branch
      %22 = sbr.rel (0) target = $region9
    $region8: #{_dae_device.1} parent=1 // pred_region
      _
    $region9: #{_dae_device.1} parent=1 // pred_fallthru
      _
    // Predicated region
    $region10: #{_dae_device.1} parent=1 // pred_check
      _
    $region11: #{_dae_device.1} parent=1 // pred_check_branch
      %24 = sbr.rel (0) target = $region13
    $region12: #{_dae_device.1} parent=1 // pred_region
      _
    $region13: #{_dae_device.1} parent=1 // pred_fallthru
      _
    // Predicated region
    $region14: #{_dae_device.1} parent=1 // pred_check
      _
    $region15: #{_dae_device.1} parent=1 // pred_check_branch
      %26 = sbr.rel (0) target = $region17
    $region16: #{_dae_device.1} parent=1 // pred_region
      _
    $region17: #{_dae_device.1} parent=1 // pred_fallthru
      _
    // Predicated region
    $region18: #{_dae_device.1} parent=1 // pred_check
      _
    $region19: #{_dae_device.1} parent=1 // pred_check_branch
      %28 = sbr.rel (0) target = $region21
    $region20: #{_dae_device.1} parent=1 // pred_region
      _
    $region21: #{_dae_device.1} parent=1 // pred_fallthru
      _
    // Predicated region
    $region22: #{_dae_device.1} parent=1 // pred_check
      _
    $region23: #{_dae_device.1} parent=1 // pred_check_branch
      %30 = sbr.rel (0) target = $region25
    $region24: #{_dae_device.1} parent=1 // pred_region
      _
    $region25: #{_dae_device.1} parent=1 // pred_fallthru
      _
    // Predicated region
    $region26: #{_dae_device.1} parent=1 // pred_check
      _
    $region27: #{_dae_device.1} parent=1 // pred_check_branch
      %32 = sbr.rel (0) target = $region29
    $region28: #{_dae_device.1} parent=1 // pred_region
      _
    $region29: #{_dae_device.1} parent=1 // pred_fallthru
      _
    // Predicated region
    $region30: #{_dae_device.1} parent=1 // pred_check
      _
    $region31: #{_dae_device.1} parent=1 // pred_check_branch
      %34 = sbr.rel (0) target = $region33
    $region32: #{_dae_device.1} parent=1 // pred_region
      _
    $region33: #{_dae_device.1} parent=1 // pred_fallthru
      _
    // Predicated region
    $region34: #{_dae_device.1} parent=1 // pred_check
      _
    $region35: #{_dae_device.1} parent=1 // pred_check_branch
      %36 = sbr.rel (0) target = $region37
    $region36: #{_dae_device.1} parent=1 // pred_region
      _
    $region37: #{_dae_device.1} parent=1 // pred_fallthru
      _
    // Predicated region
    $region38: #{_dae_device.1} parent=1 // pred_check
      _
    $region39: #{_dae_device.1} parent=1 // pred_check_branch
      %38 = sbr.rel (0) target = $region41
    $region40: #{_dae_device.1} parent=1 // pred_region
      _
    $region41: #{_dae_device.1} parent=1 // pred_fallthru
      _
    %v39 = vld [vmem:[%s2] sm:$0xff]
    %v40 = vld [vmem:[%s2 + $0x8] sm:$0xff]
    %v41 = vld [vmem:[%s2 + $0x10] sm:$0xff]
    %v42 = vld [vmem:[%s2 + $0x18] sm:$0xff]
    %v43 = vld [vmem:[%s2 + $0x20] sm:$0xff]
    %v44 = vld [vmem:[%s2 + $0x28] sm:$0xff]
    %v45 = vld [vmem:[%s2 + $0x30] sm:$0xff]
    %v46 = vld [vmem:[%s2 + $0x38] sm:$0xff]
    %v47 = vld [vmem:[%s3] sm:$0x1]
    %s48 = scalar_lea.vmem %s2, 64
    %v49 = vld [vmem:[%s48] sm:$0xff]
    %v50 = vld [vmem:[%s48 + $0x8] sm:$0xff]
    %v51 = vld [vmem:[%s48 + $0x10] sm:$0xff]
    %v52 = vld [vmem:[%s48 + $0x18] sm:$0xff]
    %v53 = vld [vmem:[%s48 + $0x20] sm:$0xff]
    %v54 = vld [vmem:[%s48 + $0x28] sm:$0xff]
    %v55 = vld [vmem:[%s48 + $0x30] sm:$0xff]
    %v56 = vld [vmem:[%s48 + $0x38] sm:$0xff]
    %s57 = scalar_lea.vmem %s3, 1
    %v58 = vld [vmem:[%s57] sm:$0x1]
    %s59 = sld [smem:[#allocation2]]
    // While loop
    $region42: #{_dae_device.1} parent=1 // loop_pre_header
      _
    $region43: #{_dae_device.1} parent=1 // loop_header
      %s61 = sphi 0, %s63
      %p62 = scmp.ge.s32.totalorder %s61, %s59
      %v66 = vphi 0.0, %v175
      %v67 = vphi 0.0, %v169
      %v68 = vphi 0.0, %v281
      %v69 = vphi 0.0, %v275
    $region44: #{_dae_device.1} parent=1 // loop_header_branch
      %65 = sbr.rel (%p62) target = $region48
    $region45: #{_dae_device.1} parent=1 // loop_body
      %s70 = scalar_lea.vmem %s1, %s61
      %v71 = vld [vmem:[%s70] sm:$0x1]
      %73 = vrot.lane.b32.xlu0 %v66, 64
      %v74 = vpop.permute.xlu0 %73
      %vm76 = vcmask 261120
      %v77 = vsel %vm76, %v71, %v74
      %vm78 = vcmask 523264
      %v80 = vsel %vm78, %v77, 0
      %82 = vmatprep.subr.mxu0 0.0
      %83 = vmatpush1.msra.mxu0 0.0
      %84 = vmatprep.subr.mxu0 0.0
      %85 = vmatpush1.msra.mxu0 0.0
      %86 = vmatprep.subr.mxu0 0.0
      %87 = vmatpush1.msra.mxu0 0.0
      %88 = vmatprep.subr.mxu0 0.0
      %89 = vmatpush1.msra.mxu0 0.0
      %90 = vmatprep.subr.mxu0 0.0
      %91 = vmatpush1.msra.mxu0 0.0
      %92 = vmatprep.subr.mxu0 0.0
      %93 = vmatpush1.msra.mxu0 0.0
      %94 = vmatprep.subr.mxu0 0.0
      %95 = vmatpush1.msra.mxu0 0.0
      %96 = vmatprep.subr.mxu0 0.0
      %97 = vmatpush1.msra.mxu0 0.0
      %98 = vmatprep.subr.mxu0 0.0
      %99 = vmatpush1.msra.mxu0 %v46
      %100 = vmatprep.subr.mxu0 0.0
      %101 = vmatpush1.msra.mxu0 %v45
      %102 = vmatprep.subr.mxu0 0.0
      %103 = vmatpush1.msra.mxu0 %v44
      %104 = vmatprep.subr.mxu0 0.0
      %105 = vmatpush1.msra.mxu0 %v43
      %106 = vmatprep.subr.mxu0 0.0
      %107 = vmatpush1.msra.mxu0 %v42
      %108 = vmatprep.subr.mxu0 0.0
      %109 = vmatpush1.msra.mxu0 %v41
      %110 = vmatprep.subr.mxu0 0.0
      %111 = vmatpush1.msra.mxu0 %v40
      %112 = vmatprep.subr.mxu0 0.0
      %113 = vmatpush1.msra.mxu0 %v39
      %114 = vmatprep.subr.mxu0 0.0
      %115 = vmatpush2.msra.mxu0 0.0
      %116 = vmatprep.subr.mxu0 0.0
      %117 = vmatpush2.msra.mxu0 0.0
      %118 = vmatprep.subr.mxu0 0.0
      %119 = vmatpush2.msra.mxu0 0.0
      %120 = vmatprep.subr.mxu0 0.0
      %121 = vmatpush2.msra.mxu0 0.0
      %122 = vmatprep.subr.mxu0 0.0
      %123 = vmatpush2.msra.mxu0 0.0
      %124 = vmatprep.subr.mxu0 0.0
      %125 = vmatpush2.msra.mxu0 0.0
      %126 = vmatprep.subr.mxu0 0.0
      %127 = vmatpush2.msra.mxu0 0.0
      %128 = vmatprep.subr.mxu0 0.0
      %129 = vmatpush2.msra.mxu0 0.0
      %130 = vmatprep.subr.mxu0 0.0
      %131 = vmatpush2.msra.mxu0 0.0
      %132 = vmatprep.subr.mxu0 0.0
      %133 = vmatpush2.msra.mxu0 0.0
      %134 = vmatprep.subr.mxu0 0.0
      %135 = vmatpush2.msra.mxu0 0.0
      %136 = vmatprep.subr.mxu0 0.0
      %137 = vmatpush2.msra.mxu0 0.0
      %138 = vmatprep.subr.mxu0 0.0
      %139 = vmatpush2.msra.mxu0 0.0
      %140 = vmatprep.subr.mxu0 0.0
      %141 = vmatpush2.msra.mxu0 0.0
      %142 = vmatprep.subr.mxu0 0.0
      %143 = vmatpush2.msra.mxu0 0.0
      %144 = vmatprep.subr.mxu0 0.0
      %145 = vmatpush2.msra.mxu0 0.0
      %146 = vmatprep.mubr.f32.mxu0 0.0
      %147 = vmatmul.mubr.f32.gmra.mxu0 %v80
      %v148 = vpop.f32.mrf.mxu0
      %v149 = vadd.f32 %v47, %v148
      %v150 = vpop.f32.mrf.mxu0
      %151 = vdwg.mxu0
      %v152 = vxor.u32 %v149, 2147483648
      %v153 = vmul.f32 %v152, 1.442695
      %v154 = vpow.pop %v153
      %v155 = vadd.f32 %v154, 1.0
      %v156 = vrcp.pop %v155
      %v157 = vmul.f32 1.0, %v156
      %v158 = vtanh.pop %v149
      %v159 = vmul.f32 %v157, %v67
      %161 = vrot.lane.b32.xlu0 %v158, 64
      %v162 = vpop.permute.xlu0 %161
      %v164 = vmul.f32 %v157, %v162
      %166 = vrot.lane.b32.xlu0 %v164, 32
      %v167 = vpop.permute.xlu0 %166
      %v169 = vadd.f32 %v159, %v167
      %v170 = vtanh.pop %v169
      %172 = vrot.lane.b32.xlu0 %v170, 64
      %v173 = vpop.permute.xlu0 %172
      %v175 = vmul.f32 %v157, %v173
      %177 = vrot.lane.b32.xlu0 %v175, 32
      %v178 = vpop.permute.xlu0 %177
      %181 = vrot.lane.b32.xlu0 %v68, 64
      %v182 = vpop.permute.xlu0 %181
      %v184 = vsel %vm76, %v178, %v182
      %v186 = vsel %vm78, %v184, 0
      %188 = vmatprep.subr.mxu0 0.0
      %189 = vmatpush1.msra.mxu0 0.0
      %190 = vmatprep.subr.mxu0 0.0
      %191 = vmatpush1.msra.mxu0 0.0
      %192 = vmatprep.subr.mxu0 0.0
      %193 = vmatpush1.msra.mxu0 0.0
      %194 = vmatprep.subr.mxu0 0.0
      %195 = vmatpush1.msra.mxu0 0.0
      %196 = vmatprep.subr.mxu0 0.0
      %197 = vmatpush1.msra.mxu0 0.0
      %198 = vmatprep.subr.mxu0 0.0
      %199 = vmatpush1.msra.mxu0 0.0
      %200 = vmatprep.subr.mxu0 0.0
      %201 = vmatpush1.msra.mxu0 0.0
      %202 = vmatprep.subr.mxu0 0.0
      %203 = vmatpush1.msra.mxu0 0.0
      %204 = vmatprep.subr.mxu0 0.0
      %205 = vmatpush1.msra.mxu0 %v56
      %206 = vmatprep.subr.mxu0 0.0
      %207 = vmatpush1.msra.mxu0 %v55
      %208 = vmatprep.subr.mxu0 0.0
      %209 = vmatpush1.msra.mxu0 %v54
      %210 = vmatprep.subr.mxu0 0.0
      %211 = vmatpush1.msra.mxu0 %v53
      %212 = vmatprep.subr.mxu0 0.0
      %213 = vmatpush1.msra.mxu0 %v52
      %214 = vmatprep.subr.mxu0 0.0
      %215 = vmatpush1.msra.mxu0 %v51
      %216 = vmatprep.subr.mxu0 0.0
      %217 = vmatpush1.msra.mxu0 %v50
      %218 = vmatprep.subr.mxu0 0.0
      %219 = vmatpush1.msra.mxu0 %v49
      %220 = vmatprep.subr.mxu0 0.0
      %221 = vmatpush2.msra.mxu0 0.0
      %222 = vmatprep.subr.mxu0 0.0
      %223 = vmatpush2.msra.mxu0 0.0
      %224 = vmatprep.subr.mxu0 0.0
      %225 = vmatpush2.msra.mxu0 0.0
      %226 = vmatprep.subr.mxu0 0.0
      %227 = vmatpush2.msra.mxu0 0.0
      %228 = vmatprep.subr.mxu0 0.0
      %229 = vmatpush2.msra.mxu0 0.0
      %230 = vmatprep.subr.mxu0 0.0
      %231 = vmatpush2.msra.mxu0 0.0
      %232 = vmatprep.subr.mxu0 0.0
      %233 = vmatpush2.msra.mxu0 0.0
      %234 = vmatprep.subr.mxu0 0.0
      %235 = vmatpush2.msra.mxu0 0.0
      %236 = vmatprep.subr.mxu0 0.0
      %237 = vmatpush2.msra.mxu0 0.0
      %238 = vmatprep.subr.mxu0 0.0
      %239 = vmatpush2.msra.mxu0 0.0
      %240 = vmatprep.subr.mxu0 0.0
      %241 = vmatpush2.msra.mxu0 0.0
      %242 = vmatprep.subr.mxu0 0.0
      %243 = vmatpush2.msra.mxu0 0.0
      %244 = vmatprep.subr.mxu0 0.0
      %245 = vmatpush2.msra.mxu0 0.0
      %246 = vmatprep.subr.mxu0 0.0
      %247 = vmatpush2.msra.mxu0 0.0
      %248 = vmatprep.subr.mxu0 0.0
      %249 = vmatpush2.msra.mxu0 0.0
      %250 = vmatprep.subr.mxu0 0.0
      %251 = vmatpush2.msra.mxu0 0.0
      %252 = vmatprep.mubr.f32.mxu0 0.0
      %253 = vmatmul.mubr.f32.gmra.mxu0 %v186
      %v254 = vpop.f32.mrf.mxu0
      %v255 = vadd.f32 %v58, %v254
      %v256 = vpop.f32.mrf.mxu0
      %257 = vdwg.mxu0
      %v258 = vxor.u32 %v255, 2147483648
      %v259 = vmul.f32 %v258, 1.442695
      %v260 = vpow.pop %v259
      %v261 = vadd.f32 %v260, 1.0
      %v262 = vrcp.pop %v261
      %v263 = vmul.f32 1.0, %v262
      %v264 = vtanh.pop %v255
      %v265 = vmul.f32 %v263, %v69
      %267 = vrot.lane.b32.xlu0 %v264, 64
      %v268 = vpop.permute.xlu0 %267
      %v270 = vmul.f32 %v263, %v268
      %272 = vrot.lane.b32.xlu0 %v270, 32
      %v273 = vpop.permute.xlu0 %272
      %v275 = vadd.f32 %v265, %v273
      %v276 = vtanh.pop %v275
      %278 = vrot.lane.b32.xlu0 %v276, 64
      %v279 = vpop.permute.xlu0 %278
      %v281 = vmul.f32 %v263, %v279
    $region46: #{_dae_device.1} parent=1 // loop_footer
      %s63 = sadd.s32 %s61, 1
    $region47: #{_dae_device.1} parent=1 // loop_footer_branch
      %60 = sbr.rel target = $region43
    $region48: #{_dae_device.1} parent=1 // loop_exit
      _
    %v282 = vlaneseq
    %v283 = vand.u32 %v282, 127
    %v284 = vld [vmem:[%s4] sm:$0xff]
    %v285 = vld [vmem:[%s4 + $0x8] sm:$0xff]
    %v286 = vld [vmem:[%s4 + $0x10] sm:$0xff]
    %v287 = vld [vmem:[%s4 + $0x18] sm:$0xff]
    %v288 = vld [vmem:[%s4 + $0x20] sm:$0xff]
    %v289 = vld [vmem:[%s4 + $0x28] sm:$0xff]
    %v290 = vld [vmem:[%s4 + $0x30] sm:$0xff]
    %v291 = vld [vmem:[%s4 + $0x38] sm:$0xff]
    %v292 = vld [vmem:[%s5] sm:$0x1]
    %s293 = scalar_lea.vmem %s4, 64
    %v294 = vld [vmem:[%s293] sm:$0xff]
    %v295 = vld [vmem:[%s293 + $0x8] sm:$0xff]
    %v296 = vld [vmem:[%s293 + $0x10] sm:$0xff]
    %v297 = vld [vmem:[%s293 + $0x18] sm:$0xff]
    %v298 = vld [vmem:[%s293 + $0x20] sm:$0xff]
    %v299 = vld [vmem:[%s293 + $0x28] sm:$0xff]
    %v300 = vld [vmem:[%s293 + $0x30] sm:$0xff]
    %v301 = vld [vmem:[%s293 + $0x38] sm:$0xff]
    %s302 = scalar_lea.vmem %s5, 1
    %v303 = vld [vmem:[%s302] sm:$0x1]
    %vm304 = vcmp.eq.s32.totalorder %v283, 28
    %v305 = vsel %vm304, 1, 0
    %v306 = vcvt.s32.f32 %v305
    %v307 = vld [vmem:[%s6] sm:$0xff]
    %v308 = vld [vmem:[%s6 + $0x8] sm:$0xff]
    %v309 = vld [vmem:[%s6 + $0x10] sm:$0xff]
    %v310 = vld [vmem:[%s6 + $0x18] sm:$0xff]
    %vm311 = vcmask 261120
    %v313 = vsel %vm311, %v306, 0
    %315 = vmatprep.subr.mxu0 0.0
    %316 = vmatpush1.msra.mxu0 0.0
    %317 = vmatprep.subr.mxu0 0.0
    %318 = vmatpush1.msra.mxu0 0.0
    %319 = vmatprep.subr.mxu0 0.0
    %320 = vmatpush1.msra.mxu0 0.0
    %321 = vmatprep.subr.mxu0 0.0
    %322 = vmatpush1.msra.mxu0 0.0
    %323 = vmatprep.subr.mxu0 0.0
    %324 = vmatpush1.msra.mxu0 0.0
    %325 = vmatprep.subr.mxu0 0.0
    %326 = vmatpush1.msra.mxu0 0.0
    %327 = vmatprep.subr.mxu0 0.0
    %328 = vmatpush1.msra.mxu0 0.0
    %329 = vmatprep.subr.mxu0 0.0
    %330 = vmatpush1.msra.mxu0 0.0
    %331 = vmatprep.subr.mxu0 0.0
    %332 = vmatpush1.msra.mxu0 0.0
    %333 = vmatprep.subr.mxu0 0.0
    %334 = vmatpush1.msra.mxu0 0.0
    %335 = vmatprep.subr.mxu0 0.0
    %336 = vmatpush1.msra.mxu0 0.0
    %337 = vmatprep.subr.mxu0 0.0
    %338 = vmatpush1.msra.mxu0 0.0
    %339 = vmatprep.subr.mxu0 0.0
    %340 = vmatpush1.msra.mxu0 %v310
    %341 = vmatprep.subr.mxu0 0.0
    %342 = vmatpush1.msra.mxu0 %v309
    %343 = vmatprep.subr.mxu0 0.0
    %344 = vmatpush1.msra.mxu0 %v308
    %345 = vmatprep.subr.mxu0 0.0
    %346 = vmatpush1.msra.mxu0 %v307
    %347 = vmatprep.subr.mxu0 0.0
    %348 = vmatpush2.msra.mxu0 0.0
    %349 = vmatprep.subr.mxu0 0.0
    %350 = vmatpush2.msra.mxu0 0.0
    %351 = vmatprep.subr.mxu0 0.0
    %352 = vmatpush2.msra.mxu0 0.0
    %353 = vmatprep.subr.mxu0 0.0
    %354 = vmatpush2.msra.mxu0 0.0
    %355 = vmatprep.subr.mxu0 0.0
    %356 = vmatpush2.msra.mxu0 0.0
    %357 = vmatprep.subr.mxu0 0.0
    %358 = vmatpush2.msra.mxu0 0.0
    %359 = vmatprep.subr.mxu0 0.0
    %360 = vmatpush2.msra.mxu0 0.0
    %361 = vmatprep.subr.mxu0 0.0
    %362 = vmatpush2.msra.mxu0 0.0
    %363 = vmatprep.subr.mxu0 0.0
    %364 = vmatpush2.msra.mxu0 0.0
    %365 = vmatprep.subr.mxu0 0.0
    %366 = vmatpush2.msra.mxu0 0.0
    %367 = vmatprep.subr.mxu0 0.0
    %368 = vmatpush2.msra.mxu0 0.0
    %369 = vmatprep.subr.mxu0 0.0
    %370 = vmatpush2.msra.mxu0 0.0
    %371 = vmatprep.subr.mxu0 0.0
    %372 = vmatpush2.msra.mxu0 0.0
    %373 = vmatprep.subr.mxu0 0.0
    %374 = vmatpush2.msra.mxu0 0.0
    %375 = vmatprep.subr.mxu0 0.0
    %376 = vmatpush2.msra.mxu0 0.0
    %377 = vmatprep.subr.mxu0 0.0
    %378 = vmatpush2.msra.mxu0 0.0
    %379 = vmatprep.mubr.f32.mxu0 0.0
    %380 = vmatmul.mubr.f32.gmra.mxu0 %v313
    %v381 = vpop.f32.mrf.mxu0
    %v382 = vadd.f32 0.0, %v381
    %v383 = vpop.f32.mrf.mxu0
    %384 = vdwg.mxu0
    %386 = vrot.lane.b32.xlu0 %v66, 64
    %v387 = vpop.permute.xlu0 %386
    %v389 = vsel %vm311, %v382, %v387
    %vm390 = vcmask 523264
    %v392 = vsel %vm390, %v389, 0
    %394 = vmatprep.subr.mxu0 0.0
    %395 = vmatpush1.msra.mxu0 0.0
    %396 = vmatprep.subr.mxu0 0.0
    %397 = vmatpush1.msra.mxu0 0.0
    %398 = vmatprep.subr.mxu0 0.0
    %399 = vmatpush1.msra.mxu0 0.0
    %400 = vmatprep.subr.mxu0 0.0
    %401 = vmatpush1.msra.mxu0 0.0
    %402 = vmatprep.subr.mxu0 0.0
    %403 = vmatpush1.msra.mxu0 0.0
    %404 = vmatprep.subr.mxu0 0.0
    %405 = vmatpush1.msra.mxu0 0.0
    %406 = vmatprep.subr.mxu0 0.0
    %407 = vmatpush1.msra.mxu0 0.0
    %408 = vmatprep.subr.mxu0 0.0
    %409 = vmatpush1.msra.mxu0 0.0
    %410 = vmatprep.subr.mxu0 0.0
    %411 = vmatpush1.msra.mxu0 %v291
    %412 = vmatprep.subr.mxu0 0.0
    %413 = vmatpush1.msra.mxu0 %v290
    %414 = vmatprep.subr.mxu0 0.0
    %415 = vmatpush1.msra.mxu0 %v289
    %416 = vmatprep.subr.mxu0 0.0
    %417 = vmatpush1.msra.mxu0 %v288
    %418 = vmatprep.subr.mxu0 0.0
    %419 = vmatpush1.msra.mxu0 %v287
    %420 = vmatprep.subr.mxu0 0.0
    %421 = vmatpush1.msra.mxu0 %v286
    %422 = vmatprep.subr.mxu0 0.0
    %423 = vmatpush1.msra.mxu0 %v285
    %424 = vmatprep.subr.mxu0 0.0
    %425 = vmatpush1.msra.mxu0 %v284
    %426 = vmatprep.subr.mxu0 0.0
    %427 = vmatpush2.msra.mxu0 0.0
    %428 = vmatprep.subr.mxu0 0.0
    %429 = vmatpush2.msra.mxu0 0.0
    %430 = vmatprep.subr.mxu0 0.0
    %431 = vmatpush2.msra.mxu0 0.0
    %432 = vmatprep.subr.mxu0 0.0
    %433 = vmatpush2.msra.mxu0 0.0
    %434 = vmatprep.subr.mxu0 0.0
    %435 = vmatpush2.msra.mxu0 0.0
    %436 = vmatprep.subr.mxu0 0.0
    %437 = vmatpush2.msra.mxu0 0.0
    %438 = vmatprep.subr.mxu0 0.0
    %439 = vmatpush2.msra.mxu0 0.0
    %440 = vmatprep.subr.mxu0 0.0
    %441 = vmatpush2.msra.mxu0 0.0
    %442 = vmatprep.subr.mxu0 0.0
    %443 = vmatpush2.msra.mxu0 0.0
    %444 = vmatprep.subr.mxu0 0.0
    %445 = vmatpush2.msra.mxu0 0.0
    %446 = vmatprep.subr.mxu0 0.0
    %447 = vmatpush2.msra.mxu0 0.0
    %448 = vmatprep.subr.mxu0 0.0
    %449 = vmatpush2.msra.mxu0 0.0
    %450 = vmatprep.subr.mxu0 0.0
    %451 = vmatpush2.msra.mxu0 0.0
    %452 = vmatprep.subr.mxu0 0.0
    %453 = vmatpush2.msra.mxu0 0.0
    %454 = vmatprep.subr.mxu0 0.0
    %455 = vmatpush2.msra.mxu0 0.0
    %456 = vmatprep.subr.mxu0 0.0
    %457 = vmatpush2.msra.mxu0 0.0
    %458 = vmatprep.mubr.f32.mxu0 0.0
    %459 = vmatmul.mubr.f32.gmra.mxu0 %v392
    %v460 = vpop.f32.mrf.mxu0
    %v461 = vadd.f32 %v292, %v460
    %v462 = vpop.f32.mrf.mxu0
    %463 = vdwg.mxu0
    %v464 = vxor.u32 %v461, 2147483648
    %v465 = vmul.f32 %v464, 1.442695
    %v466 = vpow.pop %v465
    %v467 = vadd.f32 %v466, 1.0
    %v468 = vrcp.pop %v467
    %v469 = vmul.f32 1.0, %v468
    %v470 = vtanh.pop %v461
    %v471 = vmul.f32 %v469, %v67
    %473 = vrot.lane.b32.xlu0 %v470, 64
    %v474 = vpop.permute.xlu0 %473
    %v476 = vmul.f32 %v469, %v474
    %478 = vrot.lane.b32.xlu0 %v476, 32
    %v479 = vpop.permute.xlu0 %478
    %v481 = vadd.f32 %v471, %v479
    %v482 = vtanh.pop %v481
    %484 = vrot.lane.b32.xlu0 %v482, 64
    %v485 = vpop.permute.xlu0 %484
    %v487 = vmul.f32 %v469, %v485
    %489 = vrot.lane.b32.xlu0 %v487, 32
    %v490 = vpop.permute.xlu0 %489
    %493 = vrot.lane.b32.xlu0 %v68, 64
    %v494 = vpop.permute.xlu0 %493
    %v496 = vsel %vm311, %v490, %v494
    %v498 = vsel %vm390, %v496, 0
    %500 = vmatprep.subr.mxu0 0.0
    %501 = vmatpush1.msra.mxu0 0.0
    %502 = vmatprep.subr.mxu0 0.0
    %503 = vmatpush1.msra.mxu0 0.0
    %504 = vmatprep.subr.mxu0 0.0
    %505 = vmatpush1.msra.mxu0 0.0
    %506 = vmatprep.subr.mxu0 0.0
    %507 = vmatpush1.msra.mxu0 0.0
    %508 = vmatprep.subr.mxu0 0.0
    %509 = vmatpush1.msra.mxu0 0.0
    %510 = vmatprep.subr.mxu0 0.0
    %511 = vmatpush1.msra.mxu0 0.0
    %512 = vmatprep.subr.mxu0 0.0
    %513 = vmatpush1.msra.mxu0 0.0
    %514 = vmatprep.subr.mxu0 0.0
    %515 = vmatpush1.msra.mxu0 0.0
    %516 = vmatprep.subr.mxu0 0.0
    %517 = vmatpush1.msra.mxu0 %v301
    %518 = vmatprep.subr.mxu0 0.0
    %519 = vmatpush1.msra.mxu0 %v300
    %520 = vmatprep.subr.mxu0 0.0
    %521 = vmatpush1.msra.mxu0 %v299
    %522 = vmatprep.subr.mxu0 0.0
    %523 = vmatpush1.msra.mxu0 %v298
    %524 = vmatprep.subr.mxu0 0.0
    %525 = vmatpush1.msra.mxu0 %v297
    %526 = vmatprep.subr.mxu0 0.0
    %527 = vmatpush1.msra.mxu0 %v296
    %528 = vmatprep.subr.mxu0 0.0
    %529 = vmatpush1.msra.mxu0 %v295
    %530 = vmatprep.subr.mxu0 0.0
    %531 = vmatpush1.msra.mxu0 %v294
    %532 = vmatprep.subr.mxu0 0.0
    %533 = vmatpush2.msra.mxu0 0.0
    %534 = vmatprep.subr.mxu0 0.0
    %535 = vmatpush2.msra.mxu0 0.0
    %536 = vmatprep.subr.mxu0 0.0
    %537 = vmatpush2.msra.mxu0 0.0
    %538 = vmatprep.subr.mxu0 0.0
    %539 = vmatpush2.msra.mxu0 0.0
    %540 = vmatprep.subr.mxu0 0.0
    %541 = vmatpush2.msra.mxu0 0.0
    %542 = vmatprep.subr.mxu0 0.0
    %543 = vmatpush2.msra.mxu0 0.0
    %544 = vmatprep.subr.mxu0 0.0
    %545 = vmatpush2.msra.mxu0 0.0
    %546 = vmatprep.subr.mxu0 0.0
    %547 = vmatpush2.msra.mxu0 0.0
    %548 = vmatprep.subr.mxu0 0.0
    %549 = vmatpush2.msra.mxu0 0.0
    %550 = vmatprep.subr.mxu0 0.0
    %551 = vmatpush2.msra.mxu0 0.0
    %552 = vmatprep.subr.mxu0 0.0
    %553 = vmatpush2.msra.mxu0 0.0
    %554 = vmatprep.subr.mxu0 0.0
    %555 = vmatpush2.msra.mxu0 0.0
    %556 = vmatprep.subr.mxu0 0.0
    %557 = vmatpush2.msra.mxu0 0.0
    %558 = vmatprep.subr.mxu0 0.0
    %559 = vmatpush2.msra.mxu0 0.0
    %560 = vmatprep.subr.mxu0 0.0
    %561 = vmatpush2.msra.mxu0 0.0
    %562 = vmatprep.subr.mxu0 0.0
    %563 = vmatpush2.msra.mxu0 0.0
    %564 = vmatprep.mubr.f32.mxu0 0.0
    %565 = vmatmul.mubr.f32.gmra.mxu0 %v498
    %v566 = vpop.f32.mrf.mxu0
    %v567 = vadd.f32 %v303, %v566
    %v568 = vpop.f32.mrf.mxu0
    %569 = vdwg.mxu0
    %v570 = vxor.u32 %v567, 2147483648
    %v571 = vmul.f32 %v570, 1.442695
    %v572 = vpow.pop %v571
    %v573 = vadd.f32 %v572, 1.0
    %v574 = vrcp.pop %v573
    %v575 = vmul.f32 1.0, %v574
    %v576 = vtanh.pop %v567
    %v577 = vmul.f32 %v575, %v69
    %579 = vrot.lane.b32.xlu0 %v576, 64
    %v580 = vpop.permute.xlu0 %579
    %v582 = vmul.f32 %v575, %v580
    %584 = vrot.lane.b32.xlu0 %v582, 32
    %v585 = vpop.permute.xlu0 %584
    %v587 = vadd.f32 %v577, %v585
    %v588 = vtanh.pop %v587
    %590 = vrot.lane.b32.xlu0 %v588, 64
    %v591 = vpop.permute.xlu0 %590
    %v593 = vmul.f32 %v575, %v591
    %v594 = vld [vmem:[%s7] sm:$0xff]
    %v595 = vld [vmem:[%s7 + $0x8] sm:$0xff]
    %v596 = vld [vmem:[%s7 + $0x10] sm:$0xff]
    %v597 = vld [vmem:[%s7 + $0x18] sm:$0xff]
    %v598 = vld [vmem:[%s8] sm:$0x1]
    %600 = vrot.lane.b32.xlu0 %v593, 32
    %v601 = vpop.permute.xlu0 %600
    %v602 = vsel %vm311, %v601, 0
    %604 = vmatprep.subr.mxu0 0.0
    %605 = vmatpush1.msra.mxu0 0.0
    %606 = vmatprep.subr.mxu0 0.0
    %607 = vmatpush1.msra.mxu0 0.0
    %608 = vmatprep.subr.mxu0 0.0
    %609 = vmatpush1.msra.mxu0 0.0
    %610 = vmatprep.subr.mxu0 0.0
    %611 = vmatpush1.msra.mxu0 0.0
    %612 = vmatprep.subr.mxu0 0.0
    %613 = vmatpush1.msra.mxu0 0.0
    %614 = vmatprep.subr.mxu0 0.0
    %615 = vmatpush1.msra.mxu0 0.0
    %616 = vmatprep.subr.mxu0 0.0
    %617 = vmatpush1.msra.mxu0 0.0
    %618 = vmatprep.subr.mxu0 0.0
    %619 = vmatpush1.msra.mxu0 0.0
    %620 = vmatprep.subr.mxu0 0.0
    %621 = vmatpush1.msra.mxu0 0.0
    %622 = vmatprep.subr.mxu0 0.0
    %623 = vmatpush1.msra.mxu0 0.0
    %624 = vmatprep.subr.mxu0 0.0
    %625 = vmatpush1.msra.mxu0 0.0
    %626 = vmatprep.subr.mxu0 0.0
    %627 = vmatpush1.msra.mxu0 0.0
    %628 = vmatprep.subr.mxu0 0.0
    %629 = vmatpush1.msra.mxu0 %v597
    %630 = vmatprep.subr.mxu0 0.0
    %631 = vmatpush1.msra.mxu0 %v596
    %632 = vmatprep.subr.mxu0 0.0
    %633 = vmatpush1.msra.mxu0 %v595
    %634 = vmatprep.subr.mxu0 0.0
    %635 = vmatpush1.msra.mxu0 %v594
    %636 = vmatprep.subr.mxu0 0.0
    %637 = vmatpush2.msra.mxu0 0.0
    %638 = vmatprep.subr.mxu0 0.0
    %639 = vmatpush2.msra.mxu0 0.0
    %640 = vmatprep.subr.mxu0 0.0
    %641 = vmatpush2.msra.mxu0 0.0
    %642 = vmatprep.subr.mxu0 0.0
    %643 = vmatpush2.msra.mxu0 0.0
    %644 = vmatprep.subr.mxu0 0.0
    %645 = vmatpush2.msra.mxu0 0.0
    %646 = vmatprep.subr.mxu0 0.0
    %647 = vmatpush2.msra.mxu0 0.0
    %648 = vmatprep.subr.mxu0 0.0
    %649 = vmatpush2.msra.mxu0 0.0
    %650 = vmatprep.subr.mxu0 0.0
    %651 = vmatpush2.msra.mxu0 0.0
    %652 = vmatprep.subr.mxu0 0.0
    %653 = vmatpush2.msra.mxu0 0.0
    %654 = vmatprep.subr.mxu0 0.0
    %655 = vmatpush2.msra.mxu0 0.0
    %656 = vmatprep.subr.mxu0 0.0
    %657 = vmatpush2.msra.mxu0 0.0
    %658 = vmatprep.subr.mxu0 0.0
    %659 = vmatpush2.msra.mxu0 0.0
    %660 = vmatprep.subr.mxu0 0.0
    %661 = vmatpush2.msra.mxu0 0.0
    %662 = vmatprep.subr.mxu0 0.0
    %663 = vmatpush2.msra.mxu0 0.0
    %664 = vmatprep.subr.mxu0 0.0
    %665 = vmatpush2.msra.mxu0 0.0
    %666 = vmatprep.subr.mxu0 0.0
    %667 = vmatpush2.msra.mxu0 0.0
    %668 = vmatprep.mubr.f32.mxu0 0.0
    %669 = vmatmul.mubr.f32.gmra.mxu0 %v602
    %v670 = vpop.f32.mrf.mxu0
    %v671 = vadd.f32 %v598, %v670
    %v672 = vpop.f32.mrf.mxu0
    %673 = vdwg.mxu0
    %674 = vst [vmem:[#allocation3] sm:$0x1] %v671
    %v675 = vld [vmem:[%s9] sm:$0x1]
    %v676 = vadd.f32 %v671, %v675
    %vm677 = vcmask 1040384
    %v678 = vsel %vm677, %v676, -inf
    %679 = vmax.xlane.f32.xlu0 %v678
    %v680 = vpop.xlane.xlu0 %679
    %vm681 = vcmp.ge.f32.partialorder %v676, %v680
    %v682 = vsel %vm681, %v283, 128
    %v683 = vsel %vm677, %v682, 2147483647
    %v684 = vand.u32 %v683, 65535
    %v685 = vshra.s32 %v683, 16
    %v686 = vcvt.s32.f32 %v684
    %v687 = vcvt.s32.f32 %v685
    %688 = vmin.xlane.f32.xlu0 %v687
    %v689 = vpop.xlane.xlu0 %688
    %vm690 = vcmp.eq.f32.partialorder %v687, %v689
    %v691 = vsel %vm690, %v686, inf
    %692 = vmin.xlane.f32.xlu0 %v691
    %v693 = vpop.xlane.xlu0 %692
    %v694 = vcvt.f32.s32 %v693
    %v695 = vcvt.f32.s32 %v689
    %v696 = vshll.u32 %v695, 16
    %v697 = vadd.s32 %v696, %v694
    %vm698 = vcmp.eq.s32.totalorder %v283, 0
    %v699 = vsel %vm698, %v697, 29
    %vm700 = vcmp.eq.s32.totalorder %v697, 29
    %v701 = vsel %vm700, 1, 0
    %v702 = vsel %vm700, %v701, 0
    %vm703 = vcmp.eq.s32.totalorder %v283, %v697
    %v704 = vsel %vm703, 1, 0
    %v705 = vcvt.s32.f32 %v704
    %v706 = vld [vmem:[%s6] sm:$0xff]
    %v707 = vld [vmem:[%s6 + $0x8] sm:$0xff]
    %v708 = vld [vmem:[%s6 + $0x10] sm:$0xff]
    %v709 = vld [vmem:[%s6 + $0x18] sm:$0xff]
    %v711 = vsel %vm311, %v705, 0
    %713 = vmatprep.subr.mxu0 0.0
    %714 = vmatpush1.msra.mxu0 0.0
    %715 = vmatprep.subr.mxu0 0.0
    %716 = vmatpush1.msra.mxu0 0.0
    %717 = vmatprep.subr.mxu0 0.0
    %718 = vmatpush1.msra.mxu0 0.0
    %719 = vmatprep.subr.mxu0 0.0
    %720 = vmatpush1.msra.mxu0 0.0
    %721 = vmatprep.subr.mxu0 0.0
    %722 = vmatpush1.msra.mxu0 0.0
    %723 = vmatprep.subr.mxu0 0.0
    %724 = vmatpush1.msra.mxu0 0.0
    %725 = vmatprep.subr.mxu0 0.0
    %726 = vmatpush1.msra.mxu0 0.0
    %727 = vmatprep.subr.mxu0 0.0
    %728 = vmatpush1.msra.mxu0 0.0
    %729 = vmatprep.subr.mxu0 0.0
    %730 = vmatpush1.msra.mxu0 0.0
    %731 = vmatprep.subr.mxu0 0.0
    %732 = vmatpush1.msra.mxu0 0.0
    %733 = vmatprep.subr.mxu0 0.0
    %734 = vmatpush1.msra.mxu0 0.0
    %735 = vmatprep.subr.mxu0 0.0
    %736 = vmatpush1.msra.mxu0 0.0
    %737 = vmatprep.subr.mxu0 0.0
    %738 = vmatpush1.msra.mxu0 %v709
    %739 = vmatprep.subr.mxu0 0.0
    %740 = vmatpush1.msra.mxu0 %v708
    %741 = vmatprep.subr.mxu0 0.0
    %742 = vmatpush1.msra.mxu0 %v707
    %743 = vmatprep.subr.mxu0 0.0
    %744 = vmatpush1.msra.mxu0 %v706
    %745 = vmatprep.subr.mxu0 0.0
    %746 = vmatpush2.msra.mxu0 0.0
    %747 = vmatprep.subr.mxu0 0.0
    %748 = vmatpush2.msra.mxu0 0.0
    %749 = vmatprep.subr.mxu0 0.0
    %750 = vmatpush2.msra.mxu0 0.0
    %751 = vmatprep.subr.mxu0 0.0
    %752 = vmatpush2.msra.mxu0 0.0
    %753 = vmatprep.subr.mxu0 0.0
    %754 = vmatpush2.msra.mxu0 0.0
    %755 = vmatprep.subr.mxu0 0.0
    %756 = vmatpush2.msra.mxu0 0.0
    %757 = vmatprep.subr.mxu0 0.0
    %758 = vmatpush2.msra.mxu0 0.0
    %759 = vmatprep.subr.mxu0 0.0
    %760 = vmatpush2.msra.mxu0 0.0
    %761 = vmatprep.subr.mxu0 0.0
    %762 = vmatpush2.msra.mxu0 0.0
    %763 = vmatprep.subr.mxu0 0.0
    %764 = vmatpush2.msra.mxu0 0.0
    %765 = vmatprep.subr.mxu0 0.0
    %766 = vmatpush2.msra.mxu0 0.0
    %767 = vmatprep.subr.mxu0 0.0
    %768 = vmatpush2.msra.mxu0 0.0
    %769 = vmatprep.subr.mxu0 0.0
    %770 = vmatpush2.msra.mxu0 0.0
    %771 = vmatprep.subr.mxu0 0.0
    %772 = vmatpush2.msra.mxu0 0.0
    %773 = vmatprep.subr.mxu0 0.0
    %774 = vmatpush2.msra.mxu0 0.0
    %775 = vmatprep.subr.mxu0 0.0
    %776 = vmatpush2.msra.mxu0 0.0
    %777 = vmatprep.mubr.f32.mxu0 0.0
    %778 = vmatmul.mubr.f32.gmra.mxu0 %v711
    %v779 = vpop.f32.mrf.mxu0
    %v780 = vadd.f32 0.0, %v779
    %v781 = vpop.f32.mrf.mxu0
    %782 = vdwg.mxu0
    %783 = vrot.lane.b32.xlu0 %v487, 64
    %v784 = vpop.permute.xlu0 %783
    %v786 = vsel %vm311, %v780, %v784
    %v788 = vsel %vm390, %v786, 0
    %790 = vmatprep.subr.mxu0 0.0
    %791 = vmatpush1.msra.mxu0 0.0
    %792 = vmatprep.subr.mxu0 0.0
    %793 = vmatpush1.msra.mxu0 0.0
    %794 = vmatprep.subr.mxu0 0.0
    %795 = vmatpush1.msra.mxu0 0.0
    %796 = vmatprep.subr.mxu0 0.0
    %797 = vmatpush1.msra.mxu0 0.0
    %798 = vmatprep.subr.mxu0 0.0
    %799 = vmatpush1.msra.mxu0 0.0
    %800 = vmatprep.subr.mxu0 0.0
    %801 = vmatpush1.msra.mxu0 0.0
    %802 = vmatprep.subr.mxu0 0.0
    %803 = vmatpush1.msra.mxu0 0.0
    %804 = vmatprep.subr.mxu0 0.0
    %805 = vmatpush1.msra.mxu0 0.0
    %806 = vmatprep.subr.mxu0 0.0
    %807 = vmatpush1.msra.mxu0 %v291
    %808 = vmatprep.subr.mxu0 0.0
    %809 = vmatpush1.msra.mxu0 %v290
    %810 = vmatprep.subr.mxu0 0.0
    %811 = vmatpush1.msra.mxu0 %v289
    %812 = vmatprep.subr.mxu0 0.0
    %813 = vmatpush1.msra.mxu0 %v288
    %814 = vmatprep.subr.mxu0 0.0
    %815 = vmatpush1.msra.mxu0 %v287
    %816 = vmatprep.subr.mxu0 0.0
    %817 = vmatpush1.msra.mxu0 %v286
    %818 = vmatprep.subr.mxu0 0.0
    %819 = vmatpush1.msra.mxu0 %v285
    %820 = vmatprep.subr.mxu0 0.0
    %821 = vmatpush1.msra.mxu0 %v284
    %822 = vmatprep.subr.mxu0 0.0
    %823 = vmatpush2.msra.mxu0 0.0
    %824 = vmatprep.subr.mxu0 0.0
    %825 = vmatpush2.msra.mxu0 0.0
    %826 = vmatprep.subr.mxu0 0.0
    %827 = vmatpush2.msra.mxu0 0.0
    %828 = vmatprep.subr.mxu0 0.0
    %829 = vmatpush2.msra.mxu0 0.0
    %830 = vmatprep.subr.mxu0 0.0
    %831 = vmatpush2.msra.mxu0 0.0
    %832 = vmatprep.subr.mxu0 0.0
    %833 = vmatpush2.msra.mxu0 0.0
    %834 = vmatprep.subr.mxu0 0.0
    %835 = vmatpush2.msra.mxu0 0.0
    %836 = vmatprep.subr.mxu0 0.0
    %837 = vmatpush2.msra.mxu0 0.0
    %838 = vmatprep.subr.mxu0 0.0
    %839 = vmatpush2.msra.mxu0 0.0
    %840 = vmatprep.subr.mxu0 0.0
    %841 = vmatpush2.msra.mxu0 0.0
    %842 = vmatprep.subr.mxu0 0.0
    %843 = vmatpush2.msra.mxu0 0.0
    %844 = vmatprep.subr.mxu0 0.0
    %845 = vmatpush2.msra.mxu0 0.0
    %846 = vmatprep.subr.mxu0 0.0
    %847 = vmatpush2.msra.mxu0 0.0
    %848 = vmatprep.subr.mxu0 0.0
    %849 = vmatpush2.msra.mxu0 0.0
    %850 = vmatprep.subr.mxu0 0.0
    %851 = vmatpush2.msra.mxu0 0.0
    %852 = vmatprep.subr.mxu0 0.0
    %853 = vmatpush2.msra.mxu0 0.0
    %854 = vmatprep.mubr.f32.mxu0 0.0
    %855 = vmatmul.mubr.f32.gmra.mxu0 %v788
    %v856 = vpop.f32.mrf.mxu0
    %v857 = vadd.f32 %v292, %v856
    %v858 = vpop.f32.mrf.mxu0
    %859 = vdwg.mxu0
    %v860 = vxor.u32 %v857, 2147483648
    %v861 = vmul.f32 %v860, 1.442695
    %v862 = vpow.pop %v861
    %v863 = vadd.f32 %v862, 1.0
    %v864 = vrcp.pop %v863
    %v865 = vmul.f32 1.0, %v864
    %v866 = vtanh.pop %v857
    %v867 = vmul.f32 %v865, %v481
    %869 = vrot.lane.b32.xlu0 %v866, 64
    %v870 = vpop.permute.xlu0 %869
    %v872 = vmul.f32 %v865, %v870
    %874 = vrot.lane.b32.xlu0 %v872, 32
    %v875 = vpop.permute.xlu0 %874
    %v877 = vadd.f32 %v867, %v875
    %v878 = vtanh.pop %v877
    %880 = vrot.lane.b32.xlu0 %v878, 64
    %v881 = vpop.permute.xlu0 %880
    %v883 = vmul.f32 %v865, %v881
    %885 = vrot.lane.b32.xlu0 %v883, 32
    %v886 = vpop.permute.xlu0 %885
    %888 = vrot.lane.b32.xlu0 %v593, 64
    %v889 = vpop.permute.xlu0 %888
    %v891 = vsel %vm311, %v886, %v889
    %v893 = vsel %vm390, %v891, 0
    %895 = vmatprep.subr.mxu0 0.0
    %896 = vmatpush1.msra.mxu0 0.0
    %897 = vmatprep.subr.mxu0 0.0
    %898 = vmatpush1.msra.mxu0 0.0
    %899 = vmatprep.subr.mxu0 0.0
    %900 = vmatpush1.msra.mxu0 0.0
    %901 = vmatprep.subr.mxu0 0.0
    %902 = vmatpush1.msra.mxu0 0.0
    %903 = vmatprep.subr.mxu0 0.0
    %904 = vmatpush1.msra.mxu0 0.0
    %905 = vmatprep.subr.mxu0 0.0
    %906 = vmatpush1.msra.mxu0 0.0
    %907 = vmatprep.subr.mxu0 0.0
    %908 = vmatpush1.msra.mxu0 0.0
    %909 = vmatprep.subr.mxu0 0.0
    %910 = vmatpush1.msra.mxu0 0.0
    %911 = vmatprep.subr.mxu0 0.0
    %912 = vmatpush1.msra.mxu0 %v301
    %913 = vmatprep.subr.mxu0 0.0
    %914 = vmatpush1.msra.mxu0 %v300
    %915 = vmatprep.subr.mxu0 0.0
    %916 = vmatpush1.msra.mxu0 %v299
    %917 = vmatprep.subr.mxu0 0.0
    %918 = vmatpush1.msra.mxu0 %v298
    %919 = vmatprep.subr.mxu0 0.0
    %920 = vmatpush1.msra.mxu0 %v297
    %921 = vmatprep.subr.mxu0 0.0
    %922 = vmatpush1.msra.mxu0 %v296
    %923 = vmatprep.subr.mxu0 0.0
    %924 = vmatpush1.msra.mxu0 %v295
    %925 = vmatprep.subr.mxu0 0.0
    %926 = vmatpush1.msra.mxu0 %v294
    %927 = vmatprep.subr.mxu0 0.0
    %928 = vmatpush2.msra.mxu0 0.0
    %929 = vmatprep.subr.mxu0 0.0
    %930 = vmatpush2.msra.mxu0 0.0
    %931 = vmatprep.subr.mxu0 0.0
    %932 = vmatpush2.msra.mxu0 0.0
    %933 = vmatprep.subr.mxu0 0.0
    %934 = vmatpush2.msra.mxu0 0.0
    %935 = vmatprep.subr.mxu0 0.0
    %936 = vmatpush2.msra.mxu0 0.0
    %937 = vmatprep.subr.mxu0 0.0
    %938 = vmatpush2.msra.mxu0 0.0
    %939 = vmatprep.subr.mxu0 0.0
    %940 = vmatpush2.msra.mxu0 0.0
    %941 = vmatprep.subr.mxu0 0.0
    %942 = vmatpush2.msra.mxu0 0.0
    %943 = vmatprep.subr.mxu0 0.0
    %944 = vmatpush2.msra.mxu0 0.0
    %945 = vmatprep.subr.mxu0 0.0
    %946 = vmatpush2.msra.mxu0 0.0
    %947 = vmatprep.subr.mxu0 0.0
    %948 = vmatpush2.msra.mxu0 0.0
    %949 = vmatprep.subr.mxu0 0.0
    %950 = vmatpush2.msra.mxu0 0.0
    %951 = vmatprep.subr.mxu0 0.0
    %952 = vmatpush2.msra.mxu0 0.0
    %953 = vmatprep.subr.mxu0 0.0
    %954 = vmatpush2.msra.mxu0 0.0
    %955 = vmatprep.subr.mxu0 0.0
    %956 = vmatpush2.msra.mxu0 0.0
    %957 = vmatprep.subr.mxu0 0.0
    %958 = vmatpush2.msra.mxu0 0.0
    %959 = vmatprep.mubr.f32.mxu0 0.0
    %960 = vmatmul.mubr.f32.gmra.mxu0 %v893
    %v961 = vpop.f32.mrf.mxu0
    %v962 = vadd.f32 %v303, %v961
    %v963 = vpop.f32.mrf.mxu0
    %964 = vdwg.mxu0
    %v965 = vxor.u32 %v962, 2147483648
    %v966 = vmul.f32 %v965, 1.442695
    %v967 = vpow.pop %v966
    %v968 = vadd.f32 %v967, 1.0
    %v969 = vrcp.pop %v968
    %v970 = vmul.f32 1.0, %v969
    %v971 = vtanh.pop %v962
    %v972 = vmul.f32 %v970, %v587
    %974 = vrot.lane.b32.xlu0 %v971, 64
    %v975 = vpop.permute.xlu0 %974
    %v977 = vmul.f32 %v970, %v975
    %979 = vrot.lane.b32.xlu0 %v977, 32
    %v980 = vpop.permute.xlu0 %979
    %v982 = vadd.f32 %v972, %v980
    %v983 = vtanh.pop %v982
    %985 = vrot.lane.b32.xlu0 %v983, 64
    %v986 = vpop.permute.xlu0 %985
    %v988 = vmul.f32 %v970, %v986
    %v989 = vld [vmem:[%s7] sm:$0xff]
    %v990 = vld [vmem:[%s7 + $0x8] sm:$0xff]
    %v991 = vld [vmem:[%s7 + $0x10] sm:$0xff]
    %v992 = vld [vmem:[%s7 + $0x18] sm:$0xff]
    %v993 = vld [vmem:[%s8] sm:$0x1]
    %995 = vrot.lane.b32.xlu0 %v988, 32
    %v996 = vpop.permute.xlu0 %995
    %v997 = vsel %vm311, %v996, 0
    %999 = vmatprep.subr.mxu0 0.0
    %1000 = vmatpush1.msra.mxu0 0.0
    %1001 = vmatprep.subr.mxu0 0.0
    %1002 = vmatpush1.msra.mxu0 0.0
    %1003 = vmatprep.subr.mxu0 0.0
    %1004 = vmatpush1.msra.mxu0 0.0
    %1005 = vmatprep.subr.mxu0 0.0
    %1006 = vmatpush1.msra.mxu0 0.0
    %1007 = vmatprep.subr.mxu0 0.0
    %1008 = vmatpush1.msra.mxu0 0.0
    %1009 = vmatprep.subr.mxu0 0.0
    %1010 = vmatpush1.msra.mxu0 0.0
    %1011 = vmatprep.subr.mxu0 0.0
    %1012 = vmatpush1.msra.mxu0 0.0
    %1013 = vmatprep.subr.mxu0 0.0
    %1014 = vmatpush1.msra.mxu0 0.0
    %1015 = vmatprep.subr.mxu0 0.0
    %1016 = vmatpush1.msra.mxu0 0.0
    %1017 = vmatprep.subr.mxu0 0.0
    %1018 = vmatpush1.msra.mxu0 0.0
    %1019 = vmatprep.subr.mxu0 0.0
    %1020 = vmatpush1.msra.mxu0 0.0
    %1021 = vmatprep.subr.mxu0 0.0
    %1022 = vmatpush1.msra.mxu0 0.0
    %1023 = vmatprep.subr.mxu0 0.0
    %1024 = vmatpush1.msra.mxu0 %v992
    %1025 = vmatprep.subr.mxu0 0.0
    %1026 = vmatpush1.msra.mxu0 %v991
    %1027 = vmatprep.subr.mxu0 0.0
    %1028 = vmatpush1.msra.mxu0 %v990
    %1029 = vmatprep.subr.mxu0 0.0
    %1030 = vmatpush1.msra.mxu0 %v989
    %1031 = vmatprep.subr.mxu0 0.0
    %1032 = vmatpush2.msra.mxu0 0.0
    %1033 = vmatprep.subr.mxu0 0.0
    %1034 = vmatpush2.msra.mxu0 0.0
    %1035 = vmatprep.subr.mxu0 0.0
    %1036 = vmatpush2.msra.mxu0 0.0
    %1037 = vmatprep.subr.mxu0 0.0
    %1038 = vmatpush2.msra.mxu0 0.0
    %1039 = vmatprep.subr.mxu0 0.0
    %1040 = vmatpush2.msra.mxu0 0.0
    %1041 = vmatprep.subr.mxu0 0.0
    %1042 = vmatpush2.msra.mxu0 0.0
    %1043 = vmatprep.subr.mxu0 0.0
    %1044 = vmatpush2.msra.mxu0 0.0
    %1045 = vmatprep.subr.mxu0 0.0
    %1046 = vmatpush2.msra.mxu0 0.0
    %1047 = vmatprep.subr.mxu0 0.0
    %1048 = vmatpush2.msra.mxu0 0.0
    %1049 = vmatprep.subr.mxu0 0.0
    %1050 = vmatpush2.msra.mxu0 0.0
    %1051 = vmatprep.subr.mxu0 0.0
    %1052 = vmatpush2.msra.mxu0 0.0
    %1053 = vmatprep.subr.mxu0 0.0
    %1054 = vmatpush2.msra.mxu0 0.0
    %1055 = vmatprep.subr.mxu0 0.0
    %1056 = vmatpush2.msra.mxu0 0.0
    %1057 = vmatprep.subr.mxu0 0.0
    %1058 = vmatpush2.msra.mxu0 0.0
    %1059 = vmatprep.subr.mxu0 0.0
    %1060 = vmatpush2.msra.mxu0 0.0
    %1061 = vmatprep.subr.mxu0 0.0
    %1062 = vmatpush2.msra.mxu0 0.0
    %1063 = vmatprep.mubr.f32.mxu0 0.0
    %1064 = vmatmul.mubr.f32.gmra.mxu0 %v997
    %v1065 = vpop.f32.mrf.mxu0
    %v1066 = vadd.f32 %v993, %v1065
    %v1067 = vpop.f32.mrf.mxu0
    %1068 = vdwg.mxu0
    %1069 = vst [vmem:[#allocation3 + $0x1] sm:$0x1] %v1066
    %v1070 = vld [vmem:[%s9 + $0x1] sm:$0x1]
    %v1071 = vadd.f32 %v1066, %v1070
    %v1072 = vsel %vm677, %v1071, -inf
    %1073 = vmax.xlane.f32.xlu0 %v1072
    %v1074 = vpop.xlane.xlu0 %1073
    %vm1075 = vcmp.ge.f32.partialorder %v1071, %v1074
    %v1076 = vsel %vm1075, %v283, 128
    %v1077 = vsel %vm677, %v1076, 2147483647
    %v1078 = vand.u32 %v1077, 65535
    %v1079 = vshra.s32 %v1077, 16
    %v1080 = vcvt.s32.f32 %v1078
    %v1081 = vcvt.s32.f32 %v1079
    %1082 = vmin.xlane.f32.xlu0 %v1081
    %v1083 = vpop.xlane.xlu0 %1082
    %vm1084 = vcmp.eq.f32.partialorder %v1081, %v1083
    %v1085 = vsel %vm1084, %v1080, inf
    %1086 = vmin.xlane.f32.xlu0 %v1085
    %v1087 = vpop.xlane.xlu0 %1086
    %v1088 = vcvt.f32.s32 %v1087
    %v1089 = vcvt.f32.s32 %v1083
    %v1090 = vshll.u32 %v1089, 16
    %v1091 = vadd.s32 %v1090, %v1088
    %vm1092 = vcmp.gt.s32.totalorder %v702, 0
    %v1093 = vsel %vm1092, 29, %v1091
    %vm1094 = vcmp.eq.s32.totalorder %v283, 1
    %v1095 = vsel %vm1094, %v1093, %v699
    %vm1096 = vcmp.eq.s32.totalorder %v1093, 29
    %v1097 = vsel %vm1096, 1, 0
    %vm1098 = vcmp.gt.s32.totalorder %v702, %v1097
    %v1099 = vsel %vm1098, %v702, %v1097
    %vm1100 = vcmp.eq.s32.totalorder %v283, %v1093
    %v1101 = vsel %vm1100, 1, 0
    %v1102 = vcvt.s32.f32 %v1101
    %v1103 = vld [vmem:[%s6] sm:$0xff]
    %v1104 = vld [vmem:[%s6 + $0x8] sm:$0xff]
    %v1105 = vld [vmem:[%s6 + $0x10] sm:$0xff]
    %v1106 = vld [vmem:[%s6 + $0x18] sm:$0xff]
    %v1108 = vsel %vm311, %v1102, 0
    %1110 = vmatprep.subr.mxu0 0.0
    %1111 = vmatpush1.msra.mxu0 0.0
    %1112 = vmatprep.subr.mxu0 0.0
    %1113 = vmatpush1.msra.mxu0 0.0
    %1114 = vmatprep.subr.mxu0 0.0
    %1115 = vmatpush1.msra.mxu0 0.0
    %1116 = vmatprep.subr.mxu0 0.0
    %1117 = vmatpush1.msra.mxu0 0.0
    %1118 = vmatprep.subr.mxu0 0.0
    %1119 = vmatpush1.msra.mxu0 0.0
    %1120 = vmatprep.subr.mxu0 0.0
    %1121 = vmatpush1.msra.mxu0 0.0
    %1122 = vmatprep.subr.mxu0 0.0
    %1123 = vmatpush1.msra.mxu0 0.0
    %1124 = vmatprep.subr.mxu0 0.0
    %1125 = vmatpush1.msra.mxu0 0.0
    %1126 = vmatprep.subr.mxu0 0.0
    %1127 = vmatpush1.msra.mxu0 0.0
    %1128 = vmatprep.subr.mxu0 0.0
    %1129 = vmatpush1.msra.mxu0 0.0
    %1130 = vmatprep.subr.mxu0 0.0
    %1131 = vmatpush1.msra.mxu0 0.0
    %1132 = vmatprep.subr.mxu0 0.0
    %1133 = vmatpush1.msra.mxu0 0.0
    %1134 = vmatprep.subr.mxu0 0.0
    %1135 = vmatpush1.msra.mxu0 %v1106
    %1136 = vmatprep.subr.mxu0 0.0
    %1137 = vmatpush1.msra.mxu0 %v1105
    %1138 = vmatprep.subr.mxu0 0.0
    %1139 = vmatpush1.msra.mxu0 %v1104
    %1140 = vmatprep.subr.mxu0 0.0
    %1141 = vmatpush1.msra.mxu0 %v1103
    %1142 = vmatprep.subr.mxu0 0.0
    %1143 = vmatpush2.msra.mxu0 0.0
    %1144 = vmatprep.subr.mxu0 0.0
    %1145 = vmatpush2.msra.mxu0 0.0
    %1146 = vmatprep.subr.mxu0 0.0
    %1147 = vmatpush2.msra.mxu0 0.0
    %1148 = vmatprep.subr.mxu0 0.0
    %1149 = vmatpush2.msra.mxu0 0.0
    %1150 = vmatprep.subr.mxu0 0.0
    %1151 = vmatpush2.msra.mxu0 0.0
    %1152 = vmatprep.subr.mxu0 0.0
    %1153 = vmatpush2.msra.mxu0 0.0
    %1154 = vmatprep.subr.mxu0 0.0
    %1155 = vmatpush2.msra.mxu0 0.0
    %1156 = vmatprep.subr.mxu0 0.0
    %1157 = vmatpush2.msra.mxu0 0.0
    %1158 = vmatprep.subr.mxu0 0.0
    %1159 = vmatpush2.msra.mxu0 0.0
    %1160 = vmatprep.subr.mxu0 0.0
    %1161 = vmatpush2.msra.mxu0 0.0
    %1162 = vmatprep.subr.mxu0 0.0
    %1163 = vmatpush2.msra.mxu0 0.0
    %1164 = vmatprep.subr.mxu0 0.0
    %1165 = vmatpush2.msra.mxu0 0.0
    %1166 = vmatprep.subr.mxu0 0.0
    %1167 = vmatpush2.msra.mxu0 0.0
    %1168 = vmatprep.subr.mxu0 0.0
    %1169 = vmatpush2.msra.mxu0 0.0
    %1170 = vmatprep.subr.mxu0 0.0
    %1171 = vmatpush2.msra.mxu0 0.0
    %1172 = vmatprep.subr.mxu0 0.0
    %1173 = vmatpush2.msra.mxu0 0.0
    %1174 = vmatprep.mubr.f32.mxu0 0.0
    %1175 = vmatmul.mubr.f32.gmra.mxu0 %v1108
    %v1176 = vpop.f32.mrf.mxu0
    %v1177 = vadd.f32 0.0, %v1176
    %v1178 = vpop.f32.mrf.mxu0
    %1179 = vdwg.mxu0
    %1180 = vrot.lane.b32.xlu0 %v883, 64
    %v1181 = vpop.permute.xlu0 %1180
    %v1183 = vsel %vm311, %v1177, %v1181
    %v1185 = vsel %vm390, %v1183, 0
    %1187 = vmatprep.subr.mxu0 0.0
    %1188 = vmatpush1.msra.mxu0 0.0
    %1189 = vmatprep.subr.mxu0 0.0
    %1190 = vmatpush1.msra.mxu0 0.0
    %1191 = vmatprep.subr.mxu0 0.0
    %1192 = vmatpush1.msra.mxu0 0.0
    %1193 = vmatprep.subr.mxu0 0.0
    %1194 = vmatpush1.msra.mxu0 0.0
    %1195 = vmatprep.subr.mxu0 0.0
    %1196 = vmatpush1.msra.mxu0 0.0
    %1197 = vmatprep.subr.mxu0 0.0
    %1198 = vmatpush1.msra.mxu0 0.0
    %1199 = vmatprep.subr.mxu0 0.0
    %1200 = vmatpush1.msra.mxu0 0.0
    %1201 = vmatprep.subr.mxu0 0.0
    %1202 = vmatpush1.msra.mxu0 0.0
    %1203 = vmatprep.subr.mxu0 0.0
    %1204 = vmatpush1.msra.mxu0 %v291
    %1205 = vmatprep.subr.mxu0 0.0
    %1206 = vmatpush1.msra.mxu0 %v290
    %1207 = vmatprep.subr.mxu0 0.0
    %1208 = vmatpush1.msra.mxu0 %v289
    %1209 = vmatprep.subr.mxu0 0.0
    %1210 = vmatpush1.msra.mxu0 %v288
    %1211 = vmatprep.subr.mxu0 0.0
    %1212 = vmatpush1.msra.mxu0 %v287
    %1213 = vmatprep.subr.mxu0 0.0
    %1214 = vmatpush1.msra.mxu0 %v286
    %1215 = vmatprep.subr.mxu0 0.0
    %1216 = vmatpush1.msra.mxu0 %v285
    %1217 = vmatprep.subr.mxu0 0.0
    %1218 = vmatpush1.msra.mxu0 %v284
    %1219 = vmatprep.subr.mxu0 0.0
    %1220 = vmatpush2.msra.mxu0 0.0
    %1221 = vmatprep.subr.mxu0 0.0
    %1222 = vmatpush2.msra.mxu0 0.0
    %1223 = vmatprep.subr.mxu0 0.0
    %1224 = vmatpush2.msra.mxu0 0.0
    %1225 = vmatprep.subr.mxu0 0.0
    %1226 = vmatpush2.msra.mxu0 0.0
    %1227 = vmatprep.subr.mxu0 0.0
    %1228 = vmatpush2.msra.mxu0 0.0
    %1229 = vmatprep.subr.mxu0 0.0
    %1230 = vmatpush2.msra.mxu0 0.0
    %1231 = vmatprep.subr.mxu0 0.0
    %1232 = vmatpush2.msra.mxu0 0.0
    %1233 = vmatprep.subr.mxu0 0.0
    %1234 = vmatpush2.msra.mxu0 0.0
    %1235 = vmatprep.subr.mxu0 0.0
    %1236 = vmatpush2.msra.mxu0 0.0
    %1237 = vmatprep.subr.mxu0 0.0
    %1238 = vmatpush2.msra.mxu0 0.0
    %1239 = vmatprep.subr.mxu0 0.0
    %1240 = vmatpush2.msra.mxu0 0.0
    %1241 = vmatprep.subr.mxu0 0.0
    %1242 = vmatpush2.msra.mxu0 0.0
    %1243 = vmatprep.subr.mxu0 0.0
    %1244 = vmatpush2.msra.mxu0 0.0
    %1245 = vmatprep.subr.mxu0 0.0
    %1246 = vmatpush2.msra.mxu0 0.0
    %1247 = vmatprep.subr.mxu0 0.0
    %1248 = vmatpush2.msra.mxu0 0.0
    %1249 = vmatprep.subr.mxu0 0.0
    %1250 = vmatpush2.msra.mxu0 0.0
    %1251 = vmatprep.mubr.f32.mxu0 0.0
    %1252 = vmatmul.mubr.f32.gmra.mxu0 %v1185
    %v1253 = vpop.f32.mrf.mxu0
    %v1254 = vadd.f32 %v292, %v1253
    %v1255 = vpop.f32.mrf.mxu0
    %1256 = vdwg.mxu0
    %v1257 = vxor.u32 %v1254, 2147483648
    %v1258 = vmul.f32 %v1257, 1.442695
    %v1259 = vpow.pop %v1258
    %v1260 = vadd.f32 %v1259, 1.0
    %v1261 = vrcp.pop %v1260
    %v1262 = vmul.f32 1.0, %v1261
    %v1263 = vtanh.pop %v1254
    %v1264 = vmul.f32 %v1262, %v877
    %1266 = vrot.lane.b32.xlu0 %v1263, 64
    %v1267 = vpop.permute.xlu0 %1266
    %v1269 = vmul.f32 %v1262, %v1267
    %1271 = vrot.lane.b32.xlu0 %v1269, 32
    %v1272 = vpop.permute.xlu0 %1271
    %v1274 = vadd.f32 %v1264, %v1272
    %v1275 = vtanh.pop %v1274
    %1277 = vrot.lane.b32.xlu0 %v1275, 64
    %v1278 = vpop.permute.xlu0 %1277
    %v1280 = vmul.f32 %v1262, %v1278
    %1282 = vrot.lane.b32.xlu0 %v1280, 32
    %v1283 = vpop.permute.xlu0 %1282
    %1285 = vrot.lane.b32.xlu0 %v988, 64
    %v1286 = vpop.permute.xlu0 %1285
    %v1288 = vsel %vm311, %v1283, %v1286
    %v1290 = vsel %vm390, %v1288, 0
    %1292 = vmatprep.subr.mxu0 0.0
    %1293 = vmatpush1.msra.mxu0 0.0
    %1294 = vmatprep.subr.mxu0 0.0
    %1295 = vmatpush1.msra.mxu0 0.0
    %1296 = vmatprep.subr.mxu0 0.0
    %1297 = vmatpush1.msra.mxu0 0.0
    %1298 = vmatprep.subr.mxu0 0.0
    %1299 = vmatpush1.msra.mxu0 0.0
    %1300 = vmatprep.subr.mxu0 0.0
    %1301 = vmatpush1.msra.mxu0 0.0
    %1302 = vmatprep.subr.mxu0 0.0
    %1303 = vmatpush1.msra.mxu0 0.0
    %1304 = vmatprep.subr.mxu0 0.0
    %1305 = vmatpush1.msra.mxu0 0.0
    %1306 = vmatprep.subr.mxu0 0.0
    %1307 = vmatpush1.msra.mxu0 0.0
    %1308 = vmatprep.subr.mxu0 0.0
    %1309 = vmatpush1.msra.mxu0 %v301
    %1310 = vmatprep.subr.mxu0 0.0
    %1311 = vmatpush1.msra.mxu0 %v300
    %1312 = vmatprep.subr.mxu0 0.0
    %1313 = vmatpush1.msra.mxu0 %v299
    %1314 = vmatprep.subr.mxu0 0.0
    %1315 = vmatpush1.msra.mxu0 %v298
    %1316 = vmatprep.subr.mxu0 0.0
    %1317 = vmatpush1.msra.mxu0 %v297
    %1318 = vmatprep.subr.mxu0 0.0
    %1319 = vmatpush1.msra.mxu0 %v296
    %1320 = vmatprep.subr.mxu0 0.0
    %1321 = vmatpush1.msra.mxu0 %v295
    %1322 = vmatprep.subr.mxu0 0.0
    %1323 = vmatpush1.msra.mxu0 %v294
    %1324 = vmatprep.subr.mxu0 0.0
    %1325 = vmatpush2.msra.mxu0 0.0
    %1326 = vmatprep.subr.mxu0 0.0
    %1327 = vmatpush2.msra.mxu0 0.0
    %1328 = vmatprep.subr.mxu0 0.0
    %1329 = vmatpush2.msra.mxu0 0.0
    %1330 = vmatprep.subr.mxu0 0.0
    %1331 = vmatpush2.msra.mxu0 0.0
    %1332 = vmatprep.subr.mxu0 0.0
    %1333 = vmatpush2.msra.mxu0 0.0
    %1334 = vmatprep.subr.mxu0 0.0
    %1335 = vmatpush2.msra.mxu0 0.0
    %1336 = vmatprep.subr.mxu0 0.0
    %1337 = vmatpush2.msra.mxu0 0.0
    %1338 = vmatprep.subr.mxu0 0.0
    %1339 = vmatpush2.msra.mxu0 0.0
    %1340 = vmatprep.subr.mxu0 0.0
    %1341 = vmatpush2.msra.mxu0 0.0
    %1342 = vmatprep.subr.mxu0 0.0
    %1343 = vmatpush2.msra.mxu0 0.0
    %1344 = vmatprep.subr.mxu0 0.0
    %1345 = vmatpush2.msra.mxu0 0.0
    %1346 = vmatprep.subr.mxu0 0.0
    %1347 = vmatpush2.msra.mxu0 0.0
    %1348 = vmatprep.subr.mxu0 0.0
    %1349 = vmatpush2.msra.mxu0 0.0
    %1350 = vmatprep.subr.mxu0 0.0
    %1351 = vmatpush2.msra.mxu0 0.0
    %1352 = vmatprep.subr.mxu0 0.0
    %1353 = vmatpush2.msra.mxu0 0.0
    %1354 = vmatprep.subr.mxu0 0.0
    %1355 = vmatpush2.msra.mxu0 0.0
    %1356 = vmatprep.mubr.f32.mxu0 0.0
    %1357 = vmatmul.mubr.f32.gmra.mxu0 %v1290
    %v1358 = vpop.f32.mrf.mxu0
    %v1359 = vadd.f32 %v303, %v1358
    %v1360 = vpop.f32.mrf.mxu0
    %1361 = vdwg.mxu0
    %v1362 = vxor.u32 %v1359, 2147483648
    %v1363 = vmul.f32 %v1362, 1.442695
    %v1364 = vpow.pop %v1363
    %v1365 = vadd.f32 %v1364, 1.0
    %v1366 = vrcp.pop %v1365
    %v1367 = vmul.f32 1.0, %v1366
    %v1368 = vtanh.pop %v1359
    %v1369 = vmul.f32 %v1367, %v982
    %1371 = vrot.lane.b32.xlu0 %v1368, 64
    %v1372 = vpop.permute.xlu0 %1371
    %v1374 = vmul.f32 %v1367, %v1372
    %1376 = vrot.lane.b32.xlu0 %v1374, 32
    %v1377 = vpop.permute.xlu0 %1376
    %v1379 = vadd.f32 %v1369, %v1377
    %v1380 = vtanh.pop %v1379
    %1382 = vrot.lane.b32.xlu0 %v1380, 64
    %v1383 = vpop.permute.xlu0 %1382
    %v1385 = vmul.f32 %v1367, %v1383
    %v1386 = vld [vmem:[%s7] sm:$0xff]
    %v1387 = vld [vmem:[%s7 + $0x8] sm:$0xff]
    %v1388 = vld [vmem:[%s7 + $0x10] sm:$0xff]
    %v1389 = vld [vmem:[%s7 + $0x18] sm:$0xff]
    %v1390 = vld [vmem:[%s8] sm:$0x1]
    %1392 = vrot.lane.b32.xlu0 %v1385, 32
    %v1393 = vpop.permute.xlu0 %1392
    %v1394 = vsel %vm311, %v1393, 0
    %1396 = vmatprep.subr.mxu0 0.0
    %1397 = vmatpush1.msra.mxu0 0.0
    %1398 = vmatprep.subr.mxu0 0.0
    %1399 = vmatpush1.msra.mxu0 0.0
    %1400 = vmatprep.subr.mxu0 0.0
    %1401 = vmatpush1.msra.mxu0 0.0
    %1402 = vmatprep.subr.mxu0 0.0
    %1403 = vmatpush1.msra.mxu0 0.0
    %1404 = vmatprep.subr.mxu0 0.0
    %1405 = vmatpush1.msra.mxu0 0.0
    %1406 = vmatprep.subr.mxu0 0.0
    %1407 = vmatpush1.msra.mxu0 0.0
    %1408 = vmatprep.subr.mxu0 0.0
    %1409 = vmatpush1.msra.mxu0 0.0
    %1410 = vmatprep.subr.mxu0 0.0
    %1411 = vmatpush1.msra.mxu0 0.0
    %1412 = vmatprep.subr.mxu0 0.0
    %1413 = vmatpush1.msra.mxu0 0.0
    %1414 = vmatprep.subr.mxu0 0.0
    %1415 = vmatpush1.msra.mxu0 0.0
    %1416 = vmatprep.subr.mxu0 0.0
    %1417 = vmatpush1.msra.mxu0 0.0
    %1418 = vmatprep.subr.mxu0 0.0
    %1419 = vmatpush1.msra.mxu0 0.0
    %1420 = vmatprep.subr.mxu0 0.0
    %1421 = vmatpush1.msra.mxu0 %v1389
    %1422 = vmatprep.subr.mxu0 0.0
    %1423 = vmatpush1.msra.mxu0 %v1388
    %1424 = vmatprep.subr.mxu0 0.0
    %1425 = vmatpush1.msra.mxu0 %v1387
    %1426 = vmatprep.subr.mxu0 0.0
    %1427 = vmatpush1.msra.mxu0 %v1386
    %1428 = vmatprep.subr.mxu0 0.0
    %1429 = vmatpush2.msra.mxu0 0.0
    %1430 = vmatprep.subr.mxu0 0.0
    %1431 = vmatpush2.msra.mxu0 0.0
    %1432 = vmatprep.subr.mxu0 0.0
    %1433 = vmatpush2.msra.mxu0 0.0
    %1434 = vmatprep.subr.mxu0 0.0
    %1435 = vmatpush2.msra.mxu0 0.0
    %1436 = vmatprep.subr.mxu0 0.0
    %1437 = vmatpush2.msra.mxu0 0.0
    %1438 = vmatprep.subr.mxu0 0.0
    %1439 = vmatpush2.msra.mxu0 0.0
    %1440 = vmatprep.subr.mxu0 0.0
    %1441 = vmatpush2.msra.mxu0 0.0
    %1442 = vmatprep.subr.mxu0 0.0
    %1443 = vmatpush2.msra.mxu0 0.0
    %1444 = vmatprep.subr.mxu0 0.0
    %1445 = vmatpush2.msra.mxu0 0.0
    %1446 = vmatprep.subr.mxu0 0.0
    %1447 = vmatpush2.msra.mxu0 0.0
    %1448 = vmatprep.subr.mxu0 0.0
    %1449 = vmatpush2.msra.mxu0 0.0
    %1450 = vmatprep.subr.mxu0 0.0
    %1451 = vmatpush2.msra.mxu0 0.0
    %1452 = vmatprep.subr.mxu0 0.0
    %1453 = vmatpush2.msra.mxu0 0.0
    %1454 = vmatprep.subr.mxu0 0.0
    %1455 = vmatpush2.msra.mxu0 0.0
    %1456 = vmatprep.subr.mxu0 0.0
    %1457 = vmatpush2.msra.mxu0 0.0
    %1458 = vmatprep.subr.mxu0 0.0
    %1459 = vmatpush2.msra.mxu0 0.0
    %1460 = vmatprep.mubr.f32.mxu0 0.0
    %1461 = vmatmul.mubr.f32.gmra.mxu0 %v1394
    %v1462 = vpop.f32.mrf.mxu0
    %v1463 = vadd.f32 %v1390, %v1462
    %v1464 = vpop.f32.mrf.mxu0
    %1465 = vdwg.mxu0
    %1466 = vst [vmem:[#allocation3 + $0x2] sm:$0x1] %v1463
    %v1467 = vld [vmem:[%s9 + $0x2] sm:$0x1]
    %v1468 = vadd.f32 %v1463, %v1467
    %v1469 = vsel %vm677, %v1468, -inf
    %1470 = vmax.xlane.f32.xlu0 %v1469
    %v1471 = vpop.xlane.xlu0 %1470
    %vm1472 = vcmp.ge.f32.partialorder %v1468, %v1471
    %v1473 = vsel %vm1472, %v283, 128
    %v1474 = vsel %vm677, %v1473, 2147483647
    %v1475 = vand.u32 %v1474, 65535
    %v1476 = vshra.s32 %v1474, 16
    %v1477 = vcvt.s32.f32 %v1475
    %v1478 = vcvt.s32.f32 %v1476
    %1479 = vmin.xlane.f32.xlu0 %v1478
    %v1480 = vpop.xlane.xlu0 %1479
    %vm1481 = vcmp.eq.f32.partialorder %v1478, %v1480
    %v1482 = vsel %vm1481, %v1477, inf
    %1483 = vmin.xlane.f32.xlu0 %v1482
    %v1484 = vpop.xlane.xlu0 %1483
    %v1485 = vcvt.f32.s32 %v1484
    %v1486 = vcvt.f32.s32 %v1480
    %v1487 = vshll.u32 %v1486, 16
    %v1488 = vadd.s32 %v1487, %v1485
    %vm1489 = vcmp.gt.s32.totalorder %v1099, 0
    %v1490 = vsel %vm1489, 29, %v1488
    %vm1491 = vcmp.eq.s32.totalorder %v283, 2
    %v1492 = vsel %vm1491, %v1490, %v1095
    %vm1493 = vcmp.eq.s32.totalorder %v1490, 29
    %v1494 = vsel %vm1493, 1, 0
    %vm1495 = vcmp.gt.s32.totalorder %v1099, %v1494
    %v1496 = vsel %vm1495, %v1099, %v1494
    %vm1497 = vcmp.eq.s32.totalorder %v283, %v1490
    %v1498 = vsel %vm1497, 1, 0
    %v1499 = vcvt.s32.f32 %v1498
    %v1500 = vld [vmem:[%s6] sm:$0xff]
    %v1501 = vld [vmem:[%s6 + $0x8] sm:$0xff]
    %v1502 = vld [vmem:[%s6 + $0x10] sm:$0xff]
    %v1503 = vld [vmem:[%s6 + $0x18] sm:$0xff]
    %v1505 = vsel %vm311, %v1499, 0
    %1507 = vmatprep.subr.mxu0 0.0
    %1508 = vmatpush1.msra.mxu0 0.0
    %1509 = vmatprep.subr.mxu0 0.0
    %1510 = vmatpush1.msra.mxu0 0.0
    %1511 = vmatprep.subr.mxu0 0.0
    %1512 = vmatpush1.msra.mxu0 0.0
    %1513 = vmatprep.subr.mxu0 0.0
    %1514 = vmatpush1.msra.mxu0 0.0
    %1515 = vmatprep.subr.mxu0 0.0
    %1516 = vmatpush1.msra.mxu0 0.0
    %1517 = vmatprep.subr.mxu0 0.0
    %1518 = vmatpush1.msra.mxu0 0.0
    %1519 = vmatprep.subr.mxu0 0.0
    %1520 = vmatpush1.msra.mxu0 0.0
    %1521 = vmatprep.subr.mxu0 0.0
    %1522 = vmatpush1.msra.mxu0 0.0
    %1523 = vmatprep.subr.mxu0 0.0
    %1524 = vmatpush1.msra.mxu0 0.0
    %1525 = vmatprep.subr.mxu0 0.0
    %1526 = vmatpush1.msra.mxu0 0.0
    %1527 = vmatprep.subr.mxu0 0.0
    %1528 = vmatpush1.msra.mxu0 0.0
    %1529 = vmatprep.subr.mxu0 0.0
    %1530 = vmatpush1.msra.mxu0 0.0
    %1531 = vmatprep.subr.mxu0 0.0
    %1532 = vmatpush1.msra.mxu0 %v1503
    %1533 = vmatprep.subr.mxu0 0.0
    %1534 = vmatpush1.msra.mxu0 %v1502
    %1535 = vmatprep.subr.mxu0 0.0
    %1536 = vmatpush1.msra.mxu0 %v1501
    %1537 = vmatprep.subr.mxu0 0.0
    %1538 = vmatpush1.msra.mxu0 %v1500
    %1539 = vmatprep.subr.mxu0 0.0
    %1540 = vmatpush2.msra.mxu0 0.0
    %1541 = vmatprep.subr.mxu0 0.0
    %1542 = vmatpush2.msra.mxu0 0.0
    %1543 = vmatprep.subr.mxu0 0.0
    %1544 = vmatpush2.msra.mxu0 0.0
    %1545 = vmatprep.subr.mxu0 0.0
    %1546 = vmatpush2.msra.mxu0 0.0
    %1547 = vmatprep.subr.mxu0 0.0
    %1548 = vmatpush2.msra.mxu0 0.0
    %1549 = vmatprep.subr.mxu0 0.0
    %1550 = vmatpush2.msra.mxu0 0.0
    %1551 = vmatprep.subr.mxu0 0.0
    %1552 = vmatpush2.msra.mxu0 0.0
    %1553 = vmatprep.subr.mxu0 0.0
    %1554 = vmatpush2.msra.mxu0 0.0
    %1555 = vmatprep.subr.mxu0 0.0
    %1556 = vmatpush2.msra.mxu0 0.0
    %1557 = vmatprep.subr.mxu0 0.0
    %1558 = vmatpush2.msra.mxu0 0.0
    %1559 = vmatprep.subr.mxu0 0.0
    %1560 = vmatpush2.msra.mxu0 0.0
    %1561 = vmatprep.subr.mxu0 0.0
    %1562 = vmatpush2.msra.mxu0 0.0
    %1563 = vmatprep.subr.mxu0 0.0
    %1564 = vmatpush2.msra.mxu0 0.0
    %1565 = vmatprep.subr.mxu0 0.0
    %1566 = vmatpush2.msra.mxu0 0.0
    %1567 = vmatprep.subr.mxu0 0.0
    %1568 = vmatpush2.msra.mxu0 0.0
    %1569 = vmatprep.subr.mxu0 0.0
    %1570 = vmatpush2.msra.mxu0 0.0
    %1571 = vmatprep.mubr.f32.mxu0 0.0
    %1572 = vmatmul.mubr.f32.gmra.mxu0 %v1505
    %v1573 = vpop.f32.mrf.mxu0
    %v1574 = vadd.f32 0.0, %v1573
    %v1575 = vpop.f32.mrf.mxu0
    %1576 = vdwg.mxu0
    %1577 = vrot.lane.b32.xlu0 %v1280, 64
    %v1578 = vpop.permute.xlu0 %1577
    %v1580 = vsel %vm311, %v1574, %v1578
    %v1582 = vsel %vm390, %v1580, 0
    %1584 = vmatprep.subr.mxu0 0.0
    %1585 = vmatpush1.msra.mxu0 0.0
    %1586 = vmatprep.subr.mxu0 0.0
    %1587 = vmatpush1.msra.mxu0 0.0
    %1588 = vmatprep.subr.mxu0 0.0
    %1589 = vmatpush1.msra.mxu0 0.0
    %1590 = vmatprep.subr.mxu0 0.0
    %1591 = vmatpush1.msra.mxu0 0.0
    %1592 = vmatprep.subr.mxu0 0.0
    %1593 = vmatpush1.msra.mxu0 0.0
    %1594 = vmatprep.subr.mxu0 0.0
    %1595 = vmatpush1.msra.mxu0 0.0
    %1596 = vmatprep.subr.mxu0 0.0
    %1597 = vmatpush1.msra.mxu0 0.0
    %1598 = vmatprep.subr.mxu0 0.0
    %1599 = vmatpush1.msra.mxu0 0.0
    %1600 = vmatprep.subr.mxu0 0.0
    %1601 = vmatpush1.msra.mxu0 %v291
    %1602 = vmatprep.subr.mxu0 0.0
    %1603 = vmatpush1.msra.mxu0 %v290
    %1604 = vmatprep.subr.mxu0 0.0
    %1605 = vmatpush1.msra.mxu0 %v289
    %1606 = vmatprep.subr.mxu0 0.0
    %1607 = vmatpush1.msra.mxu0 %v288
    %1608 = vmatprep.subr.mxu0 0.0
    %1609 = vmatpush1.msra.mxu0 %v287
    %1610 = vmatprep.subr.mxu0 0.0
    %1611 = vmatpush1.msra.mxu0 %v286
    %1612 = vmatprep.subr.mxu0 0.0
    %1613 = vmatpush1.msra.mxu0 %v285
    %1614 = vmatprep.subr.mxu0 0.0
    %1615 = vmatpush1.msra.mxu0 %v284
    %1616 = vmatprep.subr.mxu0 0.0
    %1617 = vmatpush2.msra.mxu0 0.0
    %1618 = vmatprep.subr.mxu0 0.0
    %1619 = vmatpush2.msra.mxu0 0.0
    %1620 = vmatprep.subr.mxu0 0.0
    %1621 = vmatpush2.msra.mxu0 0.0
    %1622 = vmatprep.subr.mxu0 0.0
    %1623 = vmatpush2.msra.mxu0 0.0
    %1624 = vmatprep.subr.mxu0 0.0
    %1625 = vmatpush2.msra.mxu0 0.0
    %1626 = vmatprep.subr.mxu0 0.0
    %1627 = vmatpush2.msra.mxu0 0.0
    %1628 = vmatprep.subr.mxu0 0.0
    %1629 = vmatpush2.msra.mxu0 0.0
    %1630 = vmatprep.subr.mxu0 0.0
    %1631 = vmatpush2.msra.mxu0 0.0
    %1632 = vmatprep.subr.mxu0 0.0
    %1633 = vmatpush2.msra.mxu0 0.0
    %1634 = vmatprep.subr.mxu0 0.0
    %1635 = vmatpush2.msra.mxu0 0.0
    %1636 = vmatprep.subr.mxu0 0.0
    %1637 = vmatpush2.msra.mxu0 0.0
    %1638 = vmatprep.subr.mxu0 0.0
    %1639 = vmatpush2.msra.mxu0 0.0
    %1640 = vmatprep.subr.mxu0 0.0
    %1641 = vmatpush2.msra.mxu0 0.0
    %1642 = vmatprep.subr.mxu0 0.0
    %1643 = vmatpush2.msra.mxu0 0.0
    %1644 = vmatprep.subr.mxu0 0.0
    %1645 = vmatpush2.msra.mxu0 0.0
    %1646 = vmatprep.subr.mxu0 0.0
    %1647 = vmatpush2.msra.mxu0 0.0
    %1648 = vmatprep.mubr.f32.mxu0 0.0
    %1649 = vmatmul.mubr.f32.gmra.mxu0 %v1582
    %v1650 = vpop.f32.mrf.mxu0
    %v1651 = vadd.f32 %v292, %v1650
    %v1652 = vpop.f32.mrf.mxu0
    %1653 = vdwg.mxu0
    %v1654 = vxor.u32 %v1651, 2147483648
    %v1655 = vmul.f32 %v1654, 1.442695
    %v1656 = vpow.pop %v1655
    %v1657 = vadd.f32 %v1656, 1.0
    %v1658 = vrcp.pop %v1657
    %v1659 = vmul.f32 1.0, %v1658
    %v1660 = vtanh.pop %v1651
    %v1661 = vmul.f32 %v1659, %v1274
    %1663 = vrot.lane.b32.xlu0 %v1660, 64
    %v1664 = vpop.permute.xlu0 %1663
    %v1666 = vmul.f32 %v1659, %v1664
    %1668 = vrot.lane.b32.xlu0 %v1666, 32
    %v1669 = vpop.permute.xlu0 %1668
    %v1671 = vadd.f32 %v1661, %v1669
    %v1672 = vtanh.pop %v1671
    %1674 = vrot.lane.b32.xlu0 %v1672, 64
    %v1675 = vpop.permute.xlu0 %1674
    %v1677 = vmul.f32 %v1659, %v1675
    %1679 = vrot.lane.b32.xlu0 %v1677, 32
    %v1680 = vpop.permute.xlu0 %1679
    %1682 = vrot.lane.b32.xlu0 %v1385, 64
    %v1683 = vpop.permute.xlu0 %1682
    %v1685 = vsel %vm311, %v1680, %v1683
    %v1687 = vsel %vm390, %v1685, 0
    %1689 = vmatprep.subr.mxu0 0.0
    %1690 = vmatpush1.msra.mxu0 0.0
    %1691 = vmatprep.subr.mxu0 0.0
    %1692 = vmatpush1.msra.mxu0 0.0
    %1693 = vmatprep.subr.mxu0 0.0
    %1694 = vmatpush1.msra.mxu0 0.0
    %1695 = vmatprep.subr.mxu0 0.0
    %1696 = vmatpush1.msra.mxu0 0.0
    %1697 = vmatprep.subr.mxu0 0.0
    %1698 = vmatpush1.msra.mxu0 0.0
    %1699 = vmatprep.subr.mxu0 0.0
    %1700 = vmatpush1.msra.mxu0 0.0
    %1701 = vmatprep.subr.mxu0 0.0
    %1702 = vmatpush1.msra.mxu0 0.0
    %1703 = vmatprep.subr.mxu0 0.0
    %1704 = vmatpush1.msra.mxu0 0.0
    %1705 = vmatprep.subr.mxu0 0.0
    %1706 = vmatpush1.msra.mxu0 %v301
    %1707 = vmatprep.subr.mxu0 0.0
    %1708 = vmatpush1.msra.mxu0 %v300
    %1709 = vmatprep.subr.mxu0 0.0
    %1710 = vmatpush1.msra.mxu0 %v299
    %1711 = vmatprep.subr.mxu0 0.0
    %1712 = vmatpush1.msra.mxu0 %v298
    %1713 = vmatprep.subr.mxu0 0.0
    %1714 = vmatpush1.msra.mxu0 %v297
    %1715 = vmatprep.subr.mxu0 0.0
    %1716 = vmatpush1.msra.mxu0 %v296
    %1717 = vmatprep.subr.mxu0 0.0
    %1718 = vmatpush1.msra.mxu0 %v295
    %1719 = vmatprep.subr.mxu0 0.0
    %1720 = vmatpush1.msra.mxu0 %v294
    %1721 = vmatprep.subr.mxu0 0.0
    %1722 = vmatpush2.msra.mxu0 0.0
    %1723 = vmatprep.subr.mxu0 0.0
    %1724 = vmatpush2.msra.mxu0 0.0
    %1725 = vmatprep.subr.mxu0 0.0
    %1726 = vmatpush2.msra.mxu0 0.0
    %1727 = vmatprep.subr.mxu0 0.0
    %1728 = vmatpush2.msra.mxu0 0.0
    %1729 = vmatprep.subr.mxu0 0.0
    %1730 = vmatpush2.msra.mxu0 0.0
    %1731 = vmatprep.subr.mxu0 0.0
    %1732 = vmatpush2.msra.mxu0 0.0
    %1733 = vmatprep.subr.mxu0 0.0
    %1734 = vmatpush2.msra.mxu0 0.0
    %1735 = vmatprep.subr.mxu0 0.0
    %1736 = vmatpush2.msra.mxu0 0.0
    %1737 = vmatprep.subr.mxu0 0.0
    %1738 = vmatpush2.msra.mxu0 0.0
    %1739 = vmatprep.subr.mxu0 0.0
    %1740 = vmatpush2.msra.mxu0 0.0
    %1741 = vmatprep.subr.mxu0 0.0
    %1742 = vmatpush2.msra.mxu0 0.0
    %1743 = vmatprep.subr.mxu0 0.0
    %1744 = vmatpush2.msra.mxu0 0.0
    %1745 = vmatprep.subr.mxu0 0.0
    %1746 = vmatpush2.msra.mxu0 0.0
    %1747 = vmatprep.subr.mxu0 0.0
    %1748 = vmatpush2.msra.mxu0 0.0
    %1749 = vmatprep.subr.mxu0 0.0
    %1750 = vmatpush2.msra.mxu0 0.0
    %1751 = vmatprep.subr.mxu0 0.0
    %1752 = vmatpush2.msra.mxu0 0.0
    %1753 = vmatprep.mubr.f32.mxu0 0.0
    %1754 = vmatmul.mubr.f32.gmra.mxu0 %v1687
    %v1755 = vpop.f32.mrf.mxu0
    %v1756 = vadd.f32 %v303, %v1755
    %v1757 = vpop.f32.mrf.mxu0
    %1758 = vdwg.mxu0
    %v1759 = vxor.u32 %v1756, 2147483648
    %v1760 = vmul.f32 %v1759, 1.442695
    %v1761 = vpow.pop %v1760
    %v1762 = vadd.f32 %v1761, 1.0
    %v1763 = vrcp.pop %v1762
    %v1764 = vmul.f32 1.0, %v1763
    %v1765 = vtanh.pop %v1756
    %v1766 = vmul.f32 %v1764, %v1379
    %1768 = vrot.lane.b32.xlu0 %v1765, 64
    %v1769 = vpop.permute.xlu0 %1768
    %v1771 = vmul.f32 %v1764, %v1769
    %1773 = vrot.lane.b32.xlu0 %v1771, 32
    %v1774 = vpop.permute.xlu0 %1773
    %v1776 = vadd.f32 %v1766, %v1774
    %v1777 = vtanh.pop %v1776
    %1779 = vrot.lane.b32.xlu0 %v1777, 64
    %v1780 = vpop.permute.xlu0 %1779
    %v1782 = vmul.f32 %v1764, %v1780
    %v1783 = vld [vmem:[%s7] sm:$0xff]
    %v1784 = vld [vmem:[%s7 + $0x8] sm:$0xff]
    %v1785 = vld [vmem:[%s7 + $0x10] sm:$0xff]
    %v1786 = vld [vmem:[%s7 + $0x18] sm:$0xff]
    %v1787 = vld [vmem:[%s8] sm:$0x1]
    %1789 = vrot.lane.b32.xlu0 %v1782, 32
    %v1790 = vpop.permute.xlu0 %1789
    %v1791 = vsel %vm311, %v1790, 0
    %1793 = vmatprep.subr.mxu0 0.0
    %1794 = vmatpush1.msra.mxu0 0.0
    %1795 = vmatprep.subr.mxu0 0.0
    %1796 = vmatpush1.msra.mxu0 0.0
    %1797 = vmatprep.subr.mxu0 0.0
    %1798 = vmatpush1.msra.mxu0 0.0
    %1799 = vmatprep.subr.mxu0 0.0
    %1800 = vmatpush1.msra.mxu0 0.0
    %1801 = vmatprep.subr.mxu0 0.0
    %1802 = vmatpush1.msra.mxu0 0.0
    %1803 = vmatprep.subr.mxu0 0.0
    %1804 = vmatpush1.msra.mxu0 0.0
    %1805 = vmatprep.subr.mxu0 0.0
    %1806 = vmatpush1.msra.mxu0 0.0
    %1807 = vmatprep.subr.mxu0 0.0
    %1808 = vmatpush1.msra.mxu0 0.0
    %1809 = vmatprep.subr.mxu0 0.0
    %1810 = vmatpush1.msra.mxu0 0.0
    %1811 = vmatprep.subr.mxu0 0.0
    %1812 = vmatpush1.msra.mxu0 0.0
    %1813 = vmatprep.subr.mxu0 0.0
    %1814 = vmatpush1.msra.mxu0 0.0
    %1815 = vmatprep.subr.mxu0 0.0
    %1816 = vmatpush1.msra.mxu0 0.0
    %1817 = vmatprep.subr.mxu0 0.0
    %1818 = vmatpush1.msra.mxu0 %v1786
    %1819 = vmatprep.subr.mxu0 0.0
    %1820 = vmatpush1.msra.mxu0 %v1785
    %1821 = vmatprep.subr.mxu0 0.0
    %1822 = vmatpush1.msra.mxu0 %v1784
    %1823 = vmatprep.subr.mxu0 0.0
    %1824 = vmatpush1.msra.mxu0 %v1783
    %1825 = vmatprep.subr.mxu0 0.0
    %1826 = vmatpush2.msra.mxu0 0.0
    %1827 = vmatprep.subr.mxu0 0.0
    %1828 = vmatpush2.msra.mxu0 0.0
    %1829 = vmatprep.subr.mxu0 0.0
    %1830 = vmatpush2.msra.mxu0 0.0
    %1831 = vmatprep.subr.mxu0 0.0
    %1832 = vmatpush2.msra.mxu0 0.0
    %1833 = vmatprep.subr.mxu0 0.0
    %1834 = vmatpush2.msra.mxu0 0.0
    %1835 = vmatprep.subr.mxu0 0.0
    %1836 = vmatpush2.msra.mxu0 0.0
    %1837 = vmatprep.subr.mxu0 0.0
    %1838 = vmatpush2.msra.mxu0 0.0
    %1839 = vmatprep.subr.mxu0 0.0
    %1840 = vmatpush2.msra.mxu0 0.0
    %1841 = vmatprep.subr.mxu0 0.0
    %1842 = vmatpush2.msra.mxu0 0.0
    %1843 = vmatprep.subr.mxu0 0.0
    %1844 = vmatpush2.msra.mxu0 0.0
    %1845 = vmatprep.subr.mxu0 0.0
    %1846 = vmatpush2.msra.mxu0 0.0
    %1847 = vmatprep.subr.mxu0 0.0
    %1848 = vmatpush2.msra.mxu0 0.0
    %1849 = vmatprep.subr.mxu0 0.0
    %1850 = vmatpush2.msra.mxu0 0.0
    %1851 = vmatprep.subr.mxu0 0.0
    %1852 = vmatpush2.msra.mxu0 0.0
    %1853 = vmatprep.subr.mxu0 0.0
    %1854 = vmatpush2.msra.mxu0 0.0
    %1855 = vmatprep.subr.mxu0 0.0
    %1856 = vmatpush2.msra.mxu0 0.0
    %1857 = vmatprep.mubr.f32.mxu0 0.0
    %1858 = vmatmul.mubr.f32.gmra.mxu0 %v1791
    %v1859 = vpop.f32.mrf.mxu0
    %v1860 = vadd.f32 %v1787, %v1859
    %v1861 = vpop.f32.mrf.mxu0
    %1862 = vdwg.mxu0
    %1863 = vst [vmem:[#allocation3 + $0x3] sm:$0x1] %v1860
    %v1864 = vld [vmem:[%s9 + $0x3] sm:$0x1]
    %v1865 = vadd.f32 %v1860, %v1864
    %v1866 = vsel %vm677, %v1865, -inf
    %1867 = vmax.xlane.f32.xlu0 %v1866
    %v1868 = vpop.xlane.xlu0 %1867
    %vm1869 = vcmp.ge.f32.partialorder %v1865, %v1868
    %v1870 = vsel %vm1869, %v283, 128
    %v1871 = vsel %vm677, %v1870, 2147483647
    %v1872 = vand.u32 %v1871, 65535
    %v1873 = vshra.s32 %v1871, 16
    %v1874 = vcvt.s32.f32 %v1872
    %v1875 = vcvt.s32.f32 %v1873
    %1876 = vmin.xlane.f32.xlu0 %v1875
    %v1877 = vpop.xlane.xlu0 %1876
    %vm1878 = vcmp.eq.f32.partialorder %v1875, %v1877
    %v1879 = vsel %vm1878, %v1874, inf
    %1880 = vmin.xlane.f32.xlu0 %v1879
    %v1881 = vpop.xlane.xlu0 %1880
    %v1882 = vcvt.f32.s32 %v1881
    %v1883 = vcvt.f32.s32 %v1877
    %v1884 = vshll.u32 %v1883, 16
    %v1885 = vadd.s32 %v1884, %v1882
    %vm1886 = vcmp.gt.s32.totalorder %v1496, 0
    %v1887 = vsel %vm1886, 29, %v1885
    %vm1888 = vcmp.eq.s32.totalorder %v283, 3
    %v1889 = vsel %vm1888, %v1887, %v1492
    %vm1890 = vcmp.eq.s32.totalorder %v1887, 29
    %v1891 = vsel %vm1890, 1, 0
    %vm1892 = vcmp.gt.s32.totalorder %v1496, %v1891
    %v1893 = vsel %vm1892, %v1496, %v1891
    %vm1894 = vcmp.eq.s32.totalorder %v283, %v1887
    %v1895 = vsel %vm1894, 1, 0
    %v1896 = vcvt.s32.f32 %v1895
    %v1897 = vld [vmem:[%s6] sm:$0xff]
    %v1898 = vld [vmem:[%s6 + $0x8] sm:$0xff]
    %v1899 = vld [vmem:[%s6 + $0x10] sm:$0xff]
    %v1900 = vld [vmem:[%s6 + $0x18] sm:$0xff]
    %v1902 = vsel %vm311, %v1896, 0
    %1904 = vmatprep.subr.mxu0 0.0
    %1905 = vmatpush1.msra.mxu0 0.0
    %1906 = vmatprep.subr.mxu0 0.0
    %1907 = vmatpush1.msra.mxu0 0.0
    %1908 = vmatprep.subr.mxu0 0.0
    %1909 = vmatpush1.msra.mxu0 0.0
    %1910 = vmatprep.subr.mxu0 0.0
    %1911 = vmatpush1.msra.mxu0 0.0
    %1912 = vmatprep.subr.mxu0 0.0
    %1913 = vmatpush1.msra.mxu0 0.0
    %1914 = vmatprep.subr.mxu0 0.0
    %1915 = vmatpush1.msra.mxu0 0.0
    %1916 = vmatprep.subr.mxu0 0.0
    %1917 = vmatpush1.msra.mxu0 0.0
    %1918 = vmatprep.subr.mxu0 0.0
    %1919 = vmatpush1.msra.mxu0 0.0
    %1920 = vmatprep.subr.mxu0 0.0
    %1921 = vmatpush1.msra.mxu0 0.0
    %1922 = vmatprep.subr.mxu0 0.0
    %1923 = vmatpush1.msra.mxu0 0.0
    %1924 = vmatprep.subr.mxu0 0.0
    %1925 = vmatpush1.msra.mxu0 0.0
    %1926 = vmatprep.subr.mxu0 0.0
    %1927 = vmatpush1.msra.mxu0 0.0
    %1928 = vmatprep.subr.mxu0 0.0
    %1929 = vmatpush1.msra.mxu0 %v1900
    %1930 = vmatprep.subr.mxu0 0.0
    %1931 = vmatpush1.msra.mxu0 %v1899
    %1932 = vmatprep.subr.mxu0 0.0
    %1933 = vmatpush1.msra.mxu0 %v1898
    %1934 = vmatprep.subr.mxu0 0.0
    %1935 = vmatpush1.msra.mxu0 %v1897
    %1936 = vmatprep.subr.mxu0 0.0
    %1937 = vmatpush2.msra.mxu0 0.0
    %1938 = vmatprep.subr.mxu0 0.0
    %1939 = vmatpush2.msra.mxu0 0.0
    %1940 = vmatprep.subr.mxu0 0.0
    %1941 = vmatpush2.msra.mxu0 0.0
    %1942 = vmatprep.subr.mxu0 0.0
    %1943 = vmatpush2.msra.mxu0 0.0
    %1944 = vmatprep.subr.mxu0 0.0
    %1945 = vmatpush2.msra.mxu0 0.0
    %1946 = vmatprep.subr.mxu0 0.0
    %1947 = vmatpush2.msra.mxu0 0.0
    %1948 = vmatprep.subr.mxu0 0.0
    %1949 = vmatpush2.msra.mxu0 0.0
    %1950 = vmatprep.subr.mxu0 0.0
    %1951 = vmatpush2.msra.mxu0 0.0
    %1952 = vmatprep.subr.mxu0 0.0
    %1953 = vmatpush2.msra.mxu0 0.0
    %1954 = vmatprep.subr.mxu0 0.0
    %1955 = vmatpush2.msra.mxu0 0.0
    %1956 = vmatprep.subr.mxu0 0.0
    %1957 = vmatpush2.msra.mxu0 0.0
    %1958 = vmatprep.subr.mxu0 0.0
    %1959 = vmatpush2.msra.mxu0 0.0
    %1960 = vmatprep.subr.mxu0 0.0
    %1961 = vmatpush2.msra.mxu0 0.0
    %1962 = vmatprep.subr.mxu0 0.0
    %1963 = vmatpush2.msra.mxu0 0.0
    %1964 = vmatprep.subr.mxu0 0.0
    %1965 = vmatpush2.msra.mxu0 0.0
    %1966 = vmatprep.subr.mxu0 0.0
    %1967 = vmatpush2.msra.mxu0 0.0
    %1968 = vmatprep.mubr.f32.mxu0 0.0
    %1969 = vmatmul.mubr.f32.gmra.mxu0 %v1902
    %v1970 = vpop.f32.mrf.mxu0
    %v1971 = vadd.f32 0.0, %v1970
    %v1972 = vpop.f32.mrf.mxu0
    %1973 = vdwg.mxu0
    %1974 = vrot.lane.b32.xlu0 %v1677, 64
    %v1975 = vpop.permute.xlu0 %1974
    %v1977 = vsel %vm311, %v1971, %v1975
    %v1979 = vsel %vm390, %v1977, 0
    %1981 = vmatprep.subr.mxu0 0.0
    %1982 = vmatpush1.msra.mxu0 0.0
    %1983 = vmatprep.subr.mxu0 0.0
    %1984 = vmatpush1.msra.mxu0 0.0
    %1985 = vmatprep.subr.mxu0 0.0
    %1986 = vmatpush1.msra.mxu0 0.0
    %1987 = vmatprep.subr.mxu0 0.0
    %1988 = vmatpush1.msra.mxu0 0.0
    %1989 = vmatprep.subr.mxu0 0.0
    %1990 = vmatpush1.msra.mxu0 0.0
    %1991 = vmatprep.subr.mxu0 0.0
    %1992 = vmatpush1.msra.mxu0 0.0
    %1993 = vmatprep.subr.mxu0 0.0
    %1994 = vmatpush1.msra.mxu0 0.0
    %1995 = vmatprep.subr.mxu0 0.0
    %1996 = vmatpush1.msra.mxu0 0.0
    %1997 = vmatprep.subr.mxu0 0.0
    %1998 = vmatpush1.msra.mxu0 %v291
    %1999 = vmatprep.subr.mxu0 0.0
    %2000 = vmatpush1.msra.mxu0 %v290
    %2001 = vmatprep.subr.mxu0 0.0
    %2002 = vmatpush1.msra.mxu0 %v289
    %2003 = vmatprep.subr.mxu0 0.0
    %2004 = vmatpush1.msra.mxu0 %v288
    %2005 = vmatprep.subr.mxu0 0.0
    %2006 = vmatpush1.msra.mxu0 %v287
    %2007 = vmatprep.subr.mxu0 0.0
    %2008 = vmatpush1.msra.mxu0 %v286
    %2009 = vmatprep.subr.mxu0 0.0
    %2010 = vmatpush1.msra.mxu0 %v285
    %2011 = vmatprep.subr.mxu0 0.0
    %2012 = vmatpush1.msra.mxu0 %v284
    %2013 = vmatprep.subr.mxu0 0.0
    %2014 = vmatpush2.msra.mxu0 0.0
    %2015 = vmatprep.subr.mxu0 0.0
    %2016 = vmatpush2.msra.mxu0 0.0
    %2017 = vmatprep.subr.mxu0 0.0
    %2018 = vmatpush2.msra.mxu0 0.0
    %2019 = vmatprep.subr.mxu0 0.0
    %2020 = vmatpush2.msra.mxu0 0.0
    %2021 = vmatprep.subr.mxu0 0.0
    %2022 = vmatpush2.msra.mxu0 0.0
    %2023 = vmatprep.subr.mxu0 0.0
    %2024 = vmatpush2.msra.mxu0 0.0
    %2025 = vmatprep.subr.mxu0 0.0
    %2026 = vmatpush2.msra.mxu0 0.0
    %2027 = vmatprep.subr.mxu0 0.0
    %2028 = vmatpush2.msra.mxu0 0.0
    %2029 = vmatprep.subr.mxu0 0.0
    %2030 = vmatpush2.msra.mxu0 0.0
    %2031 = vmatprep.subr.mxu0 0.0
    %2032 = vmatpush2.msra.mxu0 0.0
    %2033 = vmatprep.subr.mxu0 0.0
    %2034 = vmatpush2.msra.mxu0 0.0
    %2035 = vmatprep.subr.mxu0 0.0
    %2036 = vmatpush2.msra.mxu0 0.0
    %2037 = vmatprep.subr.mxu0 0.0
    %2038 = vmatpush2.msra.mxu0 0.0
    %2039 = vmatprep.subr.mxu0 0.0
    %2040 = vmatpush2.msra.mxu0 0.0
    %2041 = vmatprep.subr.mxu0 0.0
    %2042 = vmatpush2.msra.mxu0 0.0
    %2043 = vmatprep.subr.mxu0 0.0
    %2044 = vmatpush2.msra.mxu0 0.0
    %2045 = vmatprep.mubr.f32.mxu0 0.0
    %2046 = vmatmul.mubr.f32.gmra.mxu0 %v1979
    %v2047 = vpop.f32.mrf.mxu0
    %v2048 = vadd.f32 %v292, %v2047
    %v2049 = vpop.f32.mrf.mxu0
    %2050 = vdwg.mxu0
    %v2051 = vxor.u32 %v2048, 2147483648
    %v2052 = vmul.f32 %v2051, 1.442695
    %v2053 = vpow.pop %v2052
    %v2054 = vadd.f32 %v2053, 1.0
    %v2055 = vrcp.pop %v2054
    %v2056 = vmul.f32 1.0, %v2055
    %v2057 = vtanh.pop %v2048
    %v2058 = vmul.f32 %v2056, %v1671
    %2060 = vrot.lane.b32.xlu0 %v2057, 64
    %v2061 = vpop.permute.xlu0 %2060
    %v2063 = vmul.f32 %v2056, %v2061
    %2065 = vrot.lane.b32.xlu0 %v2063, 32
    %v2066 = vpop.permute.xlu0 %2065
    %v2068 = vadd.f32 %v2058, %v2066
    %v2069 = vtanh.pop %v2068
    %2071 = vrot.lane.b32.xlu0 %v2069, 64
    %v2072 = vpop.permute.xlu0 %2071
    %v2074 = vmul.f32 %v2056, %v2072
    %2076 = vrot.lane.b32.xlu0 %v2074, 32
    %v2077 = vpop.permute.xlu0 %2076
    %2079 = vrot.lane.b32.xlu0 %v1782, 64
    %v2080 = vpop.permute.xlu0 %2079
    %v2082 = vsel %vm311, %v2077, %v2080
    %v2084 = vsel %vm390, %v2082, 0
    %2086 = vmatprep.subr.mxu0 0.0
    %2087 = vmatpush1.msra.mxu0 0.0
    %2088 = vmatprep.subr.mxu0 0.0
    %2089 = vmatpush1.msra.mxu0 0.0
    %2090 = vmatprep.subr.mxu0 0.0
    %2091 = vmatpush1.msra.mxu0 0.0
    %2092 = vmatprep.subr.mxu0 0.0
    %2093 = vmatpush1.msra.mxu0 0.0
    %2094 = vmatprep.subr.mxu0 0.0
    %2095 = vmatpush1.msra.mxu0 0.0
    %2096 = vmatprep.subr.mxu0 0.0
    %2097 = vmatpush1.msra.mxu0 0.0
    %2098 = vmatprep.subr.mxu0 0.0
    %2099 = vmatpush1.msra.mxu0 0.0
    %2100 = vmatprep.subr.mxu0 0.0
    %2101 = vmatpush1.msra.mxu0 0.0
    %2102 = vmatprep.subr.mxu0 0.0
    %2103 = vmatpush1.msra.mxu0 %v301
    %2104 = vmatprep.subr.mxu0 0.0
    %2105 = vmatpush1.msra.mxu0 %v300
    %2106 = vmatprep.subr.mxu0 0.0
    %2107 = vmatpush1.msra.mxu0 %v299
    %2108 = vmatprep.subr.mxu0 0.0
    %2109 = vmatpush1.msra.mxu0 %v298
    %2110 = vmatprep.subr.mxu0 0.0
    %2111 = vmatpush1.msra.mxu0 %v297
    %2112 = vmatprep.subr.mxu0 0.0
    %2113 = vmatpush1.msra.mxu0 %v296
    %2114 = vmatprep.subr.mxu0 0.0
    %2115 = vmatpush1.msra.mxu0 %v295
    %2116 = vmatprep.subr.mxu0 0.0
    %2117 = vmatpush1.msra.mxu0 %v294
    %2118 = vmatprep.subr.mxu0 0.0
    %2119 = vmatpush2.msra.mxu0 0.0
    %2120 = vmatprep.subr.mxu0 0.0
    %2121 = vmatpush2.msra.mxu0 0.0
    %2122 = vmatprep.subr.mxu0 0.0
    %2123 = vmatpush2.msra.mxu0 0.0
    %2124 = vmatprep.subr.mxu0 0.0
    %2125 = vmatpush2.msra.mxu0 0.0
    %2126 = vmatprep.subr.mxu0 0.0
    %2127 = vmatpush2.msra.mxu0 0.0
    %2128 = vmatprep.subr.mxu0 0.0
    %2129 = vmatpush2.msra.mxu0 0.0
    %2130 = vmatprep.subr.mxu0 0.0
    %2131 = vmatpush2.msra.mxu0 0.0
    %2132 = vmatprep.subr.mxu0 0.0
    %2133 = vmatpush2.msra.mxu0 0.0
    %2134 = vmatprep.subr.mxu0 0.0
    %2135 = vmatpush2.msra.mxu0 0.0
    %2136 = vmatprep.subr.mxu0 0.0
    %2137 = vmatpush2.msra.mxu0 0.0
    %2138 = vmatprep.subr.mxu0 0.0
    %2139 = vmatpush2.msra.mxu0 0.0
    %2140 = vmatprep.subr.mxu0 0.0
    %2141 = vmatpush2.msra.mxu0 0.0
    %2142 = vmatprep.subr.mxu0 0.0
    %2143 = vmatpush2.msra.mxu0 0.0
    %2144 = vmatprep.subr.mxu0 0.0
    %2145 = vmatpush2.msra.mxu0 0.0
    %2146 = vmatprep.subr.mxu0 0.0
    %2147 = vmatpush2.msra.mxu0 0.0
    %2148 = vmatprep.subr.mxu0 0.0
    %2149 = vmatpush2.msra.mxu0 0.0
    %2150 = vmatprep.mubr.f32.mxu0 0.0
    %2151 = vmatmul.mubr.f32.gmra.mxu0 %v2084
    %v2152 = vpop.f32.mrf.mxu0
    %v2153 = vadd.f32 %v303, %v2152
    %v2154 = vpop.f32.mrf.mxu0
    %2155 = vdwg.mxu0
    %v2156 = vxor.u32 %v2153, 2147483648
    %v2157 = vmul.f32 %v2156, 1.442695
    %v2158 = vpow.pop %v2157
    %v2159 = vadd.f32 %v2158, 1.0
    %v2160 = vrcp.pop %v2159
    %v2161 = vmul.f32 1.0, %v2160
    %v2162 = vtanh.pop %v2153
    %v2163 = vmul.f32 %v2161, %v1776
    %2165 = vrot.lane.b32.xlu0 %v2162, 64
    %v2166 = vpop.permute.xlu0 %2165
    %v2168 = vmul.f32 %v2161, %v2166
    %2170 = vrot.lane.b32.xlu0 %v2168, 32
    %v2171 = vpop.permute.xlu0 %2170
    %v2173 = vadd.f32 %v2163, %v2171
    %v2174 = vtanh.pop %v2173
    %2176 = vrot.lane.b32.xlu0 %v2174, 64
    %v2177 = vpop.permute.xlu0 %2176
    %v2179 = vmul.f32 %v2161, %v2177
    %v2180 = vld [vmem:[%s7] sm:$0xff]
    %v2181 = vld [vmem:[%s7 + $0x8] sm:$0xff]
    %v2182 = vld [vmem:[%s7 + $0x10] sm:$0xff]
    %v2183 = vld [vmem:[%s7 + $0x18] sm:$0xff]
    %v2184 = vld [vmem:[%s8] sm:$0x1]
    %2186 = vrot.lane.b32.xlu0 %v2179, 32
    %v2187 = vpop.permute.xlu0 %2186
    %v2188 = vsel %vm311, %v2187, 0
    %2190 = vmatprep.subr.mxu0 0.0
    %2191 = vmatpush1.msra.mxu0 0.0
    %2192 = vmatprep.subr.mxu0 0.0
    %2193 = vmatpush1.msra.mxu0 0.0
    %2194 = vmatprep.subr.mxu0 0.0
    %2195 = vmatpush1.msra.mxu0 0.0
    %2196 = vmatprep.subr.mxu0 0.0
    %2197 = vmatpush1.msra.mxu0 0.0
    %2198 = vmatprep.subr.mxu0 0.0
    %2199 = vmatpush1.msra.mxu0 0.0
    %2200 = vmatprep.subr.mxu0 0.0
    %2201 = vmatpush1.msra.mxu0 0.0
    %2202 = vmatprep.subr.mxu0 0.0
    %2203 = vmatpush1.msra.mxu0 0.0
    %2204 = vmatprep.subr.mxu0 0.0
    %2205 = vmatpush1.msra.mxu0 0.0
    %2206 = vmatprep.subr.mxu0 0.0
    %2207 = vmatpush1.msra.mxu0 0.0
    %2208 = vmatprep.subr.mxu0 0.0
    %2209 = vmatpush1.msra.mxu0 0.0
    %2210 = vmatprep.subr.mxu0 0.0
    %2211 = vmatpush1.msra.mxu0 0.0
    %2212 = vmatprep.subr.mxu0 0.0
    %2213 = vmatpush1.msra.mxu0 0.0
    %2214 = vmatprep.subr.mxu0 0.0
    %2215 = vmatpush1.msra.mxu0 %v2183
    %2216 = vmatprep.subr.mxu0 0.0
    %2217 = vmatpush1.msra.mxu0 %v2182
    %2218 = vmatprep.subr.mxu0 0.0
    %2219 = vmatpush1.msra.mxu0 %v2181
    %2220 = vmatprep.subr.mxu0 0.0
    %2221 = vmatpush1.msra.mxu0 %v2180
    %2222 = vmatprep.subr.mxu0 0.0
    %2223 = vmatpush2.msra.mxu0 0.0
    %2224 = vmatprep.subr.mxu0 0.0
    %2225 = vmatpush2.msra.mxu0 0.0
    %2226 = vmatprep.subr.mxu0 0.0
    %2227 = vmatpush2.msra.mxu0 0.0
    %2228 = vmatprep.subr.mxu0 0.0
    %2229 = vmatpush2.msra.mxu0 0.0
    %2230 = vmatprep.subr.mxu0 0.0
    %2231 = vmatpush2.msra.mxu0 0.0
    %2232 = vmatprep.subr.mxu0 0.0
    %2233 = vmatpush2.msra.mxu0 0.0
    %2234 = vmatprep.subr.mxu0 0.0
    %2235 = vmatpush2.msra.mxu0 0.0
    %2236 = vmatprep.subr.mxu0 0.0
    %2237 = vmatpush2.msra.mxu0 0.0
    %2238 = vmatprep.subr.mxu0 0.0
    %2239 = vmatpush2.msra.mxu0 0.0
    %2240 = vmatprep.subr.mxu0 0.0
    %2241 = vmatpush2.msra.mxu0 0.0
    %2242 = vmatprep.subr.mxu0 0.0
    %2243 = vmatpush2.msra.mxu0 0.0
    %2244 = vmatprep.subr.mxu0 0.0
    %2245 = vmatpush2.msra.mxu0 0.0
    %2246 = vmatprep.subr.mxu0 0.0
    %2247 = vmatpush2.msra.mxu0 0.0
    %2248 = vmatprep.subr.mxu0 0.0
    %2249 = vmatpush2.msra.mxu0 0.0
    %2250 = vmatprep.subr.mxu0 0.0
    %2251 = vmatpush2.msra.mxu0 0.0
    %2252 = vmatprep.subr.mxu0 0.0
    %2253 = vmatpush2.msra.mxu0 0.0
    %2254 = vmatprep.mubr.f32.mxu0 0.0
    %2255 = vmatmul.mubr.f32.gmra.mxu0 %v2188
    %v2256 = vpop.f32.mrf.mxu0
    %v2257 = vadd.f32 %v2184, %v2256
    %v2258 = vpop.f32.mrf.mxu0
    %2259 = vdwg.mxu0
    %2260 = vst [vmem:[#allocation3 + $0x4] sm:$0x1] %v2257
    %v2261 = vld [vmem:[%s9 + $0x4] sm:$0x1]
    %v2262 = vadd.f32 %v2257, %v2261
    %v2263 = vsel %vm677, %v2262, -inf
    %2264 = vmax.xlane.f32.xlu0 %v2263
    %v2265 = vpop.xlane.xlu0 %2264
    %vm2266 = vcmp.ge.f32.partialorder %v2262, %v2265
    %v2267 = vsel %vm2266, %v283, 128
    %v2268 = vsel %vm677, %v2267, 2147483647
    %v2269 = vand.u32 %v2268, 65535
    %v2270 = vshra.s32 %v2268, 16
    %v2271 = vcvt.s32.f32 %v2269
    %v2272 = vcvt.s32.f32 %v2270
    %2273 = vmin.xlane.f32.xlu0 %v2272
    %v2274 = vpop.xlane.xlu0 %2273
    %vm2275 = vcmp.eq.f32.partialorder %v2272, %v2274
    %v2276 = vsel %vm2275, %v2271, inf
    %2277 = vmin.xlane.f32.xlu0 %v2276
    %v2278 = vpop.xlane.xlu0 %2277
    %v2279 = vcvt.f32.s32 %v2278
    %v2280 = vcvt.f32.s32 %v2274
    %v2281 = vshll.u32 %v2280, 16
    %v2282 = vadd.s32 %v2281, %v2279
    %vm2283 = vcmp.gt.s32.totalorder %v1893, 0
    %v2284 = vsel %vm2283, 29, %v2282
    %vm2285 = vcmp.eq.s32.totalorder %v283, 4
    %v2286 = vsel %vm2285, %v2284, %v1889
    %vm2287 = vcmp.eq.s32.totalorder %v2284, 29
    %v2288 = vsel %vm2287, 1, 0
    %vm2289 = vcmp.gt.s32.totalorder %v1893, %v2288
    %v2290 = vsel %vm2289, %v1893, %v2288
    %vm2291 = vcmp.eq.s32.totalorder %v283, %v2284
    %v2292 = vsel %vm2291, 1, 0
    %v2293 = vcvt.s32.f32 %v2292
    %v2294 = vld [vmem:[%s6] sm:$0xff]
    %v2295 = vld [vmem:[%s6 + $0x8] sm:$0xff]
    %v2296 = vld [vmem:[%s6 + $0x10] sm:$0xff]
    %v2297 = vld [vmem:[%s6 + $0x18] sm:$0xff]
    %v2299 = vsel %vm311, %v2293, 0
    %2301 = vmatprep.subr.mxu0 0.0
    %2302 = vmatpush1.msra.mxu0 0.0
    %2303 = vmatprep.subr.mxu0 0.0
    %2304 = vmatpush1.msra.mxu0 0.0
    %2305 = vmatprep.subr.mxu0 0.0
    %2306 = vmatpush1.msra.mxu0 0.0
    %2307 = vmatprep.subr.mxu0 0.0
    %2308 = vmatpush1.msra.mxu0 0.0
    %2309 = vmatprep.subr.mxu0 0.0
    %2310 = vmatpush1.msra.mxu0 0.0
    %2311 = vmatprep.subr.mxu0 0.0
    %2312 = vmatpush1.msra.mxu0 0.0
    %2313 = vmatprep.subr.mxu0 0.0
    %2314 = vmatpush1.msra.mxu0 0.0
    %2315 = vmatprep.subr.mxu0 0.0
    %2316 = vmatpush1.msra.mxu0 0.0
    %2317 = vmatprep.subr.mxu0 0.0
    %2318 = vmatpush1.msra.mxu0 0.0
    %2319 = vmatprep.subr.mxu0 0.0
    %2320 = vmatpush1.msra.mxu0 0.0
    %2321 = vmatprep.subr.mxu0 0.0
    %2322 = vmatpush1.msra.mxu0 0.0
    %2323 = vmatprep.subr.mxu0 0.0
    %2324 = vmatpush1.msra.mxu0 0.0
    %2325 = vmatprep.subr.mxu0 0.0
    %2326 = vmatpush1.msra.mxu0 %v2297
    %2327 = vmatprep.subr.mxu0 0.0
    %2328 = vmatpush1.msra.mxu0 %v2296
    %2329 = vmatprep.subr.mxu0 0.0
    %2330 = vmatpush1.msra.mxu0 %v2295
    %2331 = vmatprep.subr.mxu0 0.0
    %2332 = vmatpush1.msra.mxu0 %v2294
    %2333 = vmatprep.subr.mxu0 0.0
    %2334 = vmatpush2.msra.mxu0 0.0
    %2335 = vmatprep.subr.mxu0 0.0
    %2336 = vmatpush2.msra.mxu0 0.0
    %2337 = vmatprep.subr.mxu0 0.0
    %2338 = vmatpush2.msra.mxu0 0.0
    %2339 = vmatprep.subr.mxu0 0.0
    %2340 = vmatpush2.msra.mxu0 0.0
    %2341 = vmatprep.subr.mxu0 0.0
    %2342 = vmatpush2.msra.mxu0 0.0
    %2343 = vmatprep.subr.mxu0 0.0
    %2344 = vmatpush2.msra.mxu0 0.0
    %2345 = vmatprep.subr.mxu0 0.0
    %2346 = vmatpush2.msra.mxu0 0.0
    %2347 = vmatprep.subr.mxu0 0.0
    %2348 = vmatpush2.msra.mxu0 0.0
    %2349 = vmatprep.subr.mxu0 0.0
    %2350 = vmatpush2.msra.mxu0 0.0
    %2351 = vmatprep.subr.mxu0 0.0
    %2352 = vmatpush2.msra.mxu0 0.0
    %2353 = vmatprep.subr.mxu0 0.0
    %2354 = vmatpush2.msra.mxu0 0.0
    %2355 = vmatprep.subr.mxu0 0.0
    %2356 = vmatpush2.msra.mxu0 0.0
    %2357 = vmatprep.subr.mxu0 0.0
    %2358 = vmatpush2.msra.mxu0 0.0
    %2359 = vmatprep.subr.mxu0 0.0
    %2360 = vmatpush2.msra.mxu0 0.0
    %2361 = vmatprep.subr.mxu0 0.0
    %2362 = vmatpush2.msra.mxu0 0.0
    %2363 = vmatprep.subr.mxu0 0.0
    %2364 = vmatpush2.msra.mxu0 0.0
    %2365 = vmatprep.mubr.f32.mxu0 0.0
    %2366 = vmatmul.mubr.f32.gmra.mxu0 %v2299
    %v2367 = vpop.f32.mrf.mxu0
    %v2368 = vadd.f32 0.0, %v2367
    %v2369 = vpop.f32.mrf.mxu0
    %2370 = vdwg.mxu0
    %2371 = vrot.lane.b32.xlu0 %v2074, 64
    %v2372 = vpop.permute.xlu0 %2371
    %v2374 = vsel %vm311, %v2368, %v2372
    %v2376 = vsel %vm390, %v2374, 0
    %2378 = vmatprep.subr.mxu0 0.0
    %2379 = vmatpush1.msra.mxu0 0.0
    %2380 = vmatprep.subr.mxu0 0.0
    %2381 = vmatpush1.msra.mxu0 0.0
    %2382 = vmatprep.subr.mxu0 0.0
    %2383 = vmatpush1.msra.mxu0 0.0
    %2384 = vmatprep.subr.mxu0 0.0
    %2385 = vmatpush1.msra.mxu0 0.0
    %2386 = vmatprep.subr.mxu0 0.0
    %2387 = vmatpush1.msra.mxu0 0.0
    %2388 = vmatprep.subr.mxu0 0.0
    %2389 = vmatpush1.msra.mxu0 0.0
    %2390 = vmatprep.subr.mxu0 0.0
    %2391 = vmatpush1.msra.mxu0 0.0
    %2392 = vmatprep.subr.mxu0 0.0
    %2393 = vmatpush1.msra.mxu0 0.0
    %2394 = vmatprep.subr.mxu0 0.0
    %2395 = vmatpush1.msra.mxu0 %v291
    %2396 = vmatprep.subr.mxu0 0.0
    %2397 = vmatpush1.msra.mxu0 %v290
    %2398 = vmatprep.subr.mxu0 0.0
    %2399 = vmatpush1.msra.mxu0 %v289
    %2400 = vmatprep.subr.mxu0 0.0
    %2401 = vmatpush1.msra.mxu0 %v288
    %2402 = vmatprep.subr.mxu0 0.0
    %2403 = vmatpush1.msra.mxu0 %v287
    %2404 = vmatprep.subr.mxu0 0.0
    %2405 = vmatpush1.msra.mxu0 %v286
    %2406 = vmatprep.subr.mxu0 0.0
    %2407 = vmatpush1.msra.mxu0 %v285
    %2408 = vmatprep.subr.mxu0 0.0
    %2409 = vmatpush1.msra.mxu0 %v284
    %2410 = vmatprep.subr.mxu0 0.0
    %2411 = vmatpush2.msra.mxu0 0.0
    %2412 = vmatprep.subr.mxu0 0.0
    %2413 = vmatpush2.msra.mxu0 0.0
    %2414 = vmatprep.subr.mxu0 0.0
    %2415 = vmatpush2.msra.mxu0 0.0
    %2416 = vmatprep.subr.mxu0 0.0
    %2417 = vmatpush2.msra.mxu0 0.0
    %2418 = vmatprep.subr.mxu0 0.0
    %2419 = vmatpush2.msra.mxu0 0.0
    %2420 = vmatprep.subr.mxu0 0.0
    %2421 = vmatpush2.msra.mxu0 0.0
    %2422 = vmatprep.subr.mxu0 0.0
    %2423 = vmatpush2.msra.mxu0 0.0
    %2424 = vmatprep.subr.mxu0 0.0
    %2425 = vmatpush2.msra.mxu0 0.0
    %2426 = vmatprep.subr.mxu0 0.0
    %2427 = vmatpush2.msra.mxu0 0.0
    %2428 = vmatprep.subr.mxu0 0.0
    %2429 = vmatpush2.msra.mxu0 0.0
    %2430 = vmatprep.subr.mxu0 0.0
    %2431 = vmatpush2.msra.mxu0 0.0
    %2432 = vmatprep.subr.mxu0 0.0
    %2433 = vmatpush2.msra.mxu0 0.0
    %2434 = vmatprep.subr.mxu0 0.0
    %2435 = vmatpush2.msra.mxu0 0.0
    %2436 = vmatprep.subr.mxu0 0.0
    %2437 = vmatpush2.msra.mxu0 0.0
    %2438 = vmatprep.subr.mxu0 0.0
    %2439 = vmatpush2.msra.mxu0 0.0
    %2440 = vmatprep.subr.mxu0 0.0
    %2441 = vmatpush2.msra.mxu0 0.0
    %2442 = vmatprep.mubr.f32.mxu0 0.0
    %2443 = vmatmul.mubr.f32.gmra.mxu0 %v2376
    %v2444 = vpop.f32.mrf.mxu0
    %v2445 = vadd.f32 %v292, %v2444
    %v2446 = vpop.f32.mrf.mxu0
    %2447 = vdwg.mxu0
    %v2448 = vxor.u32 %v2445, 2147483648
    %v2449 = vmul.f32 %v2448, 1.442695
    %v2450 = vpow.pop %v2449
    %v2451 = vadd.f32 %v2450, 1.0
    %v2452 = vrcp.pop %v2451
    %v2453 = vmul.f32 1.0, %v2452
    %v2454 = vtanh.pop %v2445
    %v2455 = vmul.f32 %v2453, %v2068
    %2457 = vrot.lane.b32.xlu0 %v2454, 64
    %v2458 = vpop.permute.xlu0 %2457
    %v2460 = vmul.f32 %v2453, %v2458
    %2462 = vrot.lane.b32.xlu0 %v2460, 32
    %v2463 = vpop.permute.xlu0 %2462
    %v2465 = vadd.f32 %v2455, %v2463
    %v2466 = vtanh.pop %v2465
    %2468 = vrot.lane.b32.xlu0 %v2466, 64
    %v2469 = vpop.permute.xlu0 %2468
    %v2471 = vmul.f32 %v2453, %v2469
    %2473 = vrot.lane.b32.xlu0 %v2471, 32
    %v2474 = vpop.permute.xlu0 %2473
    %2476 = vrot.lane.b32.xlu0 %v2179, 64
    %v2477 = vpop.permute.xlu0 %2476
    %v2479 = vsel %vm311, %v2474, %v2477
    %v2481 = vsel %vm390, %v2479, 0
    %2483 = vmatprep.subr.mxu0 0.0
    %2484 = vmatpush1.msra.mxu0 0.0
    %2485 = vmatprep.subr.mxu0 0.0
    %2486 = vmatpush1.msra.mxu0 0.0
    %2487 = vmatprep.subr.mxu0 0.0
    %2488 = vmatpush1.msra.mxu0 0.0
    %2489 = vmatprep.subr.mxu0 0.0
    %2490 = vmatpush1.msra.mxu0 0.0
    %2491 = vmatprep.subr.mxu0 0.0
    %2492 = vmatpush1.msra.mxu0 0.0
    %2493 = vmatprep.subr.mxu0 0.0
    %2494 = vmatpush1.msra.mxu0 0.0
    %2495 = vmatprep.subr.mxu0 0.0
    %2496 = vmatpush1.msra.mxu0 0.0
    %2497 = vmatprep.subr.mxu0 0.0
    %2498 = vmatpush1.msra.mxu0 0.0
    %2499 = vmatprep.subr.mxu0 0.0
    %2500 = vmatpush1.msra.mxu0 %v301
    %2501 = vmatprep.subr.mxu0 0.0
    %2502 = vmatpush1.msra.mxu0 %v300
    %2503 = vmatprep.subr.mxu0 0.0
    %2504 = vmatpush1.msra.mxu0 %v299
    %2505 = vmatprep.subr.mxu0 0.0
    %2506 = vmatpush1.msra.mxu0 %v298
    %2507 = vmatprep.subr.mxu0 0.0
    %2508 = vmatpush1.msra.mxu0 %v297
    %2509 = vmatprep.subr.mxu0 0.0
    %2510 = vmatpush1.msra.mxu0 %v296
    %2511 = vmatprep.subr.mxu0 0.0
    %2512 = vmatpush1.msra.mxu0 %v295
    %2513 = vmatprep.subr.mxu0 0.0
    %2514 = vmatpush1.msra.mxu0 %v294
    %2515 = vmatprep.subr.mxu0 0.0
    %2516 = vmatpush2.msra.mxu0 0.0
    %2517 = vmatprep.subr.mxu0 0.0
    %2518 = vmatpush2.msra.mxu0 0.0
    %2519 = vmatprep.subr.mxu0 0.0
    %2520 = vmatpush2.msra.mxu0 0.0
    %2521 = vmatprep.subr.mxu0 0.0
    %2522 = vmatpush2.msra.mxu0 0.0
    %2523 = vmatprep.subr.mxu0 0.0
    %2524 = vmatpush2.msra.mxu0 0.0
    %2525 = vmatprep.subr.mxu0 0.0
    %2526 = vmatpush2.msra.mxu0 0.0
    %2527 = vmatprep.subr.mxu0 0.0
    %2528 = vmatpush2.msra.mxu0 0.0
    %2529 = vmatprep.subr.mxu0 0.0
    %2530 = vmatpush2.msra.mxu0 0.0
    %2531 = vmatprep.subr.mxu0 0.0
    %2532 = vmatpush2.msra.mxu0 0.0
    %2533 = vmatprep.subr.mxu0 0.0
    %2534 = vmatpush2.msra.mxu0 0.0
    %2535 = vmatprep.subr.mxu0 0.0
    %2536 = vmatpush2.msra.mxu0 0.0
    %2537 = vmatprep.subr.mxu0 0.0
    %2538 = vmatpush2.msra.mxu0 0.0
    %2539 = vmatprep.subr.mxu0 0.0
    %2540 = vmatpush2.msra.mxu0 0.0
    %2541 = vmatprep.subr.mxu0 0.0
    %2542 = vmatpush2.msra.mxu0 0.0
    %2543 = vmatprep.subr.mxu0 0.0
    %2544 = vmatpush2.msra.mxu0 0.0
    %2545 = vmatprep.subr.mxu0 0.0
    %2546 = vmatpush2.msra.mxu0 0.0
    %2547 = vmatprep.mubr.f32.mxu0 0.0
    %2548 = vmatmul.mubr.f32.gmra.mxu0 %v2481
    %v2549 = vpop.f32.mrf.mxu0
    %v2550 = vadd.f32 %v303, %v2549
    %v2551 = vpop.f32.mrf.mxu0
    %2552 = vdwg.mxu0
    %v2553 = vxor.u32 %v2550, 2147483648
    %v2554 = vmul.f32 %v2553, 1.442695
    %v2555 = vpow.pop %v2554
    %v2556 = vadd.f32 %v2555, 1.0
    %v2557 = vrcp.pop %v2556
    %v2558 = vmul.f32 1.0, %v2557
    %v2559 = vtanh.pop %v2550
    %v2560 = vmul.f32 %v2558, %v2173
    %2562 = vrot.lane.b32.xlu0 %v2559, 64
    %v2563 = vpop.permute.xlu0 %2562
    %v2565 = vmul.f32 %v2558, %v2563
    %2567 = vrot.lane.b32.xlu0 %v2565, 32
    %v2568 = vpop.permute.xlu0 %2567
    %v2570 = vadd.f32 %v2560, %v2568
    %v2571 = vtanh.pop %v2570
    %2573 = vrot.lane.b32.xlu0 %v2571, 64
    %v2574 = vpop.permute.xlu0 %2573
    %v2576 = vmul.f32 %v2558, %v2574
    %v2577 = vld [vmem:[%s7] sm:$0xff]
    %v2578 = vld [vmem:[%s7 + $0x8] sm:$0xff]
    %v2579 = vld [vmem:[%s7 + $0x10] sm:$0xff]
    %v2580 = vld [vmem:[%s7 + $0x18] sm:$0xff]
    %v2581 = vld [vmem:[%s8] sm:$0x1]
    %2583 = vrot.lane.b32.xlu0 %v2576, 32
    %v2584 = vpop.permute.xlu0 %2583
    %v2585 = vsel %vm311, %v2584, 0
    %2587 = vmatprep.subr.mxu0 0.0
    %2588 = vmatpush1.msra.mxu0 0.0
    %2589 = vmatprep.subr.mxu0 0.0
    %2590 = vmatpush1.msra.mxu0 0.0
    %2591 = vmatprep.subr.mxu0 0.0
    %2592 = vmatpush1.msra.mxu0 0.0
    %2593 = vmatprep.subr.mxu0 0.0
    %2594 = vmatpush1.msra.mxu0 0.0
    %2595 = vmatprep.subr.mxu0 0.0
    %2596 = vmatpush1.msra.mxu0 0.0
    %2597 = vmatprep.subr.mxu0 0.0
    %2598 = vmatpush1.msra.mxu0 0.0
    %2599 = vmatprep.subr.mxu0 0.0
    %2600 = vmatpush1.msra.mxu0 0.0
    %2601 = vmatprep.subr.mxu0 0.0
    %2602 = vmatpush1.msra.mxu0 0.0
    %2603 = vmatprep.subr.mxu0 0.0
    %2604 = vmatpush1.msra.mxu0 0.0
    %2605 = vmatprep.subr.mxu0 0.0
    %2606 = vmatpush1.msra.mxu0 0.0
    %2607 = vmatprep.subr.mxu0 0.0
    %2608 = vmatpush1.msra.mxu0 0.0
    %2609 = vmatprep.subr.mxu0 0.0
    %2610 = vmatpush1.msra.mxu0 0.0
    %2611 = vmatprep.subr.mxu0 0.0
    %2612 = vmatpush1.msra.mxu0 %v2580
    %2613 = vmatprep.subr.mxu0 0.0
    %2614 = vmatpush1.msra.mxu0 %v2579
    %2615 = vmatprep.subr.mxu0 0.0
    %2616 = vmatpush1.msra.mxu0 %v2578
    %2617 = vmatprep.subr.mxu0 0.0
    %2618 = vmatpush1.msra.mxu0 %v2577
    %2619 = vmatprep.subr.mxu0 0.0
    %2620 = vmatpush2.msra.mxu0 0.0
    %2621 = vmatprep.subr.mxu0 0.0
    %2622 = vmatpush2.msra.mxu0 0.0
    %2623 = vmatprep.subr.mxu0 0.0
    %2624 = vmatpush2.msra.mxu0 0.0
    %2625 = vmatprep.subr.mxu0 0.0
    %2626 = vmatpush2.msra.mxu0 0.0
    %2627 = vmatprep.subr.mxu0 0.0
    %2628 = vmatpush2.msra.mxu0 0.0
    %2629 = vmatprep.subr.mxu0 0.0
    %2630 = vmatpush2.msra.mxu0 0.0
    %2631 = vmatprep.subr.mxu0 0.0
    %2632 = vmatpush2.msra.mxu0 0.0
    %2633 = vmatprep.subr.mxu0 0.0
    %2634 = vmatpush2.msra.mxu0 0.0
    %2635 = vmatprep.subr.mxu0 0.0
    %2636 = vmatpush2.msra.mxu0 0.0
    %2637 = vmatprep.subr.mxu0 0.0
    %2638 = vmatpush2.msra.mxu0 0.0
    %2639 = vmatprep.subr.mxu0 0.0
    %2640 = vmatpush2.msra.mxu0 0.0
    %2641 = vmatprep.subr.mxu0 0.0
    %2642 = vmatpush2.msra.mxu0 0.0
    %2643 = vmatprep.subr.mxu0 0.0
    %2644 = vmatpush2.msra.mxu0 0.0
    %2645 = vmatprep.subr.mxu0 0.0
    %2646 = vmatpush2.msra.mxu0 0.0
    %2647 = vmatprep.subr.mxu0 0.0
    %2648 = vmatpush2.msra.mxu0 0.0
    %2649 = vmatprep.subr.mxu0 0.0
    %2650 = vmatpush2.msra.mxu0 0.0
    %2651 = vmatprep.mubr.f32.mxu0 0.0
    %2652 = vmatmul.mubr.f32.gmra.mxu0 %v2585
    %v2653 = vpop.f32.mrf.mxu0
    %v2654 = vadd.f32 %v2581, %v2653
    %v2655 = vpop.f32.mrf.mxu0
    %2656 = vdwg.mxu0
    %2657 = vst [vmem:[#allocation3 + $0x5] sm:$0x1] %v2654
    %v2658 = vld [vmem:[%s9 + $0x5] sm:$0x1]
    %v2659 = vadd.f32 %v2654, %v2658
    %v2660 = vsel %vm677, %v2659, -inf
    %2661 = vmax.xlane.f32.xlu0 %v2660
    %v2662 = vpop.xlane.xlu0 %2661
    %vm2663 = vcmp.ge.f32.partialorder %v2659, %v2662
    %v2664 = vsel %vm2663, %v283, 128
    %v2665 = vsel %vm677, %v2664, 2147483647
    %v2666 = vand.u32 %v2665, 65535
    %v2667 = vshra.s32 %v2665, 16
    %v2668 = vcvt.s32.f32 %v2666
    %v2669 = vcvt.s32.f32 %v2667
    %2670 = vmin.xlane.f32.xlu0 %v2669
    %v2671 = vpop.xlane.xlu0 %2670
    %vm2672 = vcmp.eq.f32.partialorder %v2669, %v2671
    %v2673 = vsel %vm2672, %v2668, inf
    %2674 = vmin.xlane.f32.xlu0 %v2673
    %v2675 = vpop.xlane.xlu0 %2674
    %v2676 = vcvt.f32.s32 %v2675
    %v2677 = vcvt.f32.s32 %v2671
    %v2678 = vshll.u32 %v2677, 16
    %v2679 = vadd.s32 %v2678, %v2676
    %vm2680 = vcmp.gt.s32.totalorder %v2290, 0
    %v2681 = vsel %vm2680, 29, %v2679
    %vm2682 = vcmp.eq.s32.totalorder %v283, 5
    %v2683 = vsel %vm2682, %v2681, %v2286
    %vm2684 = vcmp.eq.s32.totalorder %v2681, 29
    %v2685 = vsel %vm2684, 1, 0
    %vm2686 = vcmp.gt.s32.totalorder %v2290, %v2685
    %v2687 = vsel %vm2686, %v2290, %v2685
    %vm2688 = vcmp.eq.s32.totalorder %v283, %v2681
    %v2689 = vsel %vm2688, 1, 0
    %v2690 = vcvt.s32.f32 %v2689
    %v2691 = vld [vmem:[%s6] sm:$0xff]
    %v2692 = vld [vmem:[%s6 + $0x8] sm:$0xff]
    %v2693 = vld [vmem:[%s6 + $0x10] sm:$0xff]
    %v2694 = vld [vmem:[%s6 + $0x18] sm:$0xff]
    %v2696 = vsel %vm311, %v2690, 0
    %2698 = vmatprep.subr.mxu0 0.0
    %2699 = vmatpush1.msra.mxu0 0.0
    %2700 = vmatprep.subr.mxu0 0.0
    %2701 = vmatpush1.msra.mxu0 0.0
    %2702 = vmatprep.subr.mxu0 0.0
    %2703 = vmatpush1.msra.mxu0 0.0
    %2704 = vmatprep.subr.mxu0 0.0
    %2705 = vmatpush1.msra.mxu0 0.0
    %2706 = vmatprep.subr.mxu0 0.0
    %2707 = vmatpush1.msra.mxu0 0.0
    %2708 = vmatprep.subr.mxu0 0.0
    %2709 = vmatpush1.msra.mxu0 0.0
    %2710 = vmatprep.subr.mxu0 0.0
    %2711 = vmatpush1.msra.mxu0 0.0
    %2712 = vmatprep.subr.mxu0 0.0
    %2713 = vmatpush1.msra.mxu0 0.0
    %2714 = vmatprep.subr.mxu0 0.0
    %2715 = vmatpush1.msra.mxu0 0.0
    %2716 = vmatprep.subr.mxu0 0.0
    %2717 = vmatpush1.msra.mxu0 0.0
    %2718 = vmatprep.subr.mxu0 0.0
    %2719 = vmatpush1.msra.mxu0 0.0
    %2720 = vmatprep.subr.mxu0 0.0
    %2721 = vmatpush1.msra.mxu0 0.0
    %2722 = vmatprep.subr.mxu0 0.0
    %2723 = vmatpush1.msra.mxu0 %v2694
    %2724 = vmatprep.subr.mxu0 0.0
    %2725 = vmatpush1.msra.mxu0 %v2693
    %2726 = vmatprep.subr.mxu0 0.0
    %2727 = vmatpush1.msra.mxu0 %v2692
    %2728 = vmatprep.subr.mxu0 0.0
    %2729 = vmatpush1.msra.mxu0 %v2691
    %2730 = vmatprep.subr.mxu0 0.0
    %2731 = vmatpush2.msra.mxu0 0.0
    %2732 = vmatprep.subr.mxu0 0.0
    %2733 = vmatpush2.msra.mxu0 0.0
    %2734 = vmatprep.subr.mxu0 0.0
    %2735 = vmatpush2.msra.mxu0 0.0
    %2736 = vmatprep.subr.mxu0 0.0
    %2737 = vmatpush2.msra.mxu0 0.0
    %2738 = vmatprep.subr.mxu0 0.0
    %2739 = vmatpush2.msra.mxu0 0.0
    %2740 = vmatprep.subr.mxu0 0.0
    %2741 = vmatpush2.msra.mxu0 0.0
    %2742 = vmatprep.subr.mxu0 0.0
    %2743 = vmatpush2.msra.mxu0 0.0
    %2744 = vmatprep.subr.mxu0 0.0
    %2745 = vmatpush2.msra.mxu0 0.0
    %2746 = vmatprep.subr.mxu0 0.0
    %2747 = vmatpush2.msra.mxu0 0.0
    %2748 = vmatprep.subr.mxu0 0.0
    %2749 = vmatpush2.msra.mxu0 0.0
    %2750 = vmatprep.subr.mxu0 0.0
    %2751 = vmatpush2.msra.mxu0 0.0
    %2752 = vmatprep.subr.mxu0 0.0
    %2753 = vmatpush2.msra.mxu0 0.0
    %2754 = vmatprep.subr.mxu0 0.0
    %2755 = vmatpush2.msra.mxu0 0.0
    %2756 = vmatprep.subr.mxu0 0.0
    %2757 = vmatpush2.msra.mxu0 0.0
    %2758 = vmatprep.subr.mxu0 0.0
    %2759 = vmatpush2.msra.mxu0 0.0
    %2760 = vmatprep.subr.mxu0 0.0
    %2761 = vmatpush2.msra.mxu0 0.0
    %2762 = vmatprep.mubr.f32.mxu0 0.0
    %2763 = vmatmul.mubr.f32.gmra.mxu0 %v2696
    %v2764 = vpop.f32.mrf.mxu0
    %v2765 = vadd.f32 0.0, %v2764
    %v2766 = vpop.f32.mrf.mxu0
    %2767 = vdwg.mxu0
    %2768 = vrot.lane.b32.xlu0 %v2471, 64
    %v2769 = vpop.permute.xlu0 %2768
    %v2771 = vsel %vm311, %v2765, %v2769
    %v2773 = vsel %vm390, %v2771, 0
    %2775 = vmatprep.subr.mxu0 0.0
    %2776 = vmatpush1.msra.mxu0 0.0
    %2777 = vmatprep.subr.mxu0 0.0
    %2778 = vmatpush1.msra.mxu0 0.0
    %2779 = vmatprep.subr.mxu0 0.0
    %2780 = vmatpush1.msra.mxu0 0.0
    %2781 = vmatprep.subr.mxu0 0.0
    %2782 = vmatpush1.msra.mxu0 0.0
    %2783 = vmatprep.subr.mxu0 0.0
    %2784 = vmatpush1.msra.mxu0 0.0
    %2785 = vmatprep.subr.mxu0 0.0
    %2786 = vmatpush1.msra.mxu0 0.0
    %2787 = vmatprep.subr.mxu0 0.0
    %2788 = vmatpush1.msra.mxu0 0.0
    %2789 = vmatprep.subr.mxu0 0.0
    %2790 = vmatpush1.msra.mxu0 0.0
    %2791 = vmatprep.subr.mxu0 0.0
    %2792 = vmatpush1.msra.mxu0 %v291
    %2793 = vmatprep.subr.mxu0 0.0
    %2794 = vmatpush1.msra.mxu0 %v290
    %2795 = vmatprep.subr.mxu0 0.0
    %2796 = vmatpush1.msra.mxu0 %v289
    %2797 = vmatprep.subr.mxu0 0.0
    %2798 = vmatpush1.msra.mxu0 %v288
    %2799 = vmatprep.subr.mxu0 0.0
    %2800 = vmatpush1.msra.mxu0 %v287
    %2801 = vmatprep.subr.mxu0 0.0
    %2802 = vmatpush1.msra.mxu0 %v286
    %2803 = vmatprep.subr.mxu0 0.0
    %2804 = vmatpush1.msra.mxu0 %v285
    %2805 = vmatprep.subr.mxu0 0.0
    %2806 = vmatpush1.msra.mxu0 %v284
    %2807 = vmatprep.subr.mxu0 0.0
    %2808 = vmatpush2.msra.mxu0 0.0
    %2809 = vmatprep.subr.mxu0 0.0
    %2810 = vmatpush2.msra.mxu0 0.0
    %2811 = vmatprep.subr.mxu0 0.0
    %2812 = vmatpush2.msra.mxu0 0.0
    %2813 = vmatprep.subr.mxu0 0.0
    %2814 = vmatpush2.msra.mxu0 0.0
    %2815 = vmatprep.subr.mxu0 0.0
    %2816 = vmatpush2.msra.mxu0 0.0
    %2817 = vmatprep.subr.mxu0 0.0
    %2818 = vmatpush2.msra.mxu0 0.0
    %2819 = vmatprep.subr.mxu0 0.0
    %2820 = vmatpush2.msra.mxu0 0.0
    %2821 = vmatprep.subr.mxu0 0.0
    %2822 = vmatpush2.msra.mxu0 0.0
    %2823 = vmatprep.subr.mxu0 0.0
    %2824 = vmatpush2.msra.mxu0 0.0
    %2825 = vmatprep.subr.mxu0 0.0
    %2826 = vmatpush2.msra.mxu0 0.0
    %2827 = vmatprep.subr.mxu0 0.0
    %2828 = vmatpush2.msra.mxu0 0.0
    %2829 = vmatprep.subr.mxu0 0.0
    %2830 = vmatpush2.msra.mxu0 0.0
    %2831 = vmatprep.subr.mxu0 0.0
    %2832 = vmatpush2.msra.mxu0 0.0
    %2833 = vmatprep.subr.mxu0 0.0
    %2834 = vmatpush2.msra.mxu0 0.0
    %2835 = vmatprep.subr.mxu0 0.0
    %2836 = vmatpush2.msra.mxu0 0.0
    %2837 = vmatprep.subr.mxu0 0.0
    %2838 = vmatpush2.msra.mxu0 0.0
    %2839 = vmatprep.mubr.f32.mxu0 0.0
    %2840 = vmatmul.mubr.f32.gmra.mxu0 %v2773
    %v2841 = vpop.f32.mrf.mxu0
    %v2842 = vadd.f32 %v292, %v2841
    %v2843 = vpop.f32.mrf.mxu0
    %2844 = vdwg.mxu0
    %v2845 = vxor.u32 %v2842, 2147483648
    %v2846 = vmul.f32 %v2845, 1.442695
    %v2847 = vpow.pop %v2846
    %v2848 = vadd.f32 %v2847, 1.0
    %v2849 = vrcp.pop %v2848
    %v2850 = vmul.f32 1.0, %v2849
    %v2851 = vtanh.pop %v2842
    %v2852 = vmul.f32 %v2850, %v2465
    %2854 = vrot.lane.b32.xlu0 %v2851, 64
    %v2855 = vpop.permute.xlu0 %2854
    %v2857 = vmul.f32 %v2850, %v2855
    %2859 = vrot.lane.b32.xlu0 %v2857, 32
    %v2860 = vpop.permute.xlu0 %2859
    %v2862 = vadd.f32 %v2852, %v2860
    %v2863 = vtanh.pop %v2862
    %2865 = vrot.lane.b32.xlu0 %v2863, 64
    %v2866 = vpop.permute.xlu0 %2865
    %v2868 = vmul.f32 %v2850, %v2866
    %2870 = vrot.lane.b32.xlu0 %v2868, 32
    %v2871 = vpop.permute.xlu0 %2870
    %2873 = vrot.lane.b32.xlu0 %v2576, 64
    %v2874 = vpop.permute.xlu0 %2873
    %v2876 = vsel %vm311, %v2871, %v2874
    %v2878 = vsel %vm390, %v2876, 0
    %2880 = vmatprep.subr.mxu0 0.0
    %2881 = vmatpush1.msra.mxu0 0.0
    %2882 = vmatprep.subr.mxu0 0.0
    %2883 = vmatpush1.msra.mxu0 0.0
    %2884 = vmatprep.subr.mxu0 0.0
    %2885 = vmatpush1.msra.mxu0 0.0
    %2886 = vmatprep.subr.mxu0 0.0
    %2887 = vmatpush1.msra.mxu0 0.0
    %2888 = vmatprep.subr.mxu0 0.0
    %2889 = vmatpush1.msra.mxu0 0.0
    %2890 = vmatprep.subr.mxu0 0.0
    %2891 = vmatpush1.msra.mxu0 0.0
    %2892 = vmatprep.subr.mxu0 0.0
    %2893 = vmatpush1.msra.mxu0 0.0
    %2894 = vmatprep.subr.mxu0 0.0
    %2895 = vmatpush1.msra.mxu0 0.0
    %2896 = vmatprep.subr.mxu0 0.0
    %2897 = vmatpush1.msra.mxu0 %v301
    %2898 = vmatprep.subr.mxu0 0.0
    %2899 = vmatpush1.msra.mxu0 %v300
    %2900 = vmatprep.subr.mxu0 0.0
    %2901 = vmatpush1.msra.mxu0 %v299
    %2902 = vmatprep.subr.mxu0 0.0
    %2903 = vmatpush1.msra.mxu0 %v298
    %2904 = vmatprep.subr.mxu0 0.0
    %2905 = vmatpush1.msra.mxu0 %v297
    %2906 = vmatprep.subr.mxu0 0.0
    %2907 = vmatpush1.msra.mxu0 %v296
    %2908 = vmatprep.subr.mxu0 0.0
    %2909 = vmatpush1.msra.mxu0 %v295
    %2910 = vmatprep.subr.mxu0 0.0
    %2911 = vmatpush1.msra.mxu0 %v294
    %2912 = vmatprep.subr.mxu0 0.0
    %2913 = vmatpush2.msra.mxu0 0.0
    %2914 = vmatprep.subr.mxu0 0.0
    %2915 = vmatpush2.msra.mxu0 0.0
    %2916 = vmatprep.subr.mxu0 0.0
    %2917 = vmatpush2.msra.mxu0 0.0
    %2918 = vmatprep.subr.mxu0 0.0
    %2919 = vmatpush2.msra.mxu0 0.0
    %2920 = vmatprep.subr.mxu0 0.0
    %2921 = vmatpush2.msra.mxu0 0.0
    %2922 = vmatprep.subr.mxu0 0.0
    %2923 = vmatpush2.msra.mxu0 0.0
    %2924 = vmatprep.subr.mxu0 0.0
    %2925 = vmatpush2.msra.mxu0 0.0
    %2926 = vmatprep.subr.mxu0 0.0
    %2927 = vmatpush2.msra.mxu0 0.0
    %2928 = vmatprep.subr.mxu0 0.0
    %2929 = vmatpush2.msra.mxu0 0.0
    %2930 = vmatprep.subr.mxu0 0.0
    %2931 = vmatpush2.msra.mxu0 0.0
    %2932 = vmatprep.subr.mxu0 0.0
    %2933 = vmatpush2.msra.mxu0 0.0
    %2934 = vmatprep.subr.mxu0 0.0
    %2935 = vmatpush2.msra.mxu0 0.0
    %2936 = vmatprep.subr.mxu0 0.0
    %2937 = vmatpush2.msra.mxu0 0.0
    %2938 = vmatprep.subr.mxu0 0.0
    %2939 = vmatpush2.msra.mxu0 0.0
    %2940 = vmatprep.subr.mxu0 0.0
    %2941 = vmatpush2.msra.mxu0 0.0
    %2942 = vmatprep.subr.mxu0 0.0
    %2943 = vmatpush2.msra.mxu0 0.0
    %2944 = vmatprep.mubr.f32.mxu0 0.0
    %2945 = vmatmul.mubr.f32.gmra.mxu0 %v2878
    %v2946 = vpop.f32.mrf.mxu0
    %v2947 = vadd.f32 %v303, %v2946
    %v2948 = vpop.f32.mrf.mxu0
    %2949 = vdwg.mxu0
    %v2950 = vxor.u32 %v2947, 2147483648
    %v2951 = vmul.f32 %v2950, 1.442695
    %v2952 = vpow.pop %v2951
    %v2953 = vadd.f32 %v2952, 1.0
    %v2954 = vrcp.pop %v2953
    %v2955 = vmul.f32 1.0, %v2954
    %v2956 = vtanh.pop %v2947
    %v2957 = vmul.f32 %v2955, %v2570
    %2959 = vrot.lane.b32.xlu0 %v2956, 64
    %v2960 = vpop.permute.xlu0 %2959
    %v2962 = vmul.f32 %v2955, %v2960
    %2964 = vrot.lane.b32.xlu0 %v2962, 32
    %v2965 = vpop.permute.xlu0 %2964
    %v2967 = vadd.f32 %v2957, %v2965
    %v2968 = vtanh.pop %v2967
    %2970 = vrot.lane.b32.xlu0 %v2968, 64
    %v2971 = vpop.permute.xlu0 %2970
    %v2973 = vmul.f32 %v2955, %v2971
    %v2974 = vld [vmem:[%s7] sm:$0xff]
    %v2975 = vld [vmem:[%s7 + $0x8] sm:$0xff]
    %v2976 = vld [vmem:[%s7 + $0x10] sm:$0xff]
    %v2977 = vld [vmem:[%s7 + $0x18] sm:$0xff]
    %v2978 = vld [vmem:[%s8] sm:$0x1]
    %2980 = vrot.lane.b32.xlu0 %v2973, 32
    %v2981 = vpop.permute.xlu0 %2980
    %v2982 = vsel %vm311, %v2981, 0
    %2984 = vmatprep.subr.mxu0 0.0
    %2985 = vmatpush1.msra.mxu0 0.0
    %2986 = vmatprep.subr.mxu0 0.0
    %2987 = vmatpush1.msra.mxu0 0.0
    %2988 = vmatprep.subr.mxu0 0.0
    %2989 = vmatpush1.msra.mxu0 0.0
    %2990 = vmatprep.subr.mxu0 0.0
    %2991 = vmatpush1.msra.mxu0 0.0
    %2992 = vmatprep.subr.mxu0 0.0
    %2993 = vmatpush1.msra.mxu0 0.0
    %2994 = vmatprep.subr.mxu0 0.0
    %2995 = vmatpush1.msra.mxu0 0.0
    %2996 = vmatprep.subr.mxu0 0.0
    %2997 = vmatpush1.msra.mxu0 0.0
    %2998 = vmatprep.subr.mxu0 0.0
    %2999 = vmatpush1.msra.mxu0 0.0
    %3000 = vmatprep.subr.mxu0 0.0
    %3001 = vmatpush1.msra.mxu0 0.0
    %3002 = vmatprep.subr.mxu0 0.0
    %3003 = vmatpush1.msra.mxu0 0.0
    %3004 = vmatprep.subr.mxu0 0.0
    %3005 = vmatpush1.msra.mxu0 0.0
    %3006 = vmatprep.subr.mxu0 0.0
    %3007 = vmatpush1.msra.mxu0 0.0
    %3008 = vmatprep.subr.mxu0 0.0
    %3009 = vmatpush1.msra.mxu0 %v2977
    %3010 = vmatprep.subr.mxu0 0.0
    %3011 = vmatpush1.msra.mxu0 %v2976
    %3012 = vmatprep.subr.mxu0 0.0
    %3013 = vmatpush1.msra.mxu0 %v2975
    %3014 = vmatprep.subr.mxu0 0.0
    %3015 = vmatpush1.msra.mxu0 %v2974
    %3016 = vmatprep.subr.mxu0 0.0
    %3017 = vmatpush2.msra.mxu0 0.0
    %3018 = vmatprep.subr.mxu0 0.0
    %3019 = vmatpush2.msra.mxu0 0.0
    %3020 = vmatprep.subr.mxu0 0.0
    %3021 = vmatpush2.msra.mxu0 0.0
    %3022 = vmatprep.subr.mxu0 0.0
    %3023 = vmatpush2.msra.mxu0 0.0
    %3024 = vmatprep.subr.mxu0 0.0
    %3025 = vmatpush2.msra.mxu0 0.0
    %3026 = vmatprep.subr.mxu0 0.0
    %3027 = vmatpush2.msra.mxu0 0.0
    %3028 = vmatprep.subr.mxu0 0.0
    %3029 = vmatpush2.msra.mxu0 0.0
    %3030 = vmatprep.subr.mxu0 0.0
    %3031 = vmatpush2.msra.mxu0 0.0
    %3032 = vmatprep.subr.mxu0 0.0
    %3033 = vmatpush2.msra.mxu0 0.0
    %3034 = vmatprep.subr.mxu0 0.0
    %3035 = vmatpush2.msra.mxu0 0.0
    %3036 = vmatprep.subr.mxu0 0.0
    %3037 = vmatpush2.msra.mxu0 0.0
    %3038 = vmatprep.subr.mxu0 0.0
    %3039 = vmatpush2.msra.mxu0 0.0
    %3040 = vmatprep.subr.mxu0 0.0
    %3041 = vmatpush2.msra.mxu0 0.0
    %3042 = vmatprep.subr.mxu0 0.0
    %3043 = vmatpush2.msra.mxu0 0.0
    %3044 = vmatprep.subr.mxu0 0.0
    %3045 = vmatpush2.msra.mxu0 0.0
    %3046 = vmatprep.subr.mxu0 0.0
    %3047 = vmatpush2.msra.mxu0 0.0
    %3048 = vmatprep.mubr.f32.mxu0 0.0
    %3049 = vmatmul.mubr.f32.gmra.mxu0 %v2982
    %v3050 = vpop.f32.mrf.mxu0
    %v3051 = vadd.f32 %v2978, %v3050
    %v3052 = vpop.f32.mrf.mxu0
    %3053 = vdwg.mxu0
    %3054 = vst [vmem:[#allocation3 + $0x6] sm:$0x1] %v3051
    %v3055 = vld [vmem:[%s9 + $0x6] sm:$0x1]
    %v3056 = vadd.f32 %v3051, %v3055
    %v3057 = vsel %vm677, %v3056, -inf
    %3058 = vmax.xlane.f32.xlu0 %v3057
    %v3059 = vpop.xlane.xlu0 %3058
    %vm3060 = vcmp.ge.f32.partialorder %v3056, %v3059
    %v3061 = vsel %vm3060, %v283, 128
    %v3062 = vsel %vm677, %v3061, 2147483647
    %v3063 = vand.u32 %v3062, 65535
    %v3064 = vshra.s32 %v3062, 16
    %v3065 = vcvt.s32.f32 %v3063
    %v3066 = vcvt.s32.f32 %v3064
    %3067 = vmin.xlane.f32.xlu0 %v3066
    %v3068 = vpop.xlane.xlu0 %3067
    %vm3069 = vcmp.eq.f32.partialorder %v3066, %v3068
    %v3070 = vsel %vm3069, %v3065, inf
    %3071 = vmin.xlane.f32.xlu0 %v3070
    %v3072 = vpop.xlane.xlu0 %3071
    %v3073 = vcvt.f32.s32 %v3072
    %v3074 = vcvt.f32.s32 %v3068
    %v3075 = vshll.u32 %v3074, 16
    %v3076 = vadd.s32 %v3075, %v3073
    %vm3077 = vcmp.gt.s32.totalorder %v2687, 0
    %v3078 = vsel %vm3077, 29, %v3076
    %vm3079 = vcmp.eq.s32.totalorder %v283, 6
    %v3080 = vsel %vm3079, %v3078, %v2683
    %vm3081 = vcmp.eq.s32.totalorder %v3078, 29
    %v3082 = vsel %vm3081, 1, 0
    %vm3083 = vcmp.gt.s32.totalorder %v2687, %v3082
    %v3084 = vsel %vm3083, %v2687, %v3082
    %vm3085 = vcmp.eq.s32.totalorder %v283, %v3078
    %v3086 = vsel %vm3085, 1, 0
    %v3087 = vcvt.s32.f32 %v3086
    %v3088 = vld [vmem:[%s6] sm:$0xff]
    %v3089 = vld [vmem:[%s6 + $0x8] sm:$0xff]
    %v3090 = vld [vmem:[%s6 + $0x10] sm:$0xff]
    %v3091 = vld [vmem:[%s6 + $0x18] sm:$0xff]
    %v3093 = vsel %vm311, %v3087, 0
    %3095 = vmatprep.subr.mxu0 0.0
    %3096 = vmatpush1.msra.mxu0 0.0
    %3097 = vmatprep.subr.mxu0 0.0
    %3098 = vmatpush1.msra.mxu0 0.0
    %3099 = vmatprep.subr.mxu0 0.0
    %3100 = vmatpush1.msra.mxu0 0.0
    %3101 = vmatprep.subr.mxu0 0.0
    %3102 = vmatpush1.msra.mxu0 0.0
    %3103 = vmatprep.subr.mxu0 0.0
    %3104 = vmatpush1.msra.mxu0 0.0
    %3105 = vmatprep.subr.mxu0 0.0
    %3106 = vmatpush1.msra.mxu0 0.0
    %3107 = vmatprep.subr.mxu0 0.0
    %3108 = vmatpush1.msra.mxu0 0.0
    %3109 = vmatprep.subr.mxu0 0.0
    %3110 = vmatpush1.msra.mxu0 0.0
    %3111 = vmatprep.subr.mxu0 0.0
    %3112 = vmatpush1.msra.mxu0 0.0
    %3113 = vmatprep.subr.mxu0 0.0
    %3114 = vmatpush1.msra.mxu0 0.0
    %3115 = vmatprep.subr.mxu0 0.0
    %3116 = vmatpush1.msra.mxu0 0.0
    %3117 = vmatprep.subr.mxu0 0.0
    %3118 = vmatpush1.msra.mxu0 0.0
    %3119 = vmatprep.subr.mxu0 0.0
    %3120 = vmatpush1.msra.mxu0 %v3091
    %3121 = vmatprep.subr.mxu0 0.0
    %3122 = vmatpush1.msra.mxu0 %v3090
    %3123 = vmatprep.subr.mxu0 0.0
    %3124 = vmatpush1.msra.mxu0 %v3089
    %3125 = vmatprep.subr.mxu0 0.0
    %3126 = vmatpush1.msra.mxu0 %v3088
    %3127 = vmatprep.subr.mxu0 0.0
    %3128 = vmatpush2.msra.mxu0 0.0
    %3129 = vmatprep.subr.mxu0 0.0
    %3130 = vmatpush2.msra.mxu0 0.0
    %3131 = vmatprep.subr.mxu0 0.0
    %3132 = vmatpush2.msra.mxu0 0.0
    %3133 = vmatprep.subr.mxu0 0.0
    %3134 = vmatpush2.msra.mxu0 0.0
    %3135 = vmatprep.subr.mxu0 0.0
    %3136 = vmatpush2.msra.mxu0 0.0
    %3137 = vmatprep.subr.mxu0 0.0
    %3138 = vmatpush2.msra.mxu0 0.0
    %3139 = vmatprep.subr.mxu0 0.0
    %3140 = vmatpush2.msra.mxu0 0.0
    %3141 = vmatprep.subr.mxu0 0.0
    %3142 = vmatpush2.msra.mxu0 0.0
    %3143 = vmatprep.subr.mxu0 0.0
    %3144 = vmatpush2.msra.mxu0 0.0
    %3145 = vmatprep.subr.mxu0 0.0
    %3146 = vmatpush2.msra.mxu0 0.0
    %3147 = vmatprep.subr.mxu0 0.0
    %3148 = vmatpush2.msra.mxu0 0.0
    %3149 = vmatprep.subr.mxu0 0.0
    %3150 = vmatpush2.msra.mxu0 0.0
    %3151 = vmatprep.subr.mxu0 0.0
    %3152 = vmatpush2.msra.mxu0 0.0
    %3153 = vmatprep.subr.mxu0 0.0
    %3154 = vmatpush2.msra.mxu0 0.0
    %3155 = vmatprep.subr.mxu0 0.0
    %3156 = vmatpush2.msra.mxu0 0.0
    %3157 = vmatprep.subr.mxu0 0.0
    %3158 = vmatpush2.msra.mxu0 0.0
    %3159 = vmatprep.mubr.f32.mxu0 0.0
    %3160 = vmatmul.mubr.f32.gmra.mxu0 %v3093
    %v3161 = vpop.f32.mrf.mxu0
    %v3162 = vadd.f32 0.0, %v3161
    %v3163 = vpop.f32.mrf.mxu0
    %3164 = vdwg.mxu0
    %3165 = vrot.lane.b32.xlu0 %v2868, 64
    %v3166 = vpop.permute.xlu0 %3165
    %v3168 = vsel %vm311, %v3162, %v3166
    %v3170 = vsel %vm390, %v3168, 0
    %3172 = vmatprep.subr.mxu0 0.0
    %3173 = vmatpush1.msra.mxu0 0.0
    %3174 = vmatprep.subr.mxu0 0.0
    %3175 = vmatpush1.msra.mxu0 0.0
    %3176 = vmatprep.subr.mxu0 0.0
    %3177 = vmatpush1.msra.mxu0 0.0
    %3178 = vmatprep.subr.mxu0 0.0
    %3179 = vmatpush1.msra.mxu0 0.0
    %3180 = vmatprep.subr.mxu0 0.0
    %3181 = vmatpush1.msra.mxu0 0.0
    %3182 = vmatprep.subr.mxu0 0.0
    %3183 = vmatpush1.msra.mxu0 0.0
    %3184 = vmatprep.subr.mxu0 0.0
    %3185 = vmatpush1.msra.mxu0 0.0
    %3186 = vmatprep.subr.mxu0 0.0
    %3187 = vmatpush1.msra.mxu0 0.0
    %3188 = vmatprep.subr.mxu0 0.0
    %3189 = vmatpush1.msra.mxu0 %v291
    %3190 = vmatprep.subr.mxu0 0.0
    %3191 = vmatpush1.msra.mxu0 %v290
    %3192 = vmatprep.subr.mxu0 0.0
    %3193 = vmatpush1.msra.mxu0 %v289
    %3194 = vmatprep.subr.mxu0 0.0
    %3195 = vmatpush1.msra.mxu0 %v288
    %3196 = vmatprep.subr.mxu0 0.0
    %3197 = vmatpush1.msra.mxu0 %v287
    %3198 = vmatprep.subr.mxu0 0.0
    %3199 = vmatpush1.msra.mxu0 %v286
    %3200 = vmatprep.subr.mxu0 0.0
    %3201 = vmatpush1.msra.mxu0 %v285
    %3202 = vmatprep.subr.mxu0 0.0
    %3203 = vmatpush1.msra.mxu0 %v284
    %3204 = vmatprep.subr.mxu0 0.0
    %3205 = vmatpush2.msra.mxu0 0.0
    %3206 = vmatprep.subr.mxu0 0.0
    %3207 = vmatpush2.msra.mxu0 0.0
    %3208 = vmatprep.subr.mxu0 0.0
    %3209 = vmatpush2.msra.mxu0 0.0
    %3210 = vmatprep.subr.mxu0 0.0
    %3211 = vmatpush2.msra.mxu0 0.0
    %3212 = vmatprep.subr.mxu0 0.0
    %3213 = vmatpush2.msra.mxu0 0.0
    %3214 = vmatprep.subr.mxu0 0.0
    %3215 = vmatpush2.msra.mxu0 0.0
    %3216 = vmatprep.subr.mxu0 0.0
    %3217 = vmatpush2.msra.mxu0 0.0
    %3218 = vmatprep.subr.mxu0 0.0
    %3219 = vmatpush2.msra.mxu0 0.0
    %3220 = vmatprep.subr.mxu0 0.0
    %3221 = vmatpush2.msra.mxu0 0.0
    %3222 = vmatprep.subr.mxu0 0.0
    %3223 = vmatpush2.msra.mxu0 0.0
    %3224 = vmatprep.subr.mxu0 0.0
    %3225 = vmatpush2.msra.mxu0 0.0
    %3226 = vmatprep.subr.mxu0 0.0
    %3227 = vmatpush2.msra.mxu0 0.0
    %3228 = vmatprep.subr.mxu0 0.0
    %3229 = vmatpush2.msra.mxu0 0.0
    %3230 = vmatprep.subr.mxu0 0.0
    %3231 = vmatpush2.msra.mxu0 0.0
    %3232 = vmatprep.subr.mxu0 0.0
    %3233 = vmatpush2.msra.mxu0 0.0
    %3234 = vmatprep.subr.mxu0 0.0
    %3235 = vmatpush2.msra.mxu0 0.0
    %3236 = vmatprep.mubr.f32.mxu0 0.0
    %3237 = vmatmul.mubr.f32.gmra.mxu0 %v3170
    %v3238 = vpop.f32.mrf.mxu0
    %v3239 = vadd.f32 %v292, %v3238
    %v3240 = vpop.f32.mrf.mxu0
    %3241 = vdwg.mxu0
    %v3242 = vxor.u32 %v3239, 2147483648
    %v3243 = vmul.f32 %v3242, 1.442695
    %v3244 = vpow.pop %v3243
    %v3245 = vadd.f32 %v3244, 1.0
    %v3246 = vrcp.pop %v3245
    %v3247 = vmul.f32 1.0, %v3246
    %v3248 = vtanh.pop %v3239
    %v3249 = vmul.f32 %v3247, %v2862
    %3251 = vrot.lane.b32.xlu0 %v3248, 64
    %v3252 = vpop.permute.xlu0 %3251
    %v3254 = vmul.f32 %v3247, %v3252
    %3256 = vrot.lane.b32.xlu0 %v3254, 32
    %v3257 = vpop.permute.xlu0 %3256
    %v3259 = vadd.f32 %v3249, %v3257
    %v3260 = vtanh.pop %v3259
    %3262 = vrot.lane.b32.xlu0 %v3260, 64
    %v3263 = vpop.permute.xlu0 %3262
    %v3265 = vmul.f32 %v3247, %v3263
    %3267 = vrot.lane.b32.xlu0 %v3265, 32
    %v3268 = vpop.permute.xlu0 %3267
    %3270 = vrot.lane.b32.xlu0 %v2973, 64
    %v3271 = vpop.permute.xlu0 %3270
    %v3273 = vsel %vm311, %v3268, %v3271
    %v3275 = vsel %vm390, %v3273, 0
    %3277 = vmatprep.subr.mxu0 0.0
    %3278 = vmatpush1.msra.mxu0 0.0
    %3279 = vmatprep.subr.mxu0 0.0
    %3280 = vmatpush1.msra.mxu0 0.0
    %3281 = vmatprep.subr.mxu0 0.0
    %3282 = vmatpush1.msra.mxu0 0.0
    %3283 = vmatprep.subr.mxu0 0.0
    %3284 = vmatpush1.msra.mxu0 0.0
    %3285 = vmatprep.subr.mxu0 0.0
    %3286 = vmatpush1.msra.mxu0 0.0
    %3287 = vmatprep.subr.mxu0 0.0
    %3288 = vmatpush1.msra.mxu0 0.0
    %3289 = vmatprep.subr.mxu0 0.0
    %3290 = vmatpush1.msra.mxu0 0.0
    %3291 = vmatprep.subr.mxu0 0.0
    %3292 = vmatpush1.msra.mxu0 0.0
    %3293 = vmatprep.subr.mxu0 0.0
    %3294 = vmatpush1.msra.mxu0 %v301
    %3295 = vmatprep.subr.mxu0 0.0
    %3296 = vmatpush1.msra.mxu0 %v300
    %3297 = vmatprep.subr.mxu0 0.0
    %3298 = vmatpush1.msra.mxu0 %v299
    %3299 = vmatprep.subr.mxu0 0.0
    %3300 = vmatpush1.msra.mxu0 %v298
    %3301 = vmatprep.subr.mxu0 0.0
    %3302 = vmatpush1.msra.mxu0 %v297
    %3303 = vmatprep.subr.mxu0 0.0
    %3304 = vmatpush1.msra.mxu0 %v296
    %3305 = vmatprep.subr.mxu0 0.0
    %3306 = vmatpush1.msra.mxu0 %v295
    %3307 = vmatprep.subr.mxu0 0.0
    %3308 = vmatpush1.msra.mxu0 %v294
    %3309 = vmatprep.subr.mxu0 0.0
    %3310 = vmatpush2.msra.mxu0 0.0
    %3311 = vmatprep.subr.mxu0 0.0
    %3312 = vmatpush2.msra.mxu0 0.0
    %3313 = vmatprep.subr.mxu0 0.0
    %3314 = vmatpush2.msra.mxu0 0.0
    %3315 = vmatprep.subr.mxu0 0.0
    %3316 = vmatpush2.msra.mxu0 0.0
    %3317 = vmatprep.subr.mxu0 0.0
    %3318 = vmatpush2.msra.mxu0 0.0
    %3319 = vmatprep.subr.mxu0 0.0
    %3320 = vmatpush2.msra.mxu0 0.0
    %3321 = vmatprep.subr.mxu0 0.0
    %3322 = vmatpush2.msra.mxu0 0.0
    %3323 = vmatprep.subr.mxu0 0.0
    %3324 = vmatpush2.msra.mxu0 0.0
    %3325 = vmatprep.subr.mxu0 0.0
    %3326 = vmatpush2.msra.mxu0 0.0
    %3327 = vmatprep.subr.mxu0 0.0
    %3328 = vmatpush2.msra.mxu0 0.0
    %3329 = vmatprep.subr.mxu0 0.0
    %3330 = vmatpush2.msra.mxu0 0.0
    %3331 = vmatprep.subr.mxu0 0.0
    %3332 = vmatpush2.msra.mxu0 0.0
    %3333 = vmatprep.subr.mxu0 0.0
    %3334 = vmatpush2.msra.mxu0 0.0
    %3335 = vmatprep.subr.mxu0 0.0
    %3336 = vmatpush2.msra.mxu0 0.0
    %3337 = vmatprep.subr.mxu0 0.0
    %3338 = vmatpush2.msra.mxu0 0.0
    %3339 = vmatprep.subr.mxu0 0.0
    %3340 = vmatpush2.msra.mxu0 0.0
    %3341 = vmatprep.mubr.f32.mxu0 0.0
    %3342 = vmatmul.mubr.f32.gmra.mxu0 %v3275
    %v3343 = vpop.f32.mrf.mxu0
    %v3344 = vadd.f32 %v303, %v3343
    %v3345 = vpop.f32.mrf.mxu0
    %3346 = vdwg.mxu0
    %v3347 = vxor.u32 %v3344, 2147483648
    %v3348 = vmul.f32 %v3347, 1.442695
    %v3349 = vpow.pop %v3348
    %v3350 = vadd.f32 %v3349, 1.0
    %v3351 = vrcp.pop %v3350
    %v3352 = vmul.f32 1.0, %v3351
    %v3353 = vtanh.pop %v3344
    %v3354 = vmul.f32 %v3352, %v2967
    %3356 = vrot.lane.b32.xlu0 %v3353, 64
    %v3357 = vpop.permute.xlu0 %3356
    %v3359 = vmul.f32 %v3352, %v3357
    %3361 = vrot.lane.b32.xlu0 %v3359, 32
    %v3362 = vpop.permute.xlu0 %3361
    %v3364 = vadd.f32 %v3354, %v3362
    %v3365 = vtanh.pop %v3364
    %3367 = vrot.lane.b32.xlu0 %v3365, 64
    %v3368 = vpop.permute.xlu0 %3367
    %v3370 = vmul.f32 %v3352, %v3368
    %v3371 = vld [vmem:[%s7] sm:$0xff]
    %v3372 = vld [vmem:[%s7 + $0x8] sm:$0xff]
    %v3373 = vld [vmem:[%s7 + $0x10] sm:$0xff]
    %v3374 = vld [vmem:[%s7 + $0x18] sm:$0xff]
    %v3375 = vld [vmem:[%s8] sm:$0x1]
    %3377 = vrot.lane.b32.xlu0 %v3370, 32
    %v3378 = vpop.permute.xlu0 %3377
    %v3379 = vsel %vm311, %v3378, 0
    %3381 = vmatprep.subr.mxu0 0.0
    %3382 = vmatpush1.msra.mxu0 0.0
    %3383 = vmatprep.subr.mxu0 0.0
    %3384 = vmatpush1.msra.mxu0 0.0
    %3385 = vmatprep.subr.mxu0 0.0
    %3386 = vmatpush1.msra.mxu0 0.0
    %3387 = vmatprep.subr.mxu0 0.0
    %3388 = vmatpush1.msra.mxu0 0.0
    %3389 = vmatprep.subr.mxu0 0.0
    %3390 = vmatpush1.msra.mxu0 0.0
    %3391 = vmatprep.subr.mxu0 0.0
    %3392 = vmatpush1.msra.mxu0 0.0
    %3393 = vmatprep.subr.mxu0 0.0
    %3394 = vmatpush1.msra.mxu0 0.0
    %3395 = vmatprep.subr.mxu0 0.0
    %3396 = vmatpush1.msra.mxu0 0.0
    %3397 = vmatprep.subr.mxu0 0.0
    %3398 = vmatpush1.msra.mxu0 0.0
    %3399 = vmatprep.subr.mxu0 0.0
    %3400 = vmatpush1.msra.mxu0 0.0
    %3401 = vmatprep.subr.mxu0 0.0
    %3402 = vmatpush1.msra.mxu0 0.0
    %3403 = vmatprep.subr.mxu0 0.0
    %3404 = vmatpush1.msra.mxu0 0.0
    %3405 = vmatprep.subr.mxu0 0.0
    %3406 = vmatpush1.msra.mxu0 %v3374
    %3407 = vmatprep.subr.mxu0 0.0
    %3408 = vmatpush1.msra.mxu0 %v3373
    %3409 = vmatprep.subr.mxu0 0.0
    %3410 = vmatpush1.msra.mxu0 %v3372
    %3411 = vmatprep.subr.mxu0 0.0
    %3412 = vmatpush1.msra.mxu0 %v3371
    %3413 = vmatprep.subr.mxu0 0.0
    %3414 = vmatpush2.msra.mxu0 0.0
    %3415 = vmatprep.subr.mxu0 0.0
    %3416 = vmatpush2.msra.mxu0 0.0
    %3417 = vmatprep.subr.mxu0 0.0
    %3418 = vmatpush2.msra.mxu0 0.0
    %3419 = vmatprep.subr.mxu0 0.0
    %3420 = vmatpush2.msra.mxu0 0.0
    %3421 = vmatprep.subr.mxu0 0.0
    %3422 = vmatpush2.msra.mxu0 0.0
    %3423 = vmatprep.subr.mxu0 0.0
    %3424 = vmatpush2.msra.mxu0 0.0
    %3425 = vmatprep.subr.mxu0 0.0
    %3426 = vmatpush2.msra.mxu0 0.0
    %3427 = vmatprep.subr.mxu0 0.0
    %3428 = vmatpush2.msra.mxu0 0.0
    %3429 = vmatprep.subr.mxu0 0.0
    %3430 = vmatpush2.msra.mxu0 0.0
    %3431 = vmatprep.subr.mxu0 0.0
    %3432 = vmatpush2.msra.mxu0 0.0
    %3433 = vmatprep.subr.mxu0 0.0
    %3434 = vmatpush2.msra.mxu0 0.0
    %3435 = vmatprep.subr.mxu0 0.0
    %3436 = vmatpush2.msra.mxu0 0.0
    %3437 = vmatprep.subr.mxu0 0.0
    %3438 = vmatpush2.msra.mxu0 0.0
    %3439 = vmatprep.subr.mxu0 0.0
    %3440 = vmatpush2.msra.mxu0 0.0
    %3441 = vmatprep.subr.mxu0 0.0
    %3442 = vmatpush2.msra.mxu0 0.0
    %3443 = vmatprep.subr.mxu0 0.0
    %3444 = vmatpush2.msra.mxu0 0.0
    %3445 = vmatprep.mubr.f32.mxu0 0.0
    %3446 = vmatmul.mubr.f32.gmra.mxu0 %v3379
    %v3447 = vpop.f32.mrf.mxu0
    %v3448 = vadd.f32 %v3375, %v3447
    %v3449 = vpop.f32.mrf.mxu0
    %3450 = vdwg.mxu0
    %3451 = vst [vmem:[#allocation3 + $0x7] sm:$0x1] %v3448
    %v3452 = vld [vmem:[%s9 + $0x7] sm:$0x1]
    %v3453 = vadd.f32 %v3448, %v3452
    %v3454 = vsel %vm677, %v3453, -inf
    %3455 = vmax.xlane.f32.xlu0 %v3454
    %v3456 = vpop.xlane.xlu0 %3455
    %vm3457 = vcmp.ge.f32.partialorder %v3453, %v3456
    %v3458 = vsel %vm3457, %v283, 128
    %v3459 = vsel %vm677, %v3458, 2147483647
    %v3460 = vand.u32 %v3459, 65535
    %v3461 = vshra.s32 %v3459, 16
    %v3462 = vcvt.s32.f32 %v3460
    %v3463 = vcvt.s32.f32 %v3461
    %3464 = vmin.xlane.f32.xlu0 %v3463
    %v3465 = vpop.xlane.xlu0 %3464
    %vm3466 = vcmp.eq.f32.partialorder %v3463, %v3465
    %v3467 = vsel %vm3466, %v3462, inf
    %3468 = vmin.xlane.f32.xlu0 %v3467
    %v3469 = vpop.xlane.xlu0 %3468
    %v3470 = vcvt.f32.s32 %v3469
    %v3471 = vcvt.f32.s32 %v3465
    %v3472 = vshll.u32 %v3471, 16
    %v3473 = vadd.s32 %v3472, %v3470
    %vm3474 = vcmp.gt.s32.totalorder %v3084, 0
    %v3475 = vsel %vm3474, 29, %v3473
    %vm3476 = vcmp.eq.s32.totalorder %v283, 7
    %v3477 = vsel %vm3476, %v3475, %v3080
    %vm3478 = vcmp.eq.s32.totalorder %v3475, 29
    %v3479 = vsel %vm3478, 1, 0
    %vm3480 = vcmp.gt.s32.totalorder %v3084, %v3479
    %v3481 = vsel %vm3480, %v3084, %v3479
    %vm3482 = vcmp.eq.s32.totalorder %v283, %v3475
    %v3483 = vsel %vm3482, 1, 0
    %v3484 = vcvt.s32.f32 %v3483
    %v3485 = vld [vmem:[%s6] sm:$0xff]
    %v3486 = vld [vmem:[%s6 + $0x8] sm:$0xff]
    %v3487 = vld [vmem:[%s6 + $0x10] sm:$0xff]
    %v3488 = vld [vmem:[%s6 + $0x18] sm:$0xff]
    %v3490 = vsel %vm311, %v3484, 0
    %3492 = vmatprep.subr.mxu0 0.0
    %3493 = vmatpush1.msra.mxu0 0.0
    %3494 = vmatprep.subr.mxu0 0.0
    %3495 = vmatpush1.msra.mxu0 0.0
    %3496 = vmatprep.subr.mxu0 0.0
    %3497 = vmatpush1.msra.mxu0 0.0
    %3498 = vmatprep.subr.mxu0 0.0
    %3499 = vmatpush1.msra.mxu0 0.0
    %3500 = vmatprep.subr.mxu0 0.0
    %3501 = vmatpush1.msra.mxu0 0.0
    %3502 = vmatprep.subr.mxu0 0.0
    %3503 = vmatpush1.msra.mxu0 0.0
    %3504 = vmatprep.subr.mxu0 0.0
    %3505 = vmatpush1.msra.mxu0 0.0
    %3506 = vmatprep.subr.mxu0 0.0
    %3507 = vmatpush1.msra.mxu0 0.0
    %3508 = vmatprep.subr.mxu0 0.0
    %3509 = vmatpush1.msra.mxu0 0.0
    %3510 = vmatprep.subr.mxu0 0.0
    %3511 = vmatpush1.msra.mxu0 0.0
    %3512 = vmatprep.subr.mxu0 0.0
    %3513 = vmatpush1.msra.mxu0 0.0
    %3514 = vmatprep.subr.mxu0 0.0
    %3515 = vmatpush1.msra.mxu0 0.0
    %3516 = vmatprep.subr.mxu0 0.0
    %3517 = vmatpush1.msra.mxu0 %v3488
    %3518 = vmatprep.subr.mxu0 0.0
    %3519 = vmatpush1.msra.mxu0 %v3487
    %3520 = vmatprep.subr.mxu0 0.0
    %3521 = vmatpush1.msra.mxu0 %v3486
    %3522 = vmatprep.subr.mxu0 0.0
    %3523 = vmatpush1.msra.mxu0 %v3485
    %3524 = vmatprep.subr.mxu0 0.0
    %3525 = vmatpush2.msra.mxu0 0.0
    %3526 = vmatprep.subr.mxu0 0.0
    %3527 = vmatpush2.msra.mxu0 0.0
    %3528 = vmatprep.subr.mxu0 0.0
    %3529 = vmatpush2.msra.mxu0 0.0
    %3530 = vmatprep.subr.mxu0 0.0
    %3531 = vmatpush2.msra.mxu0 0.0
    %3532 = vmatprep.subr.mxu0 0.0
    %3533 = vmatpush2.msra.mxu0 0.0
    %3534 = vmatprep.subr.mxu0 0.0
    %3535 = vmatpush2.msra.mxu0 0.0
    %3536 = vmatprep.subr.mxu0 0.0
    %3537 = vmatpush2.msra.mxu0 0.0
    %3538 = vmatprep.subr.mxu0 0.0
    %3539 = vmatpush2.msra.mxu0 0.0
    %3540 = vmatprep.subr.mxu0 0.0
    %3541 = vmatpush2.msra.mxu0 0.0
    %3542 = vmatprep.subr.mxu0 0.0
    %3543 = vmatpush2.msra.mxu0 0.0
    %3544 = vmatprep.subr.mxu0 0.0
    %3545 = vmatpush2.msra.mxu0 0.0
    %3546 = vmatprep.subr.mxu0 0.0
    %3547 = vmatpush2.msra.mxu0 0.0
    %3548 = vmatprep.subr.mxu0 0.0
    %3549 = vmatpush2.msra.mxu0 0.0
    %3550 = vmatprep.subr.mxu0 0.0
    %3551 = vmatpush2.msra.mxu0 0.0
    %3552 = vmatprep.subr.mxu0 0.0
    %3553 = vmatpush2.msra.mxu0 0.0
    %3554 = vmatprep.subr.mxu0 0.0
    %3555 = vmatpush2.msra.mxu0 0.0
    %3556 = vmatprep.mubr.f32.mxu0 0.0
    %3557 = vmatmul.mubr.f32.gmra.mxu0 %v3490
    %v3558 = vpop.f32.mrf.mxu0
    %v3559 = vadd.f32 0.0, %v3558
    %v3560 = vpop.f32.mrf.mxu0
    %3561 = vdwg.mxu0
    %3562 = vrot.lane.b32.xlu0 %v3265, 64
    %v3563 = vpop.permute.xlu0 %3562
    %v3565 = vsel %vm311, %v3559, %v3563
    %v3567 = vsel %vm390, %v3565, 0
    %3569 = vmatprep.subr.mxu0 0.0
    %3570 = vmatpush1.msra.mxu0 0.0
    %3571 = vmatprep.subr.mxu0 0.0
    %3572 = vmatpush1.msra.mxu0 0.0
    %3573 = vmatprep.subr.mxu0 0.0
    %3574 = vmatpush1.msra.mxu0 0.0
    %3575 = vmatprep.subr.mxu0 0.0
    %3576 = vmatpush1.msra.mxu0 0.0
    %3577 = vmatprep.subr.mxu0 0.0
    %3578 = vmatpush1.msra.mxu0 0.0
    %3579 = vmatprep.subr.mxu0 0.0
    %3580 = vmatpush1.msra.mxu0 0.0
    %3581 = vmatprep.subr.mxu0 0.0
    %3582 = vmatpush1.msra.mxu0 0.0
    %3583 = vmatprep.subr.mxu0 0.0
    %3584 = vmatpush1.msra.mxu0 0.0
    %3585 = vmatprep.subr.mxu0 0.0
    %3586 = vmatpush1.msra.mxu0 %v291
    %3587 = vmatprep.subr.mxu0 0.0
    %3588 = vmatpush1.msra.mxu0 %v290
    %3589 = vmatprep.subr.mxu0 0.0
    %3590 = vmatpush1.msra.mxu0 %v289
    %3591 = vmatprep.subr.mxu0 0.0
    %3592 = vmatpush1.msra.mxu0 %v288
    %3593 = vmatprep.subr.mxu0 0.0
    %3594 = vmatpush1.msra.mxu0 %v287
    %3595 = vmatprep.subr.mxu0 0.0
    %3596 = vmatpush1.msra.mxu0 %v286
    %3597 = vmatprep.subr.mxu0 0.0
    %3598 = vmatpush1.msra.mxu0 %v285
    %3599 = vmatprep.subr.mxu0 0.0
    %3600 = vmatpush1.msra.mxu0 %v284
    %3601 = vmatprep.subr.mxu0 0.0
    %3602 = vmatpush2.msra.mxu0 0.0
    %3603 = vmatprep.subr.mxu0 0.0
    %3604 = vmatpush2.msra.mxu0 0.0
    %3605 = vmatprep.subr.mxu0 0.0
    %3606 = vmatpush2.msra.mxu0 0.0
    %3607 = vmatprep.subr.mxu0 0.0
    %3608 = vmatpush2.msra.mxu0 0.0
    %3609 = vmatprep.subr.mxu0 0.0
    %3610 = vmatpush2.msra.mxu0 0.0
    %3611 = vmatprep.subr.mxu0 0.0
    %3612 = vmatpush2.msra.mxu0 0.0
    %3613 = vmatprep.subr.mxu0 0.0
    %3614 = vmatpush2.msra.mxu0 0.0
    %3615 = vmatprep.subr.mxu0 0.0
    %3616 = vmatpush2.msra.mxu0 0.0
    %3617 = vmatprep.subr.mxu0 0.0
    %3618 = vmatpush2.msra.mxu0 0.0
    %3619 = vmatprep.subr.mxu0 0.0
    %3620 = vmatpush2.msra.mxu0 0.0
    %3621 = vmatprep.subr.mxu0 0.0
    %3622 = vmatpush2.msra.mxu0 0.0
    %3623 = vmatprep.subr.mxu0 0.0
    %3624 = vmatpush2.msra.mxu0 0.0
    %3625 = vmatprep.subr.mxu0 0.0
    %3626 = vmatpush2.msra.mxu0 0.0
    %3627 = vmatprep.subr.mxu0 0.0
    %3628 = vmatpush2.msra.mxu0 0.0
    %3629 = vmatprep.subr.mxu0 0.0
    %3630 = vmatpush2.msra.mxu0 0.0
    %3631 = vmatprep.subr.mxu0 0.0
    %3632 = vmatpush2.msra.mxu0 0.0
    %3633 = vmatprep.mubr.f32.mxu0 0.0
    %3634 = vmatmul.mubr.f32.gmra.mxu0 %v3567
    %v3635 = vpop.f32.mrf.mxu0
    %v3636 = vadd.f32 %v292, %v3635
    %v3637 = vpop.f32.mrf.mxu0
    %3638 = vdwg.mxu0
    %v3639 = vxor.u32 %v3636, 2147483648
    %v3640 = vmul.f32 %v3639, 1.442695
    %v3641 = vpow.pop %v3640
    %v3642 = vadd.f32 %v3641, 1.0
    %v3643 = vrcp.pop %v3642
    %v3644 = vmul.f32 1.0, %v3643
    %v3645 = vtanh.pop %v3636
    %v3646 = vmul.f32 %v3644, %v3259
    %3648 = vrot.lane.b32.xlu0 %v3645, 64
    %v3649 = vpop.permute.xlu0 %3648
    %v3651 = vmul.f32 %v3644, %v3649
    %3653 = vrot.lane.b32.xlu0 %v3651, 32
    %v3654 = vpop.permute.xlu0 %3653
    %v3656 = vadd.f32 %v3646, %v3654
    %v3657 = vtanh.pop %v3656
    %3659 = vrot.lane.b32.xlu0 %v3657, 64
    %v3660 = vpop.permute.xlu0 %3659
    %v3662 = vmul.f32 %v3644, %v3660
    %3664 = vrot.lane.b32.xlu0 %v3662, 32
    %v3665 = vpop.permute.xlu0 %3664
    %3667 = vrot.lane.b32.xlu0 %v3370, 64
    %v3668 = vpop.permute.xlu0 %3667
    %v3670 = vsel %vm311, %v3665, %v3668
    %v3672 = vsel %vm390, %v3670, 0
    %3674 = vmatprep.subr.mxu0 0.0
    %3675 = vmatpush1.msra.mxu0 0.0
    %3676 = vmatprep.subr.mxu0 0.0
    %3677 = vmatpush1.msra.mxu0 0.0
    %3678 = vmatprep.subr.mxu0 0.0
    %3679 = vmatpush1.msra.mxu0 0.0
    %3680 = vmatprep.subr.mxu0 0.0
    %3681 = vmatpush1.msra.mxu0 0.0
    %3682 = vmatprep.subr.mxu0 0.0
    %3683 = vmatpush1.msra.mxu0 0.0
    %3684 = vmatprep.subr.mxu0 0.0
    %3685 = vmatpush1.msra.mxu0 0.0
    %3686 = vmatprep.subr.mxu0 0.0
    %3687 = vmatpush1.msra.mxu0 0.0
    %3688 = vmatprep.subr.mxu0 0.0
    %3689 = vmatpush1.msra.mxu0 0.0
    %3690 = vmatprep.subr.mxu0 0.0
    %3691 = vmatpush1.msra.mxu0 %v301
    %3692 = vmatprep.subr.mxu0 0.0
    %3693 = vmatpush1.msra.mxu0 %v300
    %3694 = vmatprep.subr.mxu0 0.0
    %3695 = vmatpush1.msra.mxu0 %v299
    %3696 = vmatprep.subr.mxu0 0.0
    %3697 = vmatpush1.msra.mxu0 %v298
    %3698 = vmatprep.subr.mxu0 0.0
    %3699 = vmatpush1.msra.mxu0 %v297
    %3700 = vmatprep.subr.mxu0 0.0
    %3701 = vmatpush1.msra.mxu0 %v296
    %3702 = vmatprep.subr.mxu0 0.0
    %3703 = vmatpush1.msra.mxu0 %v295
    %3704 = vmatprep.subr.mxu0 0.0
    %3705 = vmatpush1.msra.mxu0 %v294
    %3706 = vmatprep.subr.mxu0 0.0
    %3707 = vmatpush2.msra.mxu0 0.0
    %3708 = vmatprep.subr.mxu0 0.0
    %3709 = vmatpush2.msra.mxu0 0.0
    %3710 = vmatprep.subr.mxu0 0.0
    %3711 = vmatpush2.msra.mxu0 0.0
    %3712 = vmatprep.subr.mxu0 0.0
    %3713 = vmatpush2.msra.mxu0 0.0
    %3714 = vmatprep.subr.mxu0 0.0
    %3715 = vmatpush2.msra.mxu0 0.0
    %3716 = vmatprep.subr.mxu0 0.0
    %3717 = vmatpush2.msra.mxu0 0.0
    %3718 = vmatprep.subr.mxu0 0.0
    %3719 = vmatpush2.msra.mxu0 0.0
    %3720 = vmatprep.subr.mxu0 0.0
    %3721 = vmatpush2.msra.mxu0 0.0
    %3722 = vmatprep.subr.mxu0 0.0
    %3723 = vmatpush2.msra.mxu0 0.0
    %3724 = vmatprep.subr.mxu0 0.0
    %3725 = vmatpush2.msra.mxu0 0.0
    %3726 = vmatprep.subr.mxu0 0.0
    %3727 = vmatpush2.msra.mxu0 0.0
    %3728 = vmatprep.subr.mxu0 0.0
    %3729 = vmatpush2.msra.mxu0 0.0
    %3730 = vmatprep.subr.mxu0 0.0
    %3731 = vmatpush2.msra.mxu0 0.0
    %3732 = vmatprep.subr.mxu0 0.0
    %3733 = vmatpush2.msra.mxu0 0.0
    %3734 = vmatprep.subr.mxu0 0.0
    %3735 = vmatpush2.msra.mxu0 0.0
    %3736 = vmatprep.subr.mxu0 0.0
    %3737 = vmatpush2.msra.mxu0 0.0
    %3738 = vmatprep.mubr.f32.mxu0 0.0
    %3739 = vmatmul.mubr.f32.gmra.mxu0 %v3672
    %v3740 = vpop.f32.mrf.mxu0
    %v3741 = vadd.f32 %v303, %v3740
    %v3742 = vpop.f32.mrf.mxu0
    %3743 = vdwg.mxu0
    %v3744 = vxor.u32 %v3741, 2147483648
    %v3745 = vmul.f32 %v3744, 1.442695
    %v3746 = vpow.pop %v3745
    %v3747 = vadd.f32 %v3746, 1.0
    %v3748 = vrcp.pop %v3747
    %v3749 = vmul.f32 1.0, %v3748
    %v3750 = vtanh.pop %v3741
    %v3751 = vmul.f32 %v3749, %v3364
    %3753 = vrot.lane.b32.xlu0 %v3750, 64
    %v3754 = vpop.permute.xlu0 %3753
    %v3756 = vmul.f32 %v3749, %v3754
    %3758 = vrot.lane.b32.xlu0 %v3756, 32
    %v3759 = vpop.permute.xlu0 %3758
    %v3761 = vadd.f32 %v3751, %v3759
    %v3762 = vtanh.pop %v3761
    %3764 = vrot.lane.b32.xlu0 %v3762, 64
    %v3765 = vpop.permute.xlu0 %3764
    %v3767 = vmul.f32 %v3749, %v3765
    %v3768 = vld [vmem:[%s7] sm:$0xff]
    %v3769 = vld [vmem:[%s7 + $0x8] sm:$0xff]
    %v3770 = vld [vmem:[%s7 + $0x10] sm:$0xff]
    %v3771 = vld [vmem:[%s7 + $0x18] sm:$0xff]
    %v3772 = vld [vmem:[%s8] sm:$0x1]
    %3774 = vrot.lane.b32.xlu0 %v3767, 32
    %v3775 = vpop.permute.xlu0 %3774
    %v3776 = vsel %vm311, %v3775, 0
    %3778 = vmatprep.subr.mxu0 0.0
    %3779 = vmatpush1.msra.mxu0 0.0
    %3780 = vmatprep.subr.mxu0 0.0
    %3781 = vmatpush1.msra.mxu0 0.0
    %3782 = vmatprep.subr.mxu0 0.0
    %3783 = vmatpush1.msra.mxu0 0.0
    %3784 = vmatprep.subr.mxu0 0.0
    %3785 = vmatpush1.msra.mxu0 0.0
    %3786 = vmatprep.subr.mxu0 0.0
    %3787 = vmatpush1.msra.mxu0 0.0
    %3788 = vmatprep.subr.mxu0 0.0
    %3789 = vmatpush1.msra.mxu0 0.0
    %3790 = vmatprep.subr.mxu0 0.0
    %3791 = vmatpush1.msra.mxu0 0.0
    %3792 = vmatprep.subr.mxu0 0.0
    %3793 = vmatpush1.msra.mxu0 0.0
    %3794 = vmatprep.subr.mxu0 0.0
    %3795 = vmatpush1.msra.mxu0 0.0
    %3796 = vmatprep.subr.mxu0 0.0
    %3797 = vmatpush1.msra.mxu0 0.0
    %3798 = vmatprep.subr.mxu0 0.0
    %3799 = vmatpush1.msra.mxu0 0.0
    %3800 = vmatprep.subr.mxu0 0.0
    %3801 = vmatpush1.msra.mxu0 0.0
    %3802 = vmatprep.subr.mxu0 0.0
    %3803 = vmatpush1.msra.mxu0 %v3771
    %3804 = vmatprep.subr.mxu0 0.0
    %3805 = vmatpush1.msra.mxu0 %v3770
    %3806 = vmatprep.subr.mxu0 0.0
    %3807 = vmatpush1.msra.mxu0 %v3769
    %3808 = vmatprep.subr.mxu0 0.0
    %3809 = vmatpush1.msra.mxu0 %v3768
    %3810 = vmatprep.subr.mxu0 0.0
    %3811 = vmatpush2.msra.mxu0 0.0
    %3812 = vmatprep.subr.mxu0 0.0
    %3813 = vmatpush2.msra.mxu0 0.0
    %3814 = vmatprep.subr.mxu0 0.0
    %3815 = vmatpush2.msra.mxu0 0.0
    %3816 = vmatprep.subr.mxu0 0.0
    %3817 = vmatpush2.msra.mxu0 0.0
    %3818 = vmatprep.subr.mxu0 0.0
    %3819 = vmatpush2.msra.mxu0 0.0
    %3820 = vmatprep.subr.mxu0 0.0
    %3821 = vmatpush2.msra.mxu0 0.0
    %3822 = vmatprep.subr.mxu0 0.0
    %3823 = vmatpush2.msra.mxu0 0.0
    %3824 = vmatprep.subr.mxu0 0.0
    %3825 = vmatpush2.msra.mxu0 0.0
    %3826 = vmatprep.subr.mxu0 0.0
    %3827 = vmatpush2.msra.mxu0 0.0
    %3828 = vmatprep.subr.mxu0 0.0
    %3829 = vmatpush2.msra.mxu0 0.0
    %3830 = vmatprep.subr.mxu0 0.0
    %3831 = vmatpush2.msra.mxu0 0.0
    %3832 = vmatprep.subr.mxu0 0.0
    %3833 = vmatpush2.msra.mxu0 0.0
    %3834 = vmatprep.subr.mxu0 0.0
    %3835 = vmatpush2.msra.mxu0 0.0
    %3836 = vmatprep.subr.mxu0 0.0
    %3837 = vmatpush2.msra.mxu0 0.0
    %3838 = vmatprep.subr.mxu0 0.0
    %3839 = vmatpush2.msra.mxu0 0.0
    %3840 = vmatprep.subr.mxu0 0.0
    %3841 = vmatpush2.msra.mxu0 0.0
    %3842 = vmatprep.mubr.f32.mxu0 0.0
    %3843 = vmatmul.mubr.f32.gmra.mxu0 %v3776
    %v3844 = vpop.f32.mrf.mxu0
    %v3845 = vadd.f32 %v3772, %v3844
    %v3846 = vpop.f32.mrf.mxu0
    %3847 = vdwg.mxu0
    %3848 = vst [vmem:[#allocation3 + $0x8] sm:$0x1] %v3845
    %v3849 = vld [vmem:[%s9 + $0x8] sm:$0x1]
    %v3850 = vadd.f32 %v3845, %v3849
    %v3851 = vsel %vm677, %v3850, -inf
    %3852 = vmax.xlane.f32.xlu0 %v3851
    %v3853 = vpop.xlane.xlu0 %3852
    %vm3854 = vcmp.ge.f32.partialorder %v3850, %v3853
    %v3855 = vsel %vm3854, %v283, 128
    %v3856 = vsel %vm677, %v3855, 2147483647
    %v3857 = vand.u32 %v3856, 65535
    %v3858 = vshra.s32 %v3856, 16
    %v3859 = vcvt.s32.f32 %v3857
    %v3860 = vcvt.s32.f32 %v3858
    %3861 = vmin.xlane.f32.xlu0 %v3860
    %v3862 = vpop.xlane.xlu0 %3861
    %vm3863 = vcmp.eq.f32.partialorder %v3860, %v3862
    %v3864 = vsel %vm3863, %v3859, inf
    %3865 = vmin.xlane.f32.xlu0 %v3864
    %v3866 = vpop.xlane.xlu0 %3865
    %v3867 = vcvt.f32.s32 %v3866
    %v3868 = vcvt.f32.s32 %v3862
    %v3869 = vshll.u32 %v3868, 16
    %v3870 = vadd.s32 %v3869, %v3867
    %vm3871 = vcmp.gt.s32.totalorder %v3481, 0
    %v3872 = vsel %vm3871, 29, %v3870
    %vm3873 = vcmp.eq.s32.totalorder %v283, 8
    %v3874 = vsel %vm3873, %v3872, %v3477
    %vm3875 = vcmp.eq.s32.totalorder %v3872, 29
    %v3876 = vsel %vm3875, 1, 0
    %vm3877 = vcmp.gt.s32.totalorder %v3481, %v3876
    %v3878 = vsel %vm3877, %v3481, %v3876
    %vm3879 = vcmp.eq.s32.totalorder %v283, %v3872
    %v3880 = vsel %vm3879, 1, 0
    %v3881 = vcvt.s32.f32 %v3880
    %v3882 = vld [vmem:[%s6] sm:$0xff]
    %v3883 = vld [vmem:[%s6 + $0x8] sm:$0xff]
    %v3884 = vld [vmem:[%s6 + $0x10] sm:$0xff]
    %v3885 = vld [vmem:[%s6 + $0x18] sm:$0xff]
    %v3887 = vsel %vm311, %v3881, 0
    %3889 = vmatprep.subr.mxu0 0.0
    %3890 = vmatpush1.msra.mxu0 0.0
    %3891 = vmatprep.subr.mxu0 0.0
    %3892 = vmatpush1.msra.mxu0 0.0
    %3893 = vmatprep.subr.mxu0 0.0
    %3894 = vmatpush1.msra.mxu0 0.0
    %3895 = vmatprep.subr.mxu0 0.0
    %3896 = vmatpush1.msra.mxu0 0.0
    %3897 = vmatprep.subr.mxu0 0.0
    %3898 = vmatpush1.msra.mxu0 0.0
    %3899 = vmatprep.subr.mxu0 0.0
    %3900 = vmatpush1.msra.mxu0 0.0
    %3901 = vmatprep.subr.mxu0 0.0
    %3902 = vmatpush1.msra.mxu0 0.0
    %3903 = vmatprep.subr.mxu0 0.0
    %3904 = vmatpush1.msra.mxu0 0.0
    %3905 = vmatprep.subr.mxu0 0.0
    %3906 = vmatpush1.msra.mxu0 0.0
    %3907 = vmatprep.subr.mxu0 0.0
    %3908 = vmatpush1.msra.mxu0 0.0
    %3909 = vmatprep.subr.mxu0 0.0
    %3910 = vmatpush1.msra.mxu0 0.0
    %3911 = vmatprep.subr.mxu0 0.0
    %3912 = vmatpush1.msra.mxu0 0.0
    %3913 = vmatprep.subr.mxu0 0.0
    %3914 = vmatpush1.msra.mxu0 %v3885
    %3915 = vmatprep.subr.mxu0 0.0
    %3916 = vmatpush1.msra.mxu0 %v3884
    %3917 = vmatprep.subr.mxu0 0.0
    %3918 = vmatpush1.msra.mxu0 %v3883
    %3919 = vmatprep.subr.mxu0 0.0
    %3920 = vmatpush1.msra.mxu0 %v3882
    %3921 = vmatprep.subr.mxu0 0.0
    %3922 = vmatpush2.msra.mxu0 0.0
    %3923 = vmatprep.subr.mxu0 0.0
    %3924 = vmatpush2.msra.mxu0 0.0
    %3925 = vmatprep.subr.mxu0 0.0
    %3926 = vmatpush2.msra.mxu0 0.0
    %3927 = vmatprep.subr.mxu0 0.0
    %3928 = vmatpush2.msra.mxu0 0.0
    %3929 = vmatprep.subr.mxu0 0.0
    %3930 = vmatpush2.msra.mxu0 0.0
    %3931 = vmatprep.subr.mxu0 0.0
    %3932 = vmatpush2.msra.mxu0 0.0
    %3933 = vmatprep.subr.mxu0 0.0
    %3934 = vmatpush2.msra.mxu0 0.0
    %3935 = vmatprep.subr.mxu0 0.0
    %3936 = vmatpush2.msra.mxu0 0.0
    %3937 = vmatprep.subr.mxu0 0.0
    %3938 = vmatpush2.msra.mxu0 0.0
    %3939 = vmatprep.subr.mxu0 0.0
    %3940 = vmatpush2.msra.mxu0 0.0
    %3941 = vmatprep.subr.mxu0 0.0
    %3942 = vmatpush2.msra.mxu0 0.0
    %3943 = vmatprep.subr.mxu0 0.0
    %3944 = vmatpush2.msra.mxu0 0.0
    %3945 = vmatprep.subr.mxu0 0.0
    %3946 = vmatpush2.msra.mxu0 0.0
    %3947 = vmatprep.subr.mxu0 0.0
    %3948 = vmatpush2.msra.mxu0 0.0
    %3949 = vmatprep.subr.mxu0 0.0
    %3950 = vmatpush2.msra.mxu0 0.0
    %3951 = vmatprep.subr.mxu0 0.0
    %3952 = vmatpush2.msra.mxu0 0.0
    %3953 = vmatprep.mubr.f32.mxu0 0.0
    %3954 = vmatmul.mubr.f32.gmra.mxu0 %v3887
    %v3955 = vpop.f32.mrf.mxu0
    %v3956 = vadd.f32 0.0, %v3955
    %v3957 = vpop.f32.mrf.mxu0
    %3958 = vdwg.mxu0
    %3959 = vrot.lane.b32.xlu0 %v3662, 64
    %v3960 = vpop.permute.xlu0 %3959
    %v3962 = vsel %vm311, %v3956, %v3960
    %v3964 = vsel %vm390, %v3962, 0
    %3966 = vmatprep.subr.mxu0 0.0
    %3967 = vmatpush1.msra.mxu0 0.0
    %3968 = vmatprep.subr.mxu0 0.0
    %3969 = vmatpush1.msra.mxu0 0.0
    %3970 = vmatprep.subr.mxu0 0.0
    %3971 = vmatpush1.msra.mxu0 0.0
    %3972 = vmatprep.subr.mxu0 0.0
    %3973 = vmatpush1.msra.mxu0 0.0
    %3974 = vmatprep.subr.mxu0 0.0
    %3975 = vmatpush1.msra.mxu0 0.0
    %3976 = vmatprep.subr.mxu0 0.0
    %3977 = vmatpush1.msra.mxu0 0.0
    %3978 = vmatprep.subr.mxu0 0.0
    %3979 = vmatpush1.msra.mxu0 0.0
    %3980 = vmatprep.subr.mxu0 0.0
    %3981 = vmatpush1.msra.mxu0 0.0
    %3982 = vmatprep.subr.mxu0 0.0
    %3983 = vmatpush1.msra.mxu0 %v291
    %3984 = vmatprep.subr.mxu0 0.0
    %3985 = vmatpush1.msra.mxu0 %v290
    %3986 = vmatprep.subr.mxu0 0.0
    %3987 = vmatpush1.msra.mxu0 %v289
    %3988 = vmatprep.subr.mxu0 0.0
    %3989 = vmatpush1.msra.mxu0 %v288
    %3990 = vmatprep.subr.mxu0 0.0
    %3991 = vmatpush1.msra.mxu0 %v287
    %3992 = vmatprep.subr.mxu0 0.0
    %3993 = vmatpush1.msra.mxu0 %v286
    %3994 = vmatprep.subr.mxu0 0.0
    %3995 = vmatpush1.msra.mxu0 %v285
    %3996 = vmatprep.subr.mxu0 0.0
    %3997 = vmatpush1.msra.mxu0 %v284
    %3998 = vmatprep.subr.mxu0 0.0
    %3999 = vmatpush2.msra.mxu0 0.0
    %4000 = vmatprep.subr.mxu0 0.0
    %4001 = vmatpush2.msra.mxu0 0.0
    %4002 = vmatprep.subr.mxu0 0.0
    %4003 = vmatpush2.msra.mxu0 0.0
    %4004 = vmatprep.subr.mxu0 0.0
    %4005 = vmatpush2.msra.mxu0 0.0
    %4006 = vmatprep.subr.mxu0 0.0
    %4007 = vmatpush2.msra.mxu0 0.0
    %4008 = vmatprep.subr.mxu0 0.0
    %4009 = vmatpush2.msra.mxu0 0.0
    %4010 = vmatprep.subr.mxu0 0.0
    %4011 = vmatpush2.msra.mxu0 0.0
    %4012 = vmatprep.subr.mxu0 0.0
    %4013 = vmatpush2.msra.mxu0 0.0
    %4014 = vmatprep.subr.mxu0 0.0
    %4015 = vmatpush2.msra.mxu0 0.0
    %4016 = vmatprep.subr.mxu0 0.0
    %4017 = vmatpush2.msra.mxu0 0.0
    %4018 = vmatprep.subr.mxu0 0.0
    %4019 = vmatpush2.msra.mxu0 0.0
    %4020 = vmatprep.subr.mxu0 0.0
    %4021 = vmatpush2.msra.mxu0 0.0
    %4022 = vmatprep.subr.mxu0 0.0
    %4023 = vmatpush2.msra.mxu0 0.0
    %4024 = vmatprep.subr.mxu0 0.0
    %4025 = vmatpush2.msra.mxu0 0.0
    %4026 = vmatprep.subr.mxu0 0.0
    %4027 = vmatpush2.msra.mxu0 0.0
    %4028 = vmatprep.subr.mxu0 0.0
    %4029 = vmatpush2.msra.mxu0 0.0
    %4030 = vmatprep.mubr.f32.mxu0 0.0
    %4031 = vmatmul.mubr.f32.gmra.mxu0 %v3964
    %v4032 = vpop.f32.mrf.mxu0
    %v4033 = vadd.f32 %v292, %v4032
    %v4034 = vpop.f32.mrf.mxu0
    %4035 = vdwg.mxu0
    %v4036 = vxor.u32 %v4033, 2147483648
    %v4037 = vmul.f32 %v4036, 1.442695
    %v4038 = vpow.pop %v4037
    %v4039 = vadd.f32 %v4038, 1.0
    %v4040 = vrcp.pop %v4039
    %v4041 = vmul.f32 1.0, %v4040
    %v4042 = vtanh.pop %v4033
    %v4043 = vmul.f32 %v4041, %v3656
    %4045 = vrot.lane.b32.xlu0 %v4042, 64
    %v4046 = vpop.permute.xlu0 %4045
    %v4048 = vmul.f32 %v4041, %v4046
    %4050 = vrot.lane.b32.xlu0 %v4048, 32
    %v4051 = vpop.permute.xlu0 %4050
    %v4053 = vadd.f32 %v4043, %v4051
    %v4054 = vtanh.pop %v4053
    %4056 = vrot.lane.b32.xlu0 %v4054, 64
    %v4057 = vpop.permute.xlu0 %4056
    %v4059 = vmul.f32 %v4041, %v4057
    %4061 = vrot.lane.b32.xlu0 %v4059, 32
    %v4062 = vpop.permute.xlu0 %4061
    %4064 = vrot.lane.b32.xlu0 %v3767, 64
    %v4065 = vpop.permute.xlu0 %4064
    %v4067 = vsel %vm311, %v4062, %v4065
    %v4069 = vsel %vm390, %v4067, 0
    %4071 = vmatprep.subr.mxu0 0.0
    %4072 = vmatpush1.msra.mxu0 0.0
    %4073 = vmatprep.subr.mxu0 0.0
    %4074 = vmatpush1.msra.mxu0 0.0
    %4075 = vmatprep.subr.mxu0 0.0
    %4076 = vmatpush1.msra.mxu0 0.0
    %4077 = vmatprep.subr.mxu0 0.0
    %4078 = vmatpush1.msra.mxu0 0.0
    %4079 = vmatprep.subr.mxu0 0.0
    %4080 = vmatpush1.msra.mxu0 0.0
    %4081 = vmatprep.subr.mxu0 0.0
    %4082 = vmatpush1.msra.mxu0 0.0
    %4083 = vmatprep.subr.mxu0 0.0
    %4084 = vmatpush1.msra.mxu0 0.0
    %4085 = vmatprep.subr.mxu0 0.0
    %4086 = vmatpush1.msra.mxu0 0.0
    %4087 = vmatprep.subr.mxu0 0.0
    %4088 = vmatpush1.msra.mxu0 %v301
    %4089 = vmatprep.subr.mxu0 0.0
    %4090 = vmatpush1.msra.mxu0 %v300
    %4091 = vmatprep.subr.mxu0 0.0
    %4092 = vmatpush1.msra.mxu0 %v299
    %4093 = vmatprep.subr.mxu0 0.0
    %4094 = vmatpush1.msra.mxu0 %v298
    %4095 = vmatprep.subr.mxu0 0.0
    %4096 = vmatpush1.msra.mxu0 %v297
    %4097 = vmatprep.subr.mxu0 0.0
    %4098 = vmatpush1.msra.mxu0 %v296
    %4099 = vmatprep.subr.mxu0 0.0
    %4100 = vmatpush1.msra.mxu0 %v295
    %4101 = vmatprep.subr.mxu0 0.0
    %4102 = vmatpush1.msra.mxu0 %v294
    %4103 = vmatprep.subr.mxu0 0.0
    %4104 = vmatpush2.msra.mxu0 0.0
    %4105 = vmatprep.subr.mxu0 0.0
    %4106 = vmatpush2.msra.mxu0 0.0
    %4107 = vmatprep.subr.mxu0 0.0
    %4108 = vmatpush2.msra.mxu0 0.0
    %4109 = vmatprep.subr.mxu0 0.0
    %4110 = vmatpush2.msra.mxu0 0.0
    %4111 = vmatprep.subr.mxu0 0.0
    %4112 = vmatpush2.msra.mxu0 0.0
    %4113 = vmatprep.subr.mxu0 0.0
    %4114 = vmatpush2.msra.mxu0 0.0
    %4115 = vmatprep.subr.mxu0 0.0
    %4116 = vmatpush2.msra.mxu0 0.0
    %4117 = vmatprep.subr.mxu0 0.0
    %4118 = vmatpush2.msra.mxu0 0.0
    %4119 = vmatprep.subr.mxu0 0.0
    %4120 = vmatpush2.msra.mxu0 0.0
    %4121 = vmatprep.subr.mxu0 0.0
    %4122 = vmatpush2.msra.mxu0 0.0
    %4123 = vmatprep.subr.mxu0 0.0
    %4124 = vmatpush2.msra.mxu0 0.0
    %4125 = vmatprep.subr.mxu0 0.0
    %4126 = vmatpush2.msra.mxu0 0.0
    %4127 = vmatprep.subr.mxu0 0.0
    %4128 = vmatpush2.msra.mxu0 0.0
    %4129 = vmatprep.subr.mxu0 0.0
    %4130 = vmatpush2.msra.mxu0 0.0
    %4131 = vmatprep.subr.mxu0 0.0
    %4132 = vmatpush2.msra.mxu0 0.0
    %4133 = vmatprep.subr.mxu0 0.0
    %4134 = vmatpush2.msra.mxu0 0.0
    %4135 = vmatprep.mubr.f32.mxu0 0.0
    %4136 = vmatmul.mubr.f32.gmra.mxu0 %v4069
    %v4137 = vpop.f32.mrf.mxu0
    %v4138 = vadd.f32 %v303, %v4137
    %v4139 = vpop.f32.mrf.mxu0
    %4140 = vdwg.mxu0
    %v4141 = vxor.u32 %v4138, 2147483648
    %v4142 = vmul.f32 %v4141, 1.442695
    %v4143 = vpow.pop %v4142
    %v4144 = vadd.f32 %v4143, 1.0
    %v4145 = vrcp.pop %v4144
    %v4146 = vmul.f32 1.0, %v4145
    %v4147 = vtanh.pop %v4138
    %v4148 = vmul.f32 %v4146, %v3761
    %4150 = vrot.lane.b32.xlu0 %v4147, 64
    %v4151 = vpop.permute.xlu0 %4150
    %v4153 = vmul.f32 %v4146, %v4151
    %4155 = vrot.lane.b32.xlu0 %v4153, 32
    %v4156 = vpop.permute.xlu0 %4155
    %v4158 = vadd.f32 %v4148, %v4156
    %v4159 = vtanh.pop %v4158
    %4161 = vrot.lane.b32.xlu0 %v4159, 64
    %v4162 = vpop.permute.xlu0 %4161
    %v4164 = vmul.f32 %v4146, %v4162
    %v4165 = vld [vmem:[%s7] sm:$0xff]
    %v4166 = vld [vmem:[%s7 + $0x8] sm:$0xff]
    %v4167 = vld [vmem:[%s7 + $0x10] sm:$0xff]
    %v4168 = vld [vmem:[%s7 + $0x18] sm:$0xff]
    %v4169 = vld [vmem:[%s8] sm:$0x1]
    %4171 = vrot.lane.b32.xlu0 %v4164, 32
    %v4172 = vpop.permute.xlu0 %4171
    %v4173 = vsel %vm311, %v4172, 0
    %4175 = vmatprep.subr.mxu0 0.0
    %4176 = vmatpush1.msra.mxu0 0.0
    %4177 = vmatprep.subr.mxu0 0.0
    %4178 = vmatpush1.msra.mxu0 0.0
    %4179 = vmatprep.subr.mxu0 0.0
    %4180 = vmatpush1.msra.mxu0 0.0
    %4181 = vmatprep.subr.mxu0 0.0
    %4182 = vmatpush1.msra.mxu0 0.0
    %4183 = vmatprep.subr.mxu0 0.0
    %4184 = vmatpush1.msra.mxu0 0.0
    %4185 = vmatprep.subr.mxu0 0.0
    %4186 = vmatpush1.msra.mxu0 0.0
    %4187 = vmatprep.subr.mxu0 0.0
    %4188 = vmatpush1.msra.mxu0 0.0
    %4189 = vmatprep.subr.mxu0 0.0
    %4190 = vmatpush1.msra.mxu0 0.0
    %4191 = vmatprep.subr.mxu0 0.0
    %4192 = vmatpush1.msra.mxu0 0.0
    %4193 = vmatprep.subr.mxu0 0.0
    %4194 = vmatpush1.msra.mxu0 0.0
    %4195 = vmatprep.subr.mxu0 0.0
    %4196 = vmatpush1.msra.mxu0 0.0
    %4197 = vmatprep.subr.mxu0 0.0
    %4198 = vmatpush1.msra.mxu0 0.0
    %4199 = vmatprep.subr.mxu0 0.0
    %4200 = vmatpush1.msra.mxu0 %v4168
    %4201 = vmatprep.subr.mxu0 0.0
    %4202 = vmatpush1.msra.mxu0 %v4167
    %4203 = vmatprep.subr.mxu0 0.0
    %4204 = vmatpush1.msra.mxu0 %v4166
    %4205 = vmatprep.subr.mxu0 0.0
    %4206 = vmatpush1.msra.mxu0 %v4165
    %4207 = vmatprep.subr.mxu0 0.0
    %4208 = vmatpush2.msra.mxu0 0.0
    %4209 = vmatprep.subr.mxu0 0.0
    %4210 = vmatpush2.msra.mxu0 0.0
    %4211 = vmatprep.subr.mxu0 0.0
    %4212 = vmatpush2.msra.mxu0 0.0
    %4213 = vmatprep.subr.mxu0 0.0
    %4214 = vmatpush2.msra.mxu0 0.0
    %4215 = vmatprep.subr.mxu0 0.0
    %4216 = vmatpush2.msra.mxu0 0.0
    %4217 = vmatprep.subr.mxu0 0.0
    %4218 = vmatpush2.msra.mxu0 0.0
    %4219 = vmatprep.subr.mxu0 0.0
    %4220 = vmatpush2.msra.mxu0 0.0
    %4221 = vmatprep.subr.mxu0 0.0
    %4222 = vmatpush2.msra.mxu0 0.0
    %4223 = vmatprep.subr.mxu0 0.0
    %4224 = vmatpush2.msra.mxu0 0.0
    %4225 = vmatprep.subr.mxu0 0.0
    %4226 = vmatpush2.msra.mxu0 0.0
    %4227 = vmatprep.subr.mxu0 0.0
    %4228 = vmatpush2.msra.mxu0 0.0
    %4229 = vmatprep.subr.mxu0 0.0
    %4230 = vmatpush2.msra.mxu0 0.0
    %4231 = vmatprep.subr.mxu0 0.0
    %4232 = vmatpush2.msra.mxu0 0.0
    %4233 = vmatprep.subr.mxu0 0.0
    %4234 = vmatpush2.msra.mxu0 0.0
    %4235 = vmatprep.subr.mxu0 0.0
    %4236 = vmatpush2.msra.mxu0 0.0
    %4237 = vmatprep.subr.mxu0 0.0
    %4238 = vmatpush2.msra.mxu0 0.0
    %4239 = vmatprep.mubr.f32.mxu0 0.0
    %4240 = vmatmul.mubr.f32.gmra.mxu0 %v4173
    %v4241 = vpop.f32.mrf.mxu0
    %v4242 = vadd.f32 %v4169, %v4241
    %v4243 = vpop.f32.mrf.mxu0
    %4244 = vdwg.mxu0
    %4245 = vst [vmem:[#allocation3 + $0x9] sm:$0x1] %v4242
    %v4246 = vld [vmem:[%s9 + $0x9] sm:$0x1]
    %v4247 = vadd.f32 %v4242, %v4246
    %v4248 = vsel %vm677, %v4247, -inf
    %4249 = vmax.xlane.f32.xlu0 %v4248
    %v4250 = vpop.xlane.xlu0 %4249
    %vm4251 = vcmp.ge.f32.partialorder %v4247, %v4250
    %v4252 = vsel %vm4251, %v283, 128
    %v4253 = vsel %vm677, %v4252, 2147483647
    %v4254 = vand.u32 %v4253, 65535
    %v4255 = vshra.s32 %v4253, 16
    %v4256 = vcvt.s32.f32 %v4254
    %v4257 = vcvt.s32.f32 %v4255
    %4258 = vmin.xlane.f32.xlu0 %v4257
    %v4259 = vpop.xlane.xlu0 %4258
    %vm4260 = vcmp.eq.f32.partialorder %v4257, %v4259
    %v4261 = vsel %vm4260, %v4256, inf
    %4262 = vmin.xlane.f32.xlu0 %v4261
    %v4263 = vpop.xlane.xlu0 %4262
    %v4264 = vcvt.f32.s32 %v4263
    %v4265 = vcvt.f32.s32 %v4259
    %v4266 = vshll.u32 %v4265, 16
    %v4267 = vadd.s32 %v4266, %v4264
    %vm4268 = vcmp.gt.s32.totalorder %v3878, 0
    %v4269 = vsel %vm4268, 29, %v4267
    %vm4270 = vcmp.eq.s32.totalorder %v283, 9
    %v4271 = vsel %vm4270, %v4269, %v3874
    %4272 = vst [vmem:[%s10] sm:$0x1] %v4271
    // Predicated region
    $region49: #{_dae_device.1} parent=1 // pred_check
      _
    $region50: #{_dae_device.1} parent=1 // pred_check_branch
      %4274 = sbr.rel (0) target = $region52
    $region51: #{_dae_device.1} parent=1 // pred_region
      _
    $region52: #{_dae_device.1} parent=1 // pred_fallthru
      _
    // Predicated region
    $region53: #{_dae_device.1} parent=1 // pred_check
      _
    $region54: #{_dae_device.1} parent=1 // pred_check_branch
      %4276 = sbr.rel (0) target = $region56
    $region55: #{_dae_device.1} parent=1 // pred_region
      %s4278 = ssub.s32 256, 256
      %4279 = vsyncadd [#allocation4], %s4278
      %s4280 = sshll.u32 [#allocation3], 4
      %s4281 = int_to_ptr.vmem [resolvable:$true] %s4280
      %4286 = dma.vmem_to_hbm [thread:$0]  %s4281, 256, %s11, [#allocation4], 128, 128, 8
    $region56: #{_dae_device.1} parent=1 // pred_fallthru
      _
    // Predicated region
    $region57: #{_dae_device.1} parent=1 // pred_check
      _
    $region58: #{_dae_device.1} parent=1 // pred_check_branch
      %4288 = sbr.rel (0) target = $region60
    $region59: #{_dae_device.1} parent=1 // pred_region
      _
    $region60: #{_dae_device.1} parent=1 // pred_fallthru
      _
    // Predicated region
    $region61: #{_dae_device.1} parent=1 // pred_check
      _
    $region62: #{_dae_device.1} parent=1 // pred_check_branch
      %4290 = sbr.rel (0) target = $region64
    $region63: #{_dae_device.1} parent=1 // pred_region
      %4291 = dma.done [#allocation4], 256
    $region64: #{_dae_device.1} parent=1 // pred_fallthru
      _
    %4292 = vsyncpa [#allocation4], 1

</llo_original>
